<compile_context>
chip_gen: v7x
topology: tpu7x:2x2x1
jax: 0.10.0
libtpu: 0.0.40
codegen_flags: <defaults>
</compile_context>

<pallas_src>
import functools

import numpy as np
import jax
import jax.numpy as jnp
from jax.experimental import pallas as pl
from jax.experimental.pallas import tpu as pltpu


# ------------------------------ model constants ---------------------------- #

_CHANNELS = (32, 64, 64)
_KSIZES = (8, 4, 3)
_STRIDES = (4, 2, 1)
_PADS = (0, 1, 1)
_FC_SIZE = 512
_LANE = 128


def _conv_geometry(h, w):
    """Per conv layer: (in_h, in_w, out_h, out_w, k, stride, pad)."""
    geo = []
    for k, s, p in zip(_KSIZES, _STRIDES, _PADS):
        oh = (h + 2 * p - k) // s + 1
        ow = (w + 2 * p - k) // s + 1
        geo.append((h, w, oh, ow, k, s, p))
        h, w = oh, ow
    return geo


def conv_out_size(h, w, c_in):
    for oc, k, s, p in zip(_CHANNELS, _KSIZES, _STRIDES, _PADS):
        h = (h + 2 * p - k) // s + 1
        w = (w + 2 * p - k) // s + 1
        c_in = oc
    return c_in * h * w


# ----------------------- host-side constant construction ------------------- #

def _tap_selection(batch, in_h, in_w, k, s, p, out_h, out_w, batch_major_out):
    """0/1 matrix of shape (k*k*M_out, M_in).

    Row t*M_out + m selects the previous-layer activation row feeding kernel
    tap t = (i, j) of output position m; taps that land in the zero padding
    get an all-zero row.  Previous-layer rows are (b, h, w) row-major with
    channels on columns (channels-on-lanes layout).
    """
    m_in = batch * in_h * in_w
    m_out = batch * out_h * out_w
    sel = np.zeros((k * k * m_out, m_in), np.float32)
    for i in range(k):
        for j in range(k):
            t = i * k + j
            for b in range(batch):
                for oh in range(out_h):
                    for ow in range(out_w):
                        if batch_major_out:
                            m = (b * out_h + oh) * out_w + ow
                        else:
                            m = (oh * out_w + ow) * batch + b
                        hi = oh * s + i - p
                        wi = ow * s + j - p
                        if 0 <= hi < in_h and 0 <= wi < in_w:
                            sel[t * m_out + m, (b * in_h + hi) * in_w + wi] = 1.0
    return sel


# ------------------------------ fused kernel ------------------------------- #

def _qec_fused_kernel(x_ref, w1_ref, b1_ref,
                      sel2_ref, w2_ref, b2_ref,
                      sel3_ref, w3_ref, b3_ref,
                      wf1_ref, bf1_ref, wf2_ref, bf2_ref,
                      o_ref, *, batch, m2, m3, int8_fixup):
    f32 = jnp.float32
    bf16 = jnp.bfloat16

    # ---- input cast: bytes -> f32 on the VPU, entirely in VMEM ----
    x = x_ref[...].astype(f32)
    if int8_fixup:
        # uint8 was bit-cast to int8 outside; undo the wrap for values >= 128.
        x = x + 256.0 * (x < 0).astype(f32)
    x = x.astype(bf16)                                   # exact: integers <= 255

    # ---- conv1: im2col GEMM + bias + ReLU (bf16 MXU, f32 accumulate) ----
    h = jnp.dot(x, w1_ref[...], preferred_element_type=f32)
    h = jnp.maximum(h + b1_ref[...], 0.0).astype(bf16)   # (batch*OH1*OW1, 32)

    # ---- conv2: gather taps with one selection matmul, then KH*KW shifted,
    #      accumulated matmuls (direct conv) ----
    taps = jnp.dot(sel2_ref[...], h, preferred_element_type=f32).astype(bf16)
    acc = jnp.zeros((m2, w2_ref.shape[2]), f32)
    for t in range(w2_ref.shape[0]):
        acc = acc + jnp.dot(taps[t * m2:(t + 1) * m2, :], w2_ref[t],
                            preferred_element_type=f32)
    h = jnp.maximum(acc + b2_ref[...], 0.0).astype(bf16)  # (m2, 64) rows (b,oh,ow)

    # ---- conv3 (output rows ordered (spatial, batch) so fc1 slices are
    #      contiguous) ----
    taps = jnp.dot(sel3_ref[...], h, preferred_element_type=f32).astype(bf16)
    acc = jnp.zeros((m3, w3_ref.shape[2]), f32)
    for t in range(w3_ref.shape[0]):
        acc = acc + jnp.dot(taps[t * m3:(t + 1) * m3, :], w3_ref[t],
                            preferred_element_type=f32)
    h = jnp.maximum(acc + b3_ref[...], 0.0).astype(bf16)  # (m3, 64) rows (p, b)

    # ---- fc1: NCHW flatten folded into the per-position weight slabs ----
    acc = jnp.zeros((batch, wf1_ref.shape[2]), f32)
    for p in range(wf1_ref.shape[0]):
        acc = acc + jnp.dot(h[p * batch:(p + 1) * batch, :], wf1_ref[p],
                            preferred_element_type=f32)
    h = jnp.maximum(acc + bf1_ref[...], 0.0).astype(bf16)  # (batch, 512)

    # ---- fc2: lane-dense (128-col padded) output ----
    o_ref[...] = jnp.dot(h, wf2_ref[...], preferred_element_type=f32) + bf2_ref[...]


def _full_spec(shape):
    n = len(shape)
    return pl.BlockSpec(shape, lambda i, _n=n: (0,) * _n)


# --------------------------- parameter preparation ------------------------- #

def init_qec_params(key, image_shape, output_size):
    """PyTorch-layout parameters (same init scheme as before)."""
    c, h, w = image_shape
    params = {"conv": []}
    keys = jax.random.split(key, 2 * len(_CHANNELS) + 4)
    ki = 0
    in_c = c
    for oc, k, s, p in zip(_CHANNELS, _KSIZES, _STRIDES, _PADS):
        fan_in = in_c * k * k
        bound = 1.0 / np.sqrt(fan_in)
        W = jax.random.uniform(keys[ki], (oc, in_c, k, k), jnp.float32,
                               -bound, bound)
        B = jax.random.uniform(keys[ki + 1], (oc,), jnp.float32, -bound, bound)
        ki += 2
        params["conv"].append((W, B, s, p))
        in_c = oc
    cos = conv_out_size(h, w, c)
    b1 = 1.0 / np.sqrt(cos)
    params["fc1_w"] = jax.random.uniform(keys[ki], (cos, _FC_SIZE), jnp.float32,
                                         -b1, b1)
    params["fc1_b"] = jax.random.uniform(keys[ki + 1], (_FC_SIZE,), jnp.float32,
                                         -b1, b1)
    b2 = 1.0 / np.sqrt(_FC_SIZE)
    params["fc2_w"] = jax.random.uniform(keys[ki + 2], (_FC_SIZE, output_size),
                                         jnp.float32, -b2, b2)
    params["fc2_b"] = jax.random.uniform(keys[ki + 3], (output_size,),
                                         jnp.float32, -b2, b2)
    return params


def prepare_fused(params, image_shape, output_size, batch):
    """One-time repack of the PyTorch-layout parameters into the fused-kernel
    layout (bf16 MXU weights, tap/selection matrices, lane-dense fc2).

    `batch` is the flattened T*B the kernel will see; the tiny selection
    matrices depend on it and must be rebuilt if it changes.
    """
    c, h, w = image_shape
    geo = _conv_geometry(h, w)
    _, _, oh1, ow1, k1, s1, p1 = geo[0]
    in_h2, in_w2, oh2, ow2, k2, s2, p2 = geo[1]
    in_h3, in_w3, oh3, ow3, k3, s3, p3 = geo[2]
    c1, c2, c3 = _CHANNELS

    (cw1, cb1, _, _), (cw2, cb2, _, _), (cw3, cb3, _, _) = params["conv"]

    # conv1 as an im2col GEMM: weight matrix rows in (cin, kh, kw) order.
    w1mat = jnp.asarray(cw1).reshape(c1, c * k1 * k1).T.astype(jnp.bfloat16)
    b1 = jnp.asarray(cb1).reshape(1, c1).astype(jnp.float32)

    # conv2 / conv3: per-tap weights (K*K, Cin, Cout) + pad/shift selection.
    sel2 = jnp.asarray(_tap_selection(batch, in_h2, in_w2, k2, s2, p2,
                                      oh2, ow2, batch_major_out=True),
                       jnp.bfloat16)
    w2taps = jnp.asarray(cw2).transpose(2, 3, 1, 0).reshape(
        k2 * k2, c1, c2).astype(jnp.bfloat16)
    b2 = jnp.asarray(cb2).reshape(1, c2).astype(jnp.float32)

    sel3 = jnp.asarray(_tap_selection(batch, in_h3, in_w3, k3, s3, p3,
                                      oh3, ow3, batch_major_out=False),
                       jnp.bfloat16)
    w3taps = jnp.asarray(cw3).transpose(2, 3, 1, 0).reshape(
        k3 * k3, c2, c3).astype(jnp.bfloat16)
    b3 = jnp.asarray(cb3).reshape(1, c3).astype(jnp.float32)

    # fc1: fold the PyTorch NCHW flatten (feature index = c*(OH*OW) + p) into a
    # one-time weight permutation -> (n_positions, C3, 512).
    npos = oh3 * ow3
    wf1 = jnp.asarray(params["fc1_w"]).reshape(c3, npos, _FC_SIZE)
    wf1 = wf1.transpose(1, 0, 2).astype(jnp.bfloat16)
    bf1 = jnp.asarray(params["fc1_b"]).reshape(1, _FC_SIZE).astype(jnp.float32)

    # fc2: pad to a lane-dense 128-column output; slice the actions outside.
    n_pad = ((output_size + _LANE - 1) // _LANE) * _LANE
    wf2 = jnp.zeros((_FC_SIZE, n_pad), jnp.float32)
    wf2 = wf2.at[:, :output_size].set(params["fc2_w"]).astype(jnp.bfloat16)
    bf2 = jnp.zeros((1, n_pad), jnp.float32).at[:, :output_size].set(
        params["fc2_b"])

    return dict(
        batch=batch, output_size=output_size, n_pad=n_pad,
        conv1=(k1, s1, p1, oh1, ow1),
        m2=batch * oh2 * ow2, m3=batch * oh3 * ow3,
        inputs=(w1mat, b1, sel2, w2taps, b2, sel3, w3taps, b3,
                wf1, bf1, wf2, bf2))


# --------------------------------- forward --------------------------------- #

def qec_forward(fused, observation, prev_action=None, prev_reward=None):
    """observation: uint8 array shaped (*lead, C, H, W); returns (*lead, A)."""
    # prev_action / prev_reward are unused by QECModel.forward (signature parity).
    lead = observation.shape[:-3]
    C, H, W = observation.shape[-3:]
    TB = int(np.prod(lead, dtype=np.int64)) if lead else 1
    assert TB == fused["batch"], (TB, fused["batch"])
    x = observation.reshape((TB, C, H, W))

    k1, s1, p1, oh1, ow1 = fused["conv1"]
    # Host-side im2col for the first conv, done in *bytes* so the only
    # pre-kernel HBM traffic is KH*KW-replicated uint8 patches (~8 KiB here).
    if p1:
        x = jnp.pad(x, ((0, 0), (0, 0), (p1, p1), (p1, p1)))
    cols = []
    for i in range(k1):
        for j in range(k1):
            cols.append(x[:, :, i:i + s1 * oh1:s1, j:j + s1 * ow1:s1])
    pat = jnp.stack(cols, axis=0).reshape(k1, k1, TB, C, oh1, ow1)
    pat = pat.transpose(2, 4, 5, 3, 0, 1).reshape(TB * oh1 * ow1, C * k1 * k1)

    int8_fixup = (pat.dtype == jnp.uint8)
    if int8_fixup:
        # Feed bytes into the kernel via the well-supported signed-int8 path;
        # the unsigned wrap is undone on the VPU inside the kernel.
        pat = jax.lax.bitcast_convert_type(pat, jnp.int8)
    else:
        pat = pat.astype(jnp.float32)

    kernel = functools.partial(_qec_fused_kernel,
                               batch=TB, m2=fused["m2"], m3=fused["m3"],
                               int8_fixup=int8_fixup)
    inputs = (pat,) + fused["inputs"]
    n_pad = fused["n_pad"]

    out = pl.pallas_call(
        kernel,
        out_shape=jax.ShapeDtypeStruct((TB, n_pad), jnp.float32),
        grid=(1,),
        in_specs=[_full_spec(a.shape) for a in inputs],
        out_specs=_full_spec((TB, n_pad)),
        compiler_params=pltpu.CompilerParams(
            dimension_semantics=("arbitrary",)),
    )(*inputs)

    q = out[:, :fused["output_size"]]
    return q.reshape(lead + (fused["output_size"],))


# ----------------------------- pure-JAX reference -------------------------- #

def qec_forward_ref(params, observation):
    img = observation.astype(jnp.float32)
    lead = img.shape[:-3]
    C, H, W = img.shape[-3:]
    x = img.reshape((-1, C, H, W))
    for (Wc, Bc, s, p) in params["conv"]:
        x = jax.lax.conv_general_dilated(
            x, Wc, window_strides=(s, s), padding=[(p, p), (p, p)],
            dimension_numbers=("NCHW", "OIHW", "NCHW"))
        x = jnp.maximum(x + Bc[None, :, None, None], 0.0)
    x = x.reshape(x.shape[0], -1)
    x = jnp.maximum(x @ params["fc1_w"] + params["fc1_b"], 0.0)
    q = x @ params["fc2_w"] + params["fc2_b"]
    return q.reshape(lead + (q.shape[-1],))


# ---------------------------------- main ----------------------------------- #

if __name__ == "__main__":
    image_shape = (4, 20, 20)      # (C, H, W): 4 stacked 20x20 frames
    output_size = 6                # number of actions
    batch = 2

    key = jax.random.PRNGKey(0)
    pkey, okey = jax.random.split(key)
    params = init_qec_params(pkey, image_shape, output_size)

    observation = jax.random.randint(
        okey, (batch,) + image_shape, 0, 256, dtype=jnp.int32).astype(jnp.uint8)
    prev_action = jnp.zeros((batch,), jnp.int32)      # unused by forward
    prev_reward = jnp.zeros((batch,), jnp.float32)    # unused by forward

    fused = prepare_fused(params, image_shape, output_size, batch)
    fwd = jax.jit(lambda obs: qec_forward(fused, obs, prev_action, prev_reward))

    q = jax.block_until_ready(fwd(observation))
    assert q.shape == (batch, output_size), q.shape

    q_ref = jax.block_until_ready(qec_forward_ref(params, observation))
    scale = float(jnp.max(jnp.abs(q_ref))) + 1.0
    # bf16 MXU inputs with f32 accumulation: ~0.5-1% relative noise expected.
    np.testing.assert_allclose(np.asarray(q), np.asarray(q_ref),
                               rtol=2e-2, atol=2e-2 * scale)

    print("KERNEL_OK")
</pallas_src>

<mosaic_0001>
module attributes {stable_mosaic.version = 11 : i64} {
  func.func @_qec_fused_kernel(%arg0: i32, %arg1: memref<32x256xi8, #tpu.memory_space<vmem>>, %arg2: memref<256x32xbf16, #tpu.memory_space<vmem>>, %arg3: memref<1x32xf32, #tpu.memory_space<vmem>>, %arg4: memref<128x32xbf16, #tpu.memory_space<vmem>>, %arg5: memref<16x32x64xbf16, #tpu.memory_space<vmem>>, %arg6: memref<1x64xf32, #tpu.memory_space<vmem>>, %arg7: memref<72x8xbf16, #tpu.memory_space<vmem>>, %arg8: memref<9x64x64xbf16, #tpu.memory_space<vmem>>, %arg9: memref<1x64xf32, #tpu.memory_space<vmem>>, %arg10: memref<4x64x512xbf16, #tpu.memory_space<vmem>>, %arg11: memref<1x512xf32, #tpu.memory_space<vmem>>, %arg12: memref<512x128xbf16, #tpu.memory_space<vmem>>, %arg13: memref<1x128xf32, #tpu.memory_space<vmem>>, %arg14: memref<2x128xf32, #tpu.memory_space<vmem>>) attributes {dimension_semantics = [#tpu.dimension_semantics<arbitrary>], iteration_bounds = array<i64: 1>, scalar_prefetch = 0 : i64, scratch_operands = 0 : i64, tpu.core_type = #tpu.core_type<tc>, window_params = [{pipeline_mode = #tpu.pipeline_mode<synchronous>, transform_indices = @transform_0, window_bounds = array<i64: 32, 256>}, {pipeline_mode = #tpu.pipeline_mode<synchronous>, transform_indices = @transform_1, window_bounds = array<i64: 256, 32>}, {pipeline_mode = #tpu.pipeline_mode<synchronous>, transform_indices = @transform_2, window_bounds = array<i64: 1, 32>}, {pipeline_mode = #tpu.pipeline_mode<synchronous>, transform_indices = @transform_3, window_bounds = array<i64: 128, 32>}, {pipeline_mode = #tpu.pipeline_mode<synchronous>, transform_indices = @transform_4, window_bounds = array<i64: 16, 32, 64>}, {pipeline_mode = #tpu.pipeline_mode<synchronous>, transform_indices = @transform_5, window_bounds = array<i64: 1, 64>}, {pipeline_mode = #tpu.pipeline_mode<synchronous>, transform_indices = @transform_6, window_bounds = array<i64: 72, 8>}, {pipeline_mode = #tpu.pipeline_mode<synchronous>, transform_indices = @transform_7, window_bounds = array<i64: 9, 64, 64>}, {pipeline_mode = #tpu.pipeline_mode<synchronous>, transform_indices = @transform_8, window_bounds = array<i64: 1, 64>}, {pipeline_mode = #tpu.pipeline_mode<synchronous>, transform_indices = @transform_9, window_bounds = array<i64: 4, 64, 512>}, {pipeline_mode = #tpu.pipeline_mode<synchronous>, transform_indices = @transform_10, window_bounds = array<i64: 1, 512>}, {pipeline_mode = #tpu.pipeline_mode<synchronous>, transform_indices = @transform_11, window_bounds = array<i64: 512, 128>}, {pipeline_mode = #tpu.pipeline_mode<synchronous>, transform_indices = @transform_12, window_bounds = array<i64: 1, 128>}, {pipeline_mode = #tpu.pipeline_mode<synchronous>, transform_indices = @transform_13, window_bounds = array<i64: 2, 128>}]} {
    %c0 = arith.constant 0 : index
    %c0_0 = arith.constant 0 : index
    %0 = vector.load %arg1[%c0, %c0_0] : memref<32x256xi8, #tpu.memory_space<vmem>>, vector<32x256xi8>
    %1 = arith.sitofp %0 : vector<32x256xi8> to vector<32x256xf32>
    %cst = arith.constant 0.000000e+00 : f32
    %2 = vector.broadcast %cst : f32 to vector<32x256xf32>
    %3 = arith.cmpf olt, %1, %2 : vector<32x256xf32>
    %4 = arith.extui %3 : vector<32x256xi1> to vector<32x256xi32>
    %5 = arith.sitofp %4 : vector<32x256xi32> to vector<32x256xf32>
    %cst_1 = arith.constant 2.560000e+02 : f32
    %6 = vector.broadcast %cst_1 : f32 to vector<32x256xf32>
    %7 = arith.mulf %6, %5 : vector<32x256xf32>
    %8 = arith.addf %1, %7 : vector<32x256xf32>
    %9 = arith.truncf %8 : vector<32x256xf32> to vector<32x256xbf16>
    %c0_2 = arith.constant 0 : index
    %c0_3 = arith.constant 0 : index
    %10 = vector.load %arg2[%c0_2, %c0_3] : memref<256x32xbf16, #tpu.memory_space<vmem>>, vector<256x32xbf16>
    %cst_4 = arith.constant dense<0.000000e+00> : vector<32x32xf32>
    %11 = tpu.matmul %9, %10, %cst_4 {dimension_numbers = #tpu.dot_dimension_numbers<[1], [0], [0], [1], [0, 0, 1, 1], [], []>} : vector<32x256xbf16>, vector<256x32xbf16>, vector<32x32xf32> -> vector<32x32xf32>
    %c0_5 = arith.constant 0 : index
    %c0_6 = arith.constant 0 : index
    %12 = vector.load %arg3[%c0_5, %c0_6] : memref<1x32xf32, #tpu.memory_space<vmem>>, vector<1x32xf32>
    %13 = vector.broadcast %12 : vector<1x32xf32> to vector<32x32xf32>
    %14 = arith.addf %11, %13 : vector<32x32xf32>
    %cst_7 = arith.constant 0.000000e+00 : f32
    %15 = vector.broadcast %cst_7 : f32 to vector<32x32xf32>
    %16 = arith.maximumf %14, %15 : vector<32x32xf32>
    %17 = arith.truncf %16 : vector<32x32xf32> to vector<32x32xbf16>
    %c0_8 = arith.constant 0 : index
    %c0_9 = arith.constant 0 : index
    %18 = vector.load %arg4[%c0_8, %c0_9] : memref<128x32xbf16, #tpu.memory_space<vmem>>, vector<128x32xbf16>
    %cst_10 = arith.constant dense<0.000000e+00> : vector<128x32xf32>
    %19 = tpu.matmul %18, %17, %cst_10 {dimension_numbers = #tpu.dot_dimension_numbers<[1], [0], [0], [1], [0, 0, 1, 1], [], []>} : vector<128x32xbf16>, vector<32x32xbf16>, vector<128x32xf32> -> vector<128x32xf32>
    %20 = arith.truncf %19 : vector<128x32xf32> to vector<128x32xbf16>
    %cst_11 = arith.constant 0.000000e+00 : f32
    %21 = vector.broadcast %cst_11 : f32 to vector<8x64xf32>
    %22 = vector.extract_strided_slice %20 {offsets = [0, 0], sizes = [8, 32], strides = [1, 1]} : vector<128x32xbf16> to vector<8x32xbf16>
    %c0_12 = arith.constant 0 : index
    %c0_13 = arith.constant 0 : index
    %c0_14 = arith.constant 0 : index
    %23 = vector.load %arg5[%c0_12, %c0_13, %c0_14] : memref<16x32x64xbf16, #tpu.memory_space<vmem>>, vector<1x32x64xbf16>
    %24 = vector.shape_cast %23 : vector<1x32x64xbf16> to vector<32x64xbf16>
    %cst_15 = arith.constant dense<0.000000e+00> : vector<8x64xf32>
    %25 = tpu.matmul %22, %24, %cst_15 {dimension_numbers = #tpu.dot_dimension_numbers<[1], [0], [0], [1], [0, 0, 1, 1], [], []>} : vector<8x32xbf16>, vector<32x64xbf16>, vector<8x64xf32> -> vector<8x64xf32>
    %26 = arith.addf %21, %25 : vector<8x64xf32>
    %27 = vector.extract_strided_slice %20 {offsets = [8, 0], sizes = [8, 32], strides = [1, 1]} : vector<128x32xbf16> to vector<8x32xbf16>
    %c1 = arith.constant 1 : index
    %c0_16 = arith.constant 0 : index
    %c0_17 = arith.constant 0 : index
    %28 = vector.load %arg5[%c1, %c0_16, %c0_17] : memref<16x32x64xbf16, #tpu.memory_space<vmem>>, vector<1x32x64xbf16>
    %29 = vector.shape_cast %28 : vector<1x32x64xbf16> to vector<32x64xbf16>
    %cst_18 = arith.constant dense<0.000000e+00> : vector<8x64xf32>
    %30 = tpu.matmul %27, %29, %cst_18 {dimension_numbers = #tpu.dot_dimension_numbers<[1], [0], [0], [1], [0, 0, 1, 1], [], []>} : vector<8x32xbf16>, vector<32x64xbf16>, vector<8x64xf32> -> vector<8x64xf32>
    %31 = arith.addf %26, %30 : vector<8x64xf32>
    %32 = vector.extract_strided_slice %20 {offsets = [16, 0], sizes = [8, 32], strides = [1, 1]} : vector<128x32xbf16> to vector<8x32xbf16>
    %c2 = arith.constant 2 : index
    %c0_19 = arith.constant 0 : index
    %c0_20 = arith.constant 0 : index
    %33 = vector.load %arg5[%c2, %c0_19, %c0_20] : memref<16x32x64xbf16, #tpu.memory_space<vmem>>, vector<1x32x64xbf16>
    %34 = vector.shape_cast %33 : vector<1x32x64xbf16> to vector<32x64xbf16>
    %cst_21 = arith.constant dense<0.000000e+00> : vector<8x64xf32>
    %35 = tpu.matmul %32, %34, %cst_21 {dimension_numbers = #tpu.dot_dimension_numbers<[1], [0], [0], [1], [0, 0, 1, 1], [], []>} : vector<8x32xbf16>, vector<32x64xbf16>, vector<8x64xf32> -> vector<8x64xf32>
    %36 = arith.addf %31, %35 : vector<8x64xf32>
    %37 = vector.extract_strided_slice %20 {offsets = [24, 0], sizes = [8, 32], strides = [1, 1]} : vector<128x32xbf16> to vector<8x32xbf16>
    %c3 = arith.constant 3 : index
    %c0_22 = arith.constant 0 : index
    %c0_23 = arith.constant 0 : index
    %38 = vector.load %arg5[%c3, %c0_22, %c0_23] : memref<16x32x64xbf16, #tpu.memory_space<vmem>>, vector<1x32x64xbf16>
    %39 = vector.shape_cast %38 : vector<1x32x64xbf16> to vector<32x64xbf16>
    %cst_24 = arith.constant dense<0.000000e+00> : vector<8x64xf32>
    %40 = tpu.matmul %37, %39, %cst_24 {dimension_numbers = #tpu.dot_dimension_numbers<[1], [0], [0], [1], [0, 0, 1, 1], [], []>} : vector<8x32xbf16>, vector<32x64xbf16>, vector<8x64xf32> -> vector<8x64xf32>
    %41 = arith.addf %36, %40 : vector<8x64xf32>
    %42 = vector.extract_strided_slice %20 {offsets = [32, 0], sizes = [8, 32], strides = [1, 1]} : vector<128x32xbf16> to vector<8x32xbf16>
    %c4 = arith.constant 4 : index
    %c0_25 = arith.constant 0 : index
    %c0_26 = arith.constant 0 : index
    %43 = vector.load %arg5[%c4, %c0_25, %c0_26] : memref<16x32x64xbf16, #tpu.memory_space<vmem>>, vector<1x32x64xbf16>
    %44 = vector.shape_cast %43 : vector<1x32x64xbf16> to vector<32x64xbf16>
    %cst_27 = arith.constant dense<0.000000e+00> : vector<8x64xf32>
    %45 = tpu.matmul %42, %44, %cst_27 {dimension_numbers = #tpu.dot_dimension_numbers<[1], [0], [0], [1], [0, 0, 1, 1], [], []>} : vector<8x32xbf16>, vector<32x64xbf16>, vector<8x64xf32> -> vector<8x64xf32>
    %46 = arith.addf %41, %45 : vector<8x64xf32>
    %47 = vector.extract_strided_slice %20 {offsets = [40, 0], sizes = [8, 32], strides = [1, 1]} : vector<128x32xbf16> to vector<8x32xbf16>
    %c5 = arith.constant 5 : index
    %c0_28 = arith.constant 0 : index
    %c0_29 = arith.constant 0 : index
    %48 = vector.load %arg5[%c5, %c0_28, %c0_29] : memref<16x32x64xbf16, #tpu.memory_space<vmem>>, vector<1x32x64xbf16>
    %49 = vector.shape_cast %48 : vector<1x32x64xbf16> to vector<32x64xbf16>
    %cst_30 = arith.constant dense<0.000000e+00> : vector<8x64xf32>
    %50 = tpu.matmul %47, %49, %cst_30 {dimension_numbers = #tpu.dot_dimension_numbers<[1], [0], [0], [1], [0, 0, 1, 1], [], []>} : vector<8x32xbf16>, vector<32x64xbf16>, vector<8x64xf32> -> vector<8x64xf32>
    %51 = arith.addf %46, %50 : vector<8x64xf32>
    %52 = vector.extract_strided_slice %20 {offsets = [48, 0], sizes = [8, 32], strides = [1, 1]} : vector<128x32xbf16> to vector<8x32xbf16>
    %c6 = arith.constant 6 : index
    %c0_31 = arith.constant 0 : index
    %c0_32 = arith.constant 0 : index
    %53 = vector.load %arg5[%c6, %c0_31, %c0_32] : memref<16x32x64xbf16, #tpu.memory_space<vmem>>, vector<1x32x64xbf16>
    %54 = vector.shape_cast %53 : vector<1x32x64xbf16> to vector<32x64xbf16>
    %cst_33 = arith.constant dense<0.000000e+00> : vector<8x64xf32>
    %55 = tpu.matmul %52, %54, %cst_33 {dimension_numbers = #tpu.dot_dimension_numbers<[1], [0], [0], [1], [0, 0, 1, 1], [], []>} : vector<8x32xbf16>, vector<32x64xbf16>, vector<8x64xf32> -> vector<8x64xf32>
    %56 = arith.addf %51, %55 : vector<8x64xf32>
    %57 = vector.extract_strided_slice %20 {offsets = [56, 0], sizes = [8, 32], strides = [1, 1]} : vector<128x32xbf16> to vector<8x32xbf16>
    %c7 = arith.constant 7 : index
    %c0_34 = arith.constant 0 : index
    %c0_35 = arith.constant 0 : index
    %58 = vector.load %arg5[%c7, %c0_34, %c0_35] : memref<16x32x64xbf16, #tpu.memory_space<vmem>>, vector<1x32x64xbf16>
    %59 = vector.shape_cast %58 : vector<1x32x64xbf16> to vector<32x64xbf16>
    %cst_36 = arith.constant dense<0.000000e+00> : vector<8x64xf32>
    %60 = tpu.matmul %57, %59, %cst_36 {dimension_numbers = #tpu.dot_dimension_numbers<[1], [0], [0], [1], [0, 0, 1, 1], [], []>} : vector<8x32xbf16>, vector<32x64xbf16>, vector<8x64xf32> -> vector<8x64xf32>
    %61 = arith.addf %56, %60 : vector<8x64xf32>
    %62 = vector.extract_strided_slice %20 {offsets = [64, 0], sizes = [8, 32], strides = [1, 1]} : vector<128x32xbf16> to vector<8x32xbf16>
    %c8 = arith.constant 8 : index
    %c0_37 = arith.constant 0 : index
    %c0_38 = arith.constant 0 : index
    %63 = vector.load %arg5[%c8, %c0_37, %c0_38] : memref<16x32x64xbf16, #tpu.memory_space<vmem>>, vector<1x32x64xbf16>
    %64 = vector.shape_cast %63 : vector<1x32x64xbf16> to vector<32x64xbf16>
    %cst_39 = arith.constant dense<0.000000e+00> : vector<8x64xf32>
    %65 = tpu.matmul %62, %64, %cst_39 {dimension_numbers = #tpu.dot_dimension_numbers<[1], [0], [0], [1], [0, 0, 1, 1], [], []>} : vector<8x32xbf16>, vector<32x64xbf16>, vector<8x64xf32> -> vector<8x64xf32>
    %66 = arith.addf %61, %65 : vector<8x64xf32>
    %67 = vector.extract_strided_slice %20 {offsets = [72, 0], sizes = [8, 32], strides = [1, 1]} : vector<128x32xbf16> to vector<8x32xbf16>
    %c9 = arith.constant 9 : index
    %c0_40 = arith.constant 0 : index
    %c0_41 = arith.constant 0 : index
    %68 = vector.load %arg5[%c9, %c0_40, %c0_41] : memref<16x32x64xbf16, #tpu.memory_space<vmem>>, vector<1x32x64xbf16>
    %69 = vector.shape_cast %68 : vector<1x32x64xbf16> to vector<32x64xbf16>
    %cst_42 = arith.constant dense<0.000000e+00> : vector<8x64xf32>
    %70 = tpu.matmul %67, %69, %cst_42 {dimension_numbers = #tpu.dot_dimension_numbers<[1], [0], [0], [1], [0, 0, 1, 1], [], []>} : vector<8x32xbf16>, vector<32x64xbf16>, vector<8x64xf32> -> vector<8x64xf32>
    %71 = arith.addf %66, %70 : vector<8x64xf32>
    %72 = vector.extract_strided_slice %20 {offsets = [80, 0], sizes = [8, 32], strides = [1, 1]} : vector<128x32xbf16> to vector<8x32xbf16>
    %c10 = arith.constant 10 : index
    %c0_43 = arith.constant 0 : index
    %c0_44 = arith.constant 0 : index
    %73 = vector.load %arg5[%c10, %c0_43, %c0_44] : memref<16x32x64xbf16, #tpu.memory_space<vmem>>, vector<1x32x64xbf16>
    %74 = vector.shape_cast %73 : vector<1x32x64xbf16> to vector<32x64xbf16>
    %cst_45 = arith.constant dense<0.000000e+00> : vector<8x64xf32>
    %75 = tpu.matmul %72, %74, %cst_45 {dimension_numbers = #tpu.dot_dimension_numbers<[1], [0], [0], [1], [0, 0, 1, 1], [], []>} : vector<8x32xbf16>, vector<32x64xbf16>, vector<8x64xf32> -> vector<8x64xf32>
    %76 = arith.addf %71, %75 : vector<8x64xf32>
    %77 = vector.extract_strided_slice %20 {offsets = [88, 0], sizes = [8, 32], strides = [1, 1]} : vector<128x32xbf16> to vector<8x32xbf16>
    %c11 = arith.constant 11 : index
    %c0_46 = arith.constant 0 : index
    %c0_47 = arith.constant 0 : index
    %78 = vector.load %arg5[%c11, %c0_46, %c0_47] : memref<16x32x64xbf16, #tpu.memory_space<vmem>>, vector<1x32x64xbf16>
    %79 = vector.shape_cast %78 : vector<1x32x64xbf16> to vector<32x64xbf16>
    %cst_48 = arith.constant dense<0.000000e+00> : vector<8x64xf32>
    %80 = tpu.matmul %77, %79, %cst_48 {dimension_numbers = #tpu.dot_dimension_numbers<[1], [0], [0], [1], [0, 0, 1, 1], [], []>} : vector<8x32xbf16>, vector<32x64xbf16>, vector<8x64xf32> -> vector<8x64xf32>
    %81 = arith.addf %76, %80 : vector<8x64xf32>
    %82 = vector.extract_strided_slice %20 {offsets = [96, 0], sizes = [8, 32], strides = [1, 1]} : vector<128x32xbf16> to vector<8x32xbf16>
    %c12 = arith.constant 12 : index
    %c0_49 = arith.constant 0 : index
    %c0_50 = arith.constant 0 : index
    %83 = vector.load %arg5[%c12, %c0_49, %c0_50] : memref<16x32x64xbf16, #tpu.memory_space<vmem>>, vector<1x32x64xbf16>
    %84 = vector.shape_cast %83 : vector<1x32x64xbf16> to vector<32x64xbf16>
    %cst_51 = arith.constant dense<0.000000e+00> : vector<8x64xf32>
    %85 = tpu.matmul %82, %84, %cst_51 {dimension_numbers = #tpu.dot_dimension_numbers<[1], [0], [0], [1], [0, 0, 1, 1], [], []>} : vector<8x32xbf16>, vector<32x64xbf16>, vector<8x64xf32> -> vector<8x64xf32>
    %86 = arith.addf %81, %85 : vector<8x64xf32>
    %87 = vector.extract_strided_slice %20 {offsets = [104, 0], sizes = [8, 32], strides = [1, 1]} : vector<128x32xbf16> to vector<8x32xbf16>
    %c13 = arith.constant 13 : index
    %c0_52 = arith.constant 0 : index
    %c0_53 = arith.constant 0 : index
    %88 = vector.load %arg5[%c13, %c0_52, %c0_53] : memref<16x32x64xbf16, #tpu.memory_space<vmem>>, vector<1x32x64xbf16>
    %89 = vector.shape_cast %88 : vector<1x32x64xbf16> to vector<32x64xbf16>
    %cst_54 = arith.constant dense<0.000000e+00> : vector<8x64xf32>
    %90 = tpu.matmul %87, %89, %cst_54 {dimension_numbers = #tpu.dot_dimension_numbers<[1], [0], [0], [1], [0, 0, 1, 1], [], []>} : vector<8x32xbf16>, vector<32x64xbf16>, vector<8x64xf32> -> vector<8x64xf32>
    %91 = arith.addf %86, %90 : vector<8x64xf32>
    %92 = vector.extract_strided_slice %20 {offsets = [112, 0], sizes = [8, 32], strides = [1, 1]} : vector<128x32xbf16> to vector<8x32xbf16>
    %c14 = arith.constant 14 : index
    %c0_55 = arith.constant 0 : index
    %c0_56 = arith.constant 0 : index
    %93 = vector.load %arg5[%c14, %c0_55, %c0_56] : memref<16x32x64xbf16, #tpu.memory_space<vmem>>, vector<1x32x64xbf16>
    %94 = vector.shape_cast %93 : vector<1x32x64xbf16> to vector<32x64xbf16>
    %cst_57 = arith.constant dense<0.000000e+00> : vector<8x64xf32>
    %95 = tpu.matmul %92, %94, %cst_57 {dimension_numbers = #tpu.dot_dimension_numbers<[1], [0], [0], [1], [0, 0, 1, 1], [], []>} : vector<8x32xbf16>, vector<32x64xbf16>, vector<8x64xf32> -> vector<8x64xf32>
    %96 = arith.addf %91, %95 : vector<8x64xf32>
    %97 = vector.extract_strided_slice %20 {offsets = [120, 0], sizes = [8, 32], strides = [1, 1]} : vector<128x32xbf16> to vector<8x32xbf16>
    %c15 = arith.constant 15 : index
    %c0_58 = arith.constant 0 : index
    %c0_59 = arith.constant 0 : index
    %98 = vector.load %arg5[%c15, %c0_58, %c0_59] : memref<16x32x64xbf16, #tpu.memory_space<vmem>>, vector<1x32x64xbf16>
    %99 = vector.shape_cast %98 : vector<1x32x64xbf16> to vector<32x64xbf16>
    %cst_60 = arith.constant dense<0.000000e+00> : vector<8x64xf32>
    %100 = tpu.matmul %97, %99, %cst_60 {dimension_numbers = #tpu.dot_dimension_numbers<[1], [0], [0], [1], [0, 0, 1, 1], [], []>} : vector<8x32xbf16>, vector<32x64xbf16>, vector<8x64xf32> -> vector<8x64xf32>
    %101 = arith.addf %96, %100 : vector<8x64xf32>
    %c0_61 = arith.constant 0 : index
    %c0_62 = arith.constant 0 : index
    %102 = vector.load %arg6[%c0_61, %c0_62] : memref<1x64xf32, #tpu.memory_space<vmem>>, vector<1x64xf32>
    %103 = vector.broadcast %102 : vector<1x64xf32> to vector<8x64xf32>
    %104 = arith.addf %101, %103 : vector<8x64xf32>
    %cst_63 = arith.constant 0.000000e+00 : f32
    %105 = vector.broadcast %cst_63 : f32 to vector<8x64xf32>
    %106 = arith.maximumf %104, %105 : vector<8x64xf32>
    %107 = arith.truncf %106 : vector<8x64xf32> to vector<8x64xbf16>
    %c0_64 = arith.constant 0 : index
    %c0_65 = arith.constant 0 : index
    %108 = vector.load %arg7[%c0_64, %c0_65] : memref<72x8xbf16, #tpu.memory_space<vmem>>, vector<72x8xbf16>
    %cst_66 = arith.constant dense<0.000000e+00> : vector<72x64xf32>
    %109 = tpu.matmul %108, %107, %cst_66 {dimension_numbers = #tpu.dot_dimension_numbers<[1], [0], [0], [1], [0, 0, 1, 1], [], []>} : vector<72x8xbf16>, vector<8x64xbf16>, vector<72x64xf32> -> vector<72x64xf32>
    %110 = arith.truncf %109 : vector<72x64xf32> to vector<72x64xbf16>
    %cst_67 = arith.constant 0.000000e+00 : f32
    %111 = vector.broadcast %cst_67 : f32 to vector<8x64xf32>
    %112 = vector.extract_strided_slice %110 {offsets = [0, 0], sizes = [8, 64], strides = [1, 1]} : vector<72x64xbf16> to vector<8x64xbf16>
    %c0_68 = arith.constant 0 : index
    %c0_69 = arith.constant 0 : index
    %c0_70 = arith.constant 0 : index
    %113 = vector.load %arg8[%c0_68, %c0_69, %c0_70] : memref<9x64x64xbf16, #tpu.memory_space<vmem>>, vector<1x64x64xbf16>
    %114 = vector.shape_cast %113 : vector<1x64x64xbf16> to vector<64x64xbf16>
    %cst_71 = arith.constant dense<0.000000e+00> : vector<8x64xf32>
    %115 = tpu.matmul %112, %114, %cst_71 {dimension_numbers = #tpu.dot_dimension_numbers<[1], [0], [0], [1], [0, 0, 1, 1], [], []>} : vector<8x64xbf16>, vector<64x64xbf16>, vector<8x64xf32> -> vector<8x64xf32>
    %116 = arith.addf %111, %115 : vector<8x64xf32>
    %117 = vector.extract_strided_slice %110 {offsets = [8, 0], sizes = [8, 64], strides = [1, 1]} : vector<72x64xbf16> to vector<8x64xbf16>
    %c1_72 = arith.constant 1 : index
    %c0_73 = arith.constant 0 : index
    %c0_74 = arith.constant 0 : index
    %118 = vector.load %arg8[%c1_72, %c0_73, %c0_74] : memref<9x64x64xbf16, #tpu.memory_space<vmem>>, vector<1x64x64xbf16>
    %119 = vector.shape_cast %118 : vector<1x64x64xbf16> to vector<64x64xbf16>
    %cst_75 = arith.constant dense<0.000000e+00> : vector<8x64xf32>
    %120 = tpu.matmul %117, %119, %cst_75 {dimension_numbers = #tpu.dot_dimension_numbers<[1], [0], [0], [1], [0, 0, 1, 1], [], []>} : vector<8x64xbf16>, vector<64x64xbf16>, vector<8x64xf32> -> vector<8x64xf32>
    %121 = arith.addf %116, %120 : vector<8x64xf32>
    %122 = vector.extract_strided_slice %110 {offsets = [16, 0], sizes = [8, 64], strides = [1, 1]} : vector<72x64xbf16> to vector<8x64xbf16>
    %c2_76 = arith.constant 2 : index
    %c0_77 = arith.constant 0 : index
    %c0_78 = arith.constant 0 : index
    %123 = vector.load %arg8[%c2_76, %c0_77, %c0_78] : memref<9x64x64xbf16, #tpu.memory_space<vmem>>, vector<1x64x64xbf16>
    %124 = vector.shape_cast %123 : vector<1x64x64xbf16> to vector<64x64xbf16>
    %cst_79 = arith.constant dense<0.000000e+00> : vector<8x64xf32>
    %125 = tpu.matmul %122, %124, %cst_79 {dimension_numbers = #tpu.dot_dimension_numbers<[1], [0], [0], [1], [0, 0, 1, 1], [], []>} : vector<8x64xbf16>, vector<64x64xbf16>, vector<8x64xf32> -> vector<8x64xf32>
    %126 = arith.addf %121, %125 : vector<8x64xf32>
    %127 = vector.extract_strided_slice %110 {offsets = [24, 0], sizes = [8, 64], strides = [1, 1]} : vector<72x64xbf16> to vector<8x64xbf16>
    %c3_80 = arith.constant 3 : index
    %c0_81 = arith.constant 0 : index
    %c0_82 = arith.constant 0 : index
    %128 = vector.load %arg8[%c3_80, %c0_81, %c0_82] : memref<9x64x64xbf16, #tpu.memory_space<vmem>>, vector<1x64x64xbf16>
    %129 = vector.shape_cast %128 : vector<1x64x64xbf16> to vector<64x64xbf16>
    %cst_83 = arith.constant dense<0.000000e+00> : vector<8x64xf32>
    %130 = tpu.matmul %127, %129, %cst_83 {dimension_numbers = #tpu.dot_dimension_numbers<[1], [0], [0], [1], [0, 0, 1, 1], [], []>} : vector<8x64xbf16>, vector<64x64xbf16>, vector<8x64xf32> -> vector<8x64xf32>
    %131 = arith.addf %126, %130 : vector<8x64xf32>
    %132 = vector.extract_strided_slice %110 {offsets = [32, 0], sizes = [8, 64], strides = [1, 1]} : vector<72x64xbf16> to vector<8x64xbf16>
    %c4_84 = arith.constant 4 : index
    %c0_85 = arith.constant 0 : index
    %c0_86 = arith.constant 0 : index
    %133 = vector.load %arg8[%c4_84, %c0_85, %c0_86] : memref<9x64x64xbf16, #tpu.memory_space<vmem>>, vector<1x64x64xbf16>
    %134 = vector.shape_cast %133 : vector<1x64x64xbf16> to vector<64x64xbf16>
    %cst_87 = arith.constant dense<0.000000e+00> : vector<8x64xf32>
    %135 = tpu.matmul %132, %134, %cst_87 {dimension_numbers = #tpu.dot_dimension_numbers<[1], [0], [0], [1], [0, 0, 1, 1], [], []>} : vector<8x64xbf16>, vector<64x64xbf16>, vector<8x64xf32> -> vector<8x64xf32>
    %136 = arith.addf %131, %135 : vector<8x64xf32>
    %137 = vector.extract_strided_slice %110 {offsets = [40, 0], sizes = [8, 64], strides = [1, 1]} : vector<72x64xbf16> to vector<8x64xbf16>
    %c5_88 = arith.constant 5 : index
    %c0_89 = arith.constant 0 : index
    %c0_90 = arith.constant 0 : index
    %138 = vector.load %arg8[%c5_88, %c0_89, %c0_90] : memref<9x64x64xbf16, #tpu.memory_space<vmem>>, vector<1x64x64xbf16>
    %139 = vector.shape_cast %138 : vector<1x64x64xbf16> to vector<64x64xbf16>
    %cst_91 = arith.constant dense<0.000000e+00> : vector<8x64xf32>
    %140 = tpu.matmul %137, %139, %cst_91 {dimension_numbers = #tpu.dot_dimension_numbers<[1], [0], [0], [1], [0, 0, 1, 1], [], []>} : vector<8x64xbf16>, vector<64x64xbf16>, vector<8x64xf32> -> vector<8x64xf32>
    %141 = arith.addf %136, %140 : vector<8x64xf32>
    %142 = vector.extract_strided_slice %110 {offsets = [48, 0], sizes = [8, 64], strides = [1, 1]} : vector<72x64xbf16> to vector<8x64xbf16>
    %c6_92 = arith.constant 6 : index
    %c0_93 = arith.constant 0 : index
    %c0_94 = arith.constant 0 : index
    %143 = vector.load %arg8[%c6_92, %c0_93, %c0_94] : memref<9x64x64xbf16, #tpu.memory_space<vmem>>, vector<1x64x64xbf16>
    %144 = vector.shape_cast %143 : vector<1x64x64xbf16> to vector<64x64xbf16>
    %cst_95 = arith.constant dense<0.000000e+00> : vector<8x64xf32>
    %145 = tpu.matmul %142, %144, %cst_95 {dimension_numbers = #tpu.dot_dimension_numbers<[1], [0], [0], [1], [0, 0, 1, 1], [], []>} : vector<8x64xbf16>, vector<64x64xbf16>, vector<8x64xf32> -> vector<8x64xf32>
    %146 = arith.addf %141, %145 : vector<8x64xf32>
    %147 = vector.extract_strided_slice %110 {offsets = [56, 0], sizes = [8, 64], strides = [1, 1]} : vector<72x64xbf16> to vector<8x64xbf16>
    %c7_96 = arith.constant 7 : index
    %c0_97 = arith.constant 0 : index
    %c0_98 = arith.constant 0 : index
    %148 = vector.load %arg8[%c7_96, %c0_97, %c0_98] : memref<9x64x64xbf16, #tpu.memory_space<vmem>>, vector<1x64x64xbf16>
    %149 = vector.shape_cast %148 : vector<1x64x64xbf16> to vector<64x64xbf16>
    %cst_99 = arith.constant dense<0.000000e+00> : vector<8x64xf32>
    %150 = tpu.matmul %147, %149, %cst_99 {dimension_numbers = #tpu.dot_dimension_numbers<[1], [0], [0], [1], [0, 0, 1, 1], [], []>} : vector<8x64xbf16>, vector<64x64xbf16>, vector<8x64xf32> -> vector<8x64xf32>
    %151 = arith.addf %146, %150 : vector<8x64xf32>
    %152 = vector.extract_strided_slice %110 {offsets = [64, 0], sizes = [8, 64], strides = [1, 1]} : vector<72x64xbf16> to vector<8x64xbf16>
    %c8_100 = arith.constant 8 : index
    %c0_101 = arith.constant 0 : index
    %c0_102 = arith.constant 0 : index
    %153 = vector.load %arg8[%c8_100, %c0_101, %c0_102] : memref<9x64x64xbf16, #tpu.memory_space<vmem>>, vector<1x64x64xbf16>
    %154 = vector.shape_cast %153 : vector<1x64x64xbf16> to vector<64x64xbf16>
    %cst_103 = arith.constant dense<0.000000e+00> : vector<8x64xf32>
    %155 = tpu.matmul %152, %154, %cst_103 {dimension_numbers = #tpu.dot_dimension_numbers<[1], [0], [0], [1], [0, 0, 1, 1], [], []>} : vector<8x64xbf16>, vector<64x64xbf16>, vector<8x64xf32> -> vector<8x64xf32>
    %156 = arith.addf %151, %155 : vector<8x64xf32>
    %c0_104 = arith.constant 0 : index
    %c0_105 = arith.constant 0 : index
    %157 = vector.load %arg9[%c0_104, %c0_105] : memref<1x64xf32, #tpu.memory_space<vmem>>, vector<1x64xf32>
    %158 = vector.broadcast %157 : vector<1x64xf32> to vector<8x64xf32>
    %159 = arith.addf %156, %158 : vector<8x64xf32>
    %cst_106 = arith.constant 0.000000e+00 : f32
    %160 = vector.broadcast %cst_106 : f32 to vector<8x64xf32>
    %161 = arith.maximumf %159, %160 : vector<8x64xf32>
    %162 = arith.truncf %161 : vector<8x64xf32> to vector<8x64xbf16>
    %cst_107 = arith.constant 0.000000e+00 : f32
    %163 = vector.broadcast %cst_107 : f32 to vector<2x512xf32>
    %164 = vector.extract_strided_slice %162 {offsets = [0, 0], sizes = [2, 64], strides = [1, 1]} : vector<8x64xbf16> to vector<2x64xbf16>
    %c0_108 = arith.constant 0 : index
    %c0_109 = arith.constant 0 : index
    %c0_110 = arith.constant 0 : index
    %165 = vector.load %arg10[%c0_108, %c0_109, %c0_110] : memref<4x64x512xbf16, #tpu.memory_space<vmem>>, vector<1x64x512xbf16>
    %166 = vector.shape_cast %165 : vector<1x64x512xbf16> to vector<64x512xbf16>
    %cst_111 = arith.constant dense<0.000000e+00> : vector<2x512xf32>
    %167 = tpu.matmul %164, %166, %cst_111 {dimension_numbers = #tpu.dot_dimension_numbers<[1], [0], [0], [1], [0, 0, 1, 1], [], []>} : vector<2x64xbf16>, vector<64x512xbf16>, vector<2x512xf32> -> vector<2x512xf32>
    %168 = arith.addf %163, %167 : vector<2x512xf32>
    %169 = vector.extract_strided_slice %162 {offsets = [2, 0], sizes = [2, 64], strides = [1, 1]} : vector<8x64xbf16> to vector<2x64xbf16>
    %c1_112 = arith.constant 1 : index
    %c0_113 = arith.constant 0 : index
    %c0_114 = arith.constant 0 : index
    %170 = vector.load %arg10[%c1_112, %c0_113, %c0_114] : memref<4x64x512xbf16, #tpu.memory_space<vmem>>, vector<1x64x512xbf16>
    %171 = vector.shape_cast %170 : vector<1x64x512xbf16> to vector<64x512xbf16>
    %cst_115 = arith.constant dense<0.000000e+00> : vector<2x512xf32>
    %172 = tpu.matmul %169, %171, %cst_115 {dimension_numbers = #tpu.dot_dimension_numbers<[1], [0], [0], [1], [0, 0, 1, 1], [], []>} : vector<2x64xbf16>, vector<64x512xbf16>, vector<2x512xf32> -> vector<2x512xf32>
    %173 = arith.addf %168, %172 : vector<2x512xf32>
    %174 = vector.extract_strided_slice %162 {offsets = [4, 0], sizes = [2, 64], strides = [1, 1]} : vector<8x64xbf16> to vector<2x64xbf16>
    %c2_116 = arith.constant 2 : index
    %c0_117 = arith.constant 0 : index
    %c0_118 = arith.constant 0 : index
    %175 = vector.load %arg10[%c2_116, %c0_117, %c0_118] : memref<4x64x512xbf16, #tpu.memory_space<vmem>>, vector<1x64x512xbf16>
    %176 = vector.shape_cast %175 : vector<1x64x512xbf16> to vector<64x512xbf16>
    %cst_119 = arith.constant dense<0.000000e+00> : vector<2x512xf32>
    %177 = tpu.matmul %174, %176, %cst_119 {dimension_numbers = #tpu.dot_dimension_numbers<[1], [0], [0], [1], [0, 0, 1, 1], [], []>} : vector<2x64xbf16>, vector<64x512xbf16>, vector<2x512xf32> -> vector<2x512xf32>
    %178 = arith.addf %173, %177 : vector<2x512xf32>
    %179 = vector.extract_strided_slice %162 {offsets = [6, 0], sizes = [2, 64], strides = [1, 1]} : vector<8x64xbf16> to vector<2x64xbf16>
    %c3_120 = arith.constant 3 : index
    %c0_121 = arith.constant 0 : index
    %c0_122 = arith.constant 0 : index
    %180 = vector.load %arg10[%c3_120, %c0_121, %c0_122] : memref<4x64x512xbf16, #tpu.memory_space<vmem>>, vector<1x64x512xbf16>
    %181 = vector.shape_cast %180 : vector<1x64x512xbf16> to vector<64x512xbf16>
    %cst_123 = arith.constant dense<0.000000e+00> : vector<2x512xf32>
    %182 = tpu.matmul %179, %181, %cst_123 {dimension_numbers = #tpu.dot_dimension_numbers<[1], [0], [0], [1], [0, 0, 1, 1], [], []>} : vector<2x64xbf16>, vector<64x512xbf16>, vector<2x512xf32> -> vector<2x512xf32>
    %183 = arith.addf %178, %182 : vector<2x512xf32>
    %c0_124 = arith.constant 0 : index
    %c0_125 = arith.constant 0 : index
    %184 = vector.load %arg11[%c0_124, %c0_125] : memref<1x512xf32, #tpu.memory_space<vmem>>, vector<1x512xf32>
    %185 = vector.broadcast %184 : vector<1x512xf32> to vector<2x512xf32>
    %186 = arith.addf %183, %185 : vector<2x512xf32>
    %cst_126 = arith.constant 0.000000e+00 : f32
    %187 = vector.broadcast %cst_126 : f32 to vector<2x512xf32>
    %188 = arith.maximumf %186, %187 : vector<2x512xf32>
    %189 = arith.truncf %188 : vector<2x512xf32> to vector<2x512xbf16>
    %c0_127 = arith.constant 0 : index
    %c0_128 = arith.constant 0 : index
    %190 = vector.load %arg12[%c0_127, %c0_128] : memref<512x128xbf16, #tpu.memory_space<vmem>>, vector<512x128xbf16>
    %cst_129 = arith.constant dense<0.000000e+00> : vector<2x128xf32>
    %191 = tpu.matmul %189, %190, %cst_129 {dimension_numbers = #tpu.dot_dimension_numbers<[1], [0], [0], [1], [0, 0, 1, 1], [], []>} : vector<2x512xbf16>, vector<512x128xbf16>, vector<2x128xf32> -> vector<2x128xf32>
    %c0_130 = arith.constant 0 : index
    %c0_131 = arith.constant 0 : index
    %192 = vector.load %arg13[%c0_130, %c0_131] : memref<1x128xf32, #tpu.memory_space<vmem>>, vector<1x128xf32>
    %193 = vector.broadcast %192 : vector<1x128xf32> to vector<2x128xf32>
    %194 = arith.addf %191, %193 : vector<2x128xf32>
    %c0_132 = arith.constant 0 : index
    %c0_133 = arith.constant 0 : index
    %195 = vector.load %arg14[%c0_132, %c0_133] : memref<2x128xf32, #tpu.memory_space<vmem>>, vector<2x128xf32>
    tpu.vector_store %arg14[%c0_132, %c0_133], %194 {strides = array<i32>} : memref<2x128xf32, #tpu.memory_space<vmem>>, vector<2x128xf32>,
    return
  }
  func.func @transform_0(%arg0: i32) -> (i32, i32) {
    %c0_i32 = arith.constant 0 : i32
    %c0_i32_0 = arith.constant 0 : i32
    %c0_i32_1 = arith.constant 0 : i32
    return %c0_i32, %c0_i32_0 : i32, i32
  }
  func.func @transform_1(%arg0: i32) -> (i32, i32) {
    %c0_i32 = arith.constant 0 : i32
    %c0_i32_0 = arith.constant 0 : i32
    %c0_i32_1 = arith.constant 0 : i32
    return %c0_i32, %c0_i32_0 : i32, i32
  }
  func.func @transform_2(%arg0: i32) -> (i32, i32) {
    %c0_i32 = arith.constant 0 : i32
    %c0_i32_0 = arith.constant 0 : i32
    %c0_i32_1 = arith.constant 0 : i32
    return %c0_i32, %c0_i32_0 : i32, i32
  }
  func.func @transform_3(%arg0: i32) -> (i32, i32) {
    %c0_i32 = arith.constant 0 : i32
    %c0_i32_0 = arith.constant 0 : i32
    %c0_i32_1 = arith.constant 0 : i32
    return %c0_i32, %c0_i32_0 : i32, i32
  }
  func.func @transform_4(%arg0: i32) -> (i32, i32, i32) {
    %c0_i32 = arith.constant 0 : i32
    %c0_i32_0 = arith.constant 0 : i32
    %c0_i32_1 = arith.constant 0 : i32
    %c0_i32_2 = arith.constant 0 : i32
    return %c0_i32, %c0_i32_0, %c0_i32_1 : i32, i32, i32
  }
  func.func @transform_5(%arg0: i32) -> (i32, i32) {
    %c0_i32 = arith.constant 0 : i32
    %c0_i32_0 = arith.constant 0 : i32
    %c0_i32_1 = arith.constant 0 : i32
    return %c0_i32, %c0_i32_0 : i32, i32
  }
  func.func @transform_6(%arg0: i32) -> (i32, i32) {
    %c0_i32 = arith.constant 0 : i32
    %c0_i32_0 = arith.constant 0 : i32
    %c0_i32_1 = arith.constant 0 : i32
    return %c0_i32, %c0_i32_0 : i32, i32
  }
  func.func @transform_7(%arg0: i32) -> (i32, i32, i32) {
    %c0_i32 = arith.constant 0 : i32
    %c0_i32_0 = arith.constant 0 : i32
    %c0_i32_1 = arith.constant 0 : i32
    %c0_i32_2 = arith.constant 0 : i32
    return %c0_i32, %c0_i32_0, %c0_i32_1 : i32, i32, i32
  }
  func.func @transform_8(%arg0: i32) -> (i32, i32) {
    %c0_i32 = arith.constant 0 : i32
    %c0_i32_0 = arith.constant 0 : i32
    %c0_i32_1 = arith.constant 0 : i32
    return %c0_i32, %c0_i32_0 : i32, i32
  }
  func.func @transform_9(%arg0: i32) -> (i32, i32, i32) {
    %c0_i32 = arith.constant 0 : i32
    %c0_i32_0 = arith.constant 0 : i32
    %c0_i32_1 = arith.constant 0 : i32
    %c0_i32_2 = arith.constant 0 : i32
    return %c0_i32, %c0_i32_0, %c0_i32_1 : i32, i32, i32
  }
  func.func @transform_10(%arg0: i32) -> (i32, i32) {
    %c0_i32 = arith.constant 0 : i32
    %c0_i32_0 = arith.constant 0 : i32
    %c0_i32_1 = arith.constant 0 : i32
    return %c0_i32, %c0_i32_0 : i32, i32
  }
  func.func @transform_11(%arg0: i32) -> (i32, i32) {
    %c0_i32 = arith.constant 0 : i32
    %c0_i32_0 = arith.constant 0 : i32
    %c0_i32_1 = arith.constant 0 : i32
    return %c0_i32, %c0_i32_0 : i32, i32
  }
  func.func @transform_12(%arg0: i32) -> (i32, i32) {
    %c0_i32 = arith.constant 0 : i32
    %c0_i32_0 = arith.constant 0 : i32
    %c0_i32_1 = arith.constant 0 : i32
    return %c0_i32, %c0_i32_0 : i32, i32
  }
  func.func @transform_13(%arg0: i32) -> (i32, i32) {
    %c0_i32 = arith.constant 0 : i32
    %c0_i32_0 = arith.constant 0 : i32
    %c0_i32_1 = arith.constant 0 : i32
    return %c0_i32, %c0_i32_0 : i32, i32
  }
}

</mosaic_0001>

<llo_original>
// kernel: _lambda_.1
$region0: #{_lambda_.1}
  #allocation0 [shape = 'u32[]', space=smem, size = 0x4, offset = 0x4, fixed_abs, tag = 'smem constant byte address 0x4 - core index']
  #allocation1 [shape = 'u32[144,128]{1,0:T(1,128)}', space=vmem, size = 0x12000, scoped, tag = 'internal scratch']
  %s0 = inlined_call_operand.vmem [shape: s8[32,256], index: 0, kind: input, shape index: {}]
  %s1 = inlined_call_operand.vmem [shape: bf16[256,32], index: 1, kind: input, shape index: {}]
  %s2 = inlined_call_operand.vmem [shape: f32[1,32], index: 2, kind: input, shape index: {}]
  %s3 = inlined_call_operand.vmem [shape: bf16[128,32], index: 3, kind: input, shape index: {}]
  %s4 = inlined_call_operand.vmem [shape: bf16[16,32,64], index: 4, kind: input, shape index: {}]
  %s5 = inlined_call_operand.vmem [shape: f32[1,64], index: 5, kind: input, shape index: {}]
  %s6 = inlined_call_operand.vmem [shape: bf16[72,8], index: 6, kind: input, shape index: {}]
  %s7 = inlined_call_operand.vmem [shape: bf16[9,64,64], index: 7, kind: input, shape index: {}]
  %s8 = inlined_call_operand.vmem [shape: f32[1,64], index: 8, kind: input, shape index: {}]
  %s9 = inlined_call_operand.vmem [shape: bf16[4,64,512], index: 9, kind: input, shape index: {}]
  %s10 = inlined_call_operand.vmem [shape: f32[1,512], index: 10, kind: input, shape index: {}]
  %s11 = inlined_call_operand.vmem [shape: bf16[512,128], index: 11, kind: input, shape index: {}]
  %s12 = inlined_call_operand.vmem [shape: f32[1,128], index: 12, kind: input, shape index: {}]
  %s13 = inlined_call_operand.hbm [shape: f32[2,128], index: 13, kind: output, shape index: {}]
  %s14 = sld [smem:[#allocation0]]
  $region62: #{_lambda_.1} parent=0
    _
  %s16 = ssub.s32 1, %s14
  %s17 = scalar_select 0, %s16, %s14
  $region1: #{_lambda_.1} parent=0
    #allocation2 [shape = 'u8[1024]{0}', space=vmem, size = 0x400, scoped, tag = 'output window, operand 0, single buffered']
    #allocation3 [shape = 's32[1]{0}', space=sflag, size = 0x4, scoped, tag = 'scoped memory for _lambda_.1']
    %18 = vsyncpa [#allocation3], 0
    // Predicated region
    $region2: #{_lambda_.1} parent=1 // pred_check
      _
    $region3: #{_lambda_.1} parent=1 // pred_check_branch
      %20 = sbr.rel (0) target = $region5
    $region4: #{_lambda_.1} parent=1 // pred_region
      _
    $region5: #{_lambda_.1} parent=1 // pred_fallthru
      _
    // Predicated region
    $region6: #{_lambda_.1} parent=1 // pred_check
      _
    $region7: #{_lambda_.1} parent=1 // pred_check_branch
      %22 = sbr.rel (0) target = $region9
    $region8: #{_lambda_.1} parent=1 // pred_region
      _
    $region9: #{_lambda_.1} parent=1 // pred_fallthru
      _
    // Predicated region
    $region10: #{_lambda_.1} parent=1 // pred_check
      _
    $region11: #{_lambda_.1} parent=1 // pred_check_branch
      %24 = sbr.rel (0) target = $region13
    $region12: #{_lambda_.1} parent=1 // pred_region
      _
    $region13: #{_lambda_.1} parent=1 // pred_fallthru
      _
    // Predicated region
    $region14: #{_lambda_.1} parent=1 // pred_check
      _
    $region15: #{_lambda_.1} parent=1 // pred_check_branch
      %26 = sbr.rel (0) target = $region17
    $region16: #{_lambda_.1} parent=1 // pred_region
      _
    $region17: #{_lambda_.1} parent=1 // pred_fallthru
      _
    // Predicated region
    $region18: #{_lambda_.1} parent=1 // pred_check
      _
    $region19: #{_lambda_.1} parent=1 // pred_check_branch
      %28 = sbr.rel (0) target = $region21
    $region20: #{_lambda_.1} parent=1 // pred_region
      _
    $region21: #{_lambda_.1} parent=1 // pred_fallthru
      _
    // Predicated region
    $region22: #{_lambda_.1} parent=1 // pred_check
      _
    $region23: #{_lambda_.1} parent=1 // pred_check_branch
      %30 = sbr.rel (0) target = $region25
    $region24: #{_lambda_.1} parent=1 // pred_region
      _
    $region25: #{_lambda_.1} parent=1 // pred_fallthru
      _
    // Predicated region
    $region26: #{_lambda_.1} parent=1 // pred_check
      _
    $region27: #{_lambda_.1} parent=1 // pred_check_branch
      %32 = sbr.rel (0) target = $region29
    $region28: #{_lambda_.1} parent=1 // pred_region
      _
    $region29: #{_lambda_.1} parent=1 // pred_fallthru
      _
    // Predicated region
    $region30: #{_lambda_.1} parent=1 // pred_check
      _
    $region31: #{_lambda_.1} parent=1 // pred_check_branch
      %34 = sbr.rel (0) target = $region33
    $region32: #{_lambda_.1} parent=1 // pred_region
      _
    $region33: #{_lambda_.1} parent=1 // pred_fallthru
      _
    // Predicated region
    $region34: #{_lambda_.1} parent=1 // pred_check
      _
    $region35: #{_lambda_.1} parent=1 // pred_check_branch
      %36 = sbr.rel (0) target = $region37
    $region36: #{_lambda_.1} parent=1 // pred_region
      _
    $region37: #{_lambda_.1} parent=1 // pred_fallthru
      _
    // Predicated region
    $region38: #{_lambda_.1} parent=1 // pred_check
      _
    $region39: #{_lambda_.1} parent=1 // pred_check_branch
      %38 = sbr.rel (0) target = $region41
    $region40: #{_lambda_.1} parent=1 // pred_region
      _
    $region41: #{_lambda_.1} parent=1 // pred_fallthru
      _
    // Predicated region
    $region42: #{_lambda_.1} parent=1 // pred_check
      _
    $region43: #{_lambda_.1} parent=1 // pred_check_branch
      %40 = sbr.rel (0) target = $region45
    $region44: #{_lambda_.1} parent=1 // pred_region
      _
    $region45: #{_lambda_.1} parent=1 // pred_fallthru
      _
    // Predicated region
    $region46: #{_lambda_.1} parent=1 // pred_check
      _
    $region47: #{_lambda_.1} parent=1 // pred_check_branch
      %42 = sbr.rel (0) target = $region49
    $region48: #{_lambda_.1} parent=1 // pred_region
      _
    $region49: #{_lambda_.1} parent=1 // pred_fallthru
      _
    // Predicated region
    $region50: #{_lambda_.1} parent=1 // pred_check
      _
    $region51: #{_lambda_.1} parent=1 // pred_check_branch
      %44 = sbr.rel (0) target = $region53
    $region52: #{_lambda_.1} parent=1 // pred_region
      _
    $region53: #{_lambda_.1} parent=1 // pred_fallthru
      _
    %v46 = vld [vmem:[%s0] sm:$0xff]
    %v47 = vld [vmem:[%s0 + $0x8] sm:$0xff]
    %v48 = vunpack.c.0.s8 %v46
    %v49 = vunpack.c.0.s8 %v47
    %v50 = vunpack.c.1.s8 %v46
    %v51 = vunpack.c.1.s8 %v47
    %v52 = vunpack.c.2.s8 %v46
    %v53 = vunpack.c.2.s8 %v47
    %v54 = vunpack.c.3.s8 %v46
    %v55 = vunpack.c.3.s8 %v47
    %v56 = vcvt.s32.f32 %v48
    %v57 = vcvt.s32.f32 %v49
    %v58 = vcvt.s32.f32 %v50
    %v59 = vcvt.s32.f32 %v51
    %v60 = vcvt.s32.f32 %v52
    %v61 = vcvt.s32.f32 %v53
    %v62 = vcvt.s32.f32 %v54
    %v63 = vcvt.s32.f32 %v55
    %vm64 = vcmp.lt.f32.partialorder %v56, 0.0
    %vm65 = vcmp.lt.f32.partialorder %v57, 0.0
    %vm66 = vcmp.lt.f32.partialorder %v58, 0.0
    %vm67 = vcmp.lt.f32.partialorder %v59, 0.0
    %vm68 = vcmp.lt.f32.partialorder %v60, 0.0
    %vm69 = vcmp.lt.f32.partialorder %v61, 0.0
    %vm70 = vcmp.lt.f32.partialorder %v62, 0.0
    %vm71 = vcmp.lt.f32.partialorder %v63, 0.0
    %v72 = vsel %vm64, 1, 0
    %v73 = vsel %vm65, 1, 0
    %v74 = vsel %vm66, 1, 0
    %v75 = vsel %vm67, 1, 0
    %v76 = vsel %vm68, 1, 0
    %v77 = vsel %vm69, 1, 0
    %v78 = vsel %vm70, 1, 0
    %v79 = vsel %vm71, 1, 0
    %v80 = vcvt.s32.f32 %v72
    %v81 = vcvt.s32.f32 %v73
    %v82 = vcvt.s32.f32 %v74
    %v83 = vcvt.s32.f32 %v75
    %v84 = vcvt.s32.f32 %v76
    %v85 = vcvt.s32.f32 %v77
    %v86 = vcvt.s32.f32 %v78
    %v87 = vcvt.s32.f32 %v79
    %v88 = vmul.f32 %v80, 256.0
    %v89 = vmul.f32 %v81, 256.0
    %v90 = vmul.f32 %v82, 256.0
    %v91 = vmul.f32 %v83, 256.0
    %v92 = vmul.f32 %v84, 256.0
    %v93 = vmul.f32 %v85, 256.0
    %v94 = vmul.f32 %v86, 256.0
    %v95 = vmul.f32 %v87, 256.0
    %v96 = vadd.f32 %v56, %v88
    %v97 = vadd.f32 %v57, %v89
    %v98 = vadd.f32 %v58, %v90
    %v99 = vadd.f32 %v59, %v91
    %v100 = vadd.f32 %v60, %v92
    %v101 = vadd.f32 %v61, %v93
    %v102 = vadd.f32 %v62, %v94
    %v103 = vadd.f32 %v63, %v95
    %v104 = vpack.c.bf16 %v98, %v96
    %v105 = vpack.c.bf16 %v99, %v97
    %v106 = vpack.c.bf16 %v102, %v100
    %v107 = vpack.c.bf16 %v103, %v101
    %v108 = vld [vmem:[%s1] sm:$0xf]
    %v109 = vld [vmem:[%s1 + $0x4] sm:$0xf]
    %v110 = vld [vmem:[%s1 + $0x8] sm:$0xf]
    %v111 = vld [vmem:[%s1 + $0xc] sm:$0xf]
    %v112 = vld [vmem:[%s1 + $0x10] sm:$0xf]
    %v113 = vld [vmem:[%s1 + $0x14] sm:$0xf]
    %v114 = vld [vmem:[%s1 + $0x18] sm:$0xf]
    %v115 = vld [vmem:[%s1 + $0x1c] sm:$0xf]
    %v116 = vld [vmem:[%s1 + $0x20] sm:$0xf]
    %v117 = vld [vmem:[%s1 + $0x24] sm:$0xf]
    %v118 = vld [vmem:[%s1 + $0x28] sm:$0xf]
    %v119 = vld [vmem:[%s1 + $0x2c] sm:$0xf]
    %v120 = vld [vmem:[%s1 + $0x30] sm:$0xf]
    %v121 = vld [vmem:[%s1 + $0x34] sm:$0xf]
    %v122 = vld [vmem:[%s1 + $0x38] sm:$0xf]
    %v123 = vld [vmem:[%s1 + $0x3c] sm:$0xf]
    %v124 = vld [vmem:[%s1 + $0x40] sm:$0xf]
    %v125 = vld [vmem:[%s1 + $0x44] sm:$0xf]
    %v126 = vld [vmem:[%s1 + $0x48] sm:$0xf]
    %v127 = vld [vmem:[%s1 + $0x4c] sm:$0xf]
    %v128 = vld [vmem:[%s1 + $0x50] sm:$0xf]
    %v129 = vld [vmem:[%s1 + $0x54] sm:$0xf]
    %v130 = vld [vmem:[%s1 + $0x58] sm:$0xf]
    %v131 = vld [vmem:[%s1 + $0x5c] sm:$0xf]
    %v132 = vld [vmem:[%s1 + $0x60] sm:$0xf]
    %v133 = vld [vmem:[%s1 + $0x64] sm:$0xf]
    %v134 = vld [vmem:[%s1 + $0x68] sm:$0xf]
    %v135 = vld [vmem:[%s1 + $0x6c] sm:$0xf]
    %v136 = vld [vmem:[%s1 + $0x70] sm:$0xf]
    %v137 = vld [vmem:[%s1 + $0x74] sm:$0xf]
    %v138 = vld [vmem:[%s1 + $0x78] sm:$0xf]
    %v139 = vld [vmem:[%s1 + $0x7c] sm:$0xf]
    %v140 = vld [vmem:[%s2] sm:$0x1]
    %v142 = vlaneseq
    %v143 = vshrl.u32 %v142, 7
    %v144 = vsub.s32 0, %v143
    %v145 = vrot.slane %v140, %v144
    %v179 = vunpack.c.l.b16 %v108
    %v180 = vunpack.c.l.b16 %v109
    %v181 = vunpack.c.l.b16 %v110
    %v182 = vunpack.c.l.b16 %v111
    %v183 = vunpack.c.l.b16 %v112
    %v184 = vunpack.c.l.b16 %v113
    %v185 = vunpack.c.l.b16 %v114
    %v186 = vunpack.c.l.b16 %v115
    %v187 = vunpack.c.l.b16 %v116
    %v188 = vunpack.c.l.b16 %v117
    %v189 = vunpack.c.l.b16 %v118
    %v190 = vunpack.c.l.b16 %v119
    %v191 = vunpack.c.l.b16 %v120
    %v192 = vunpack.c.l.b16 %v121
    %v193 = vunpack.c.l.b16 %v122
    %v194 = vunpack.c.l.b16 %v123
    %v195 = vunpack.c.l.b16 %v124
    %v196 = vunpack.c.l.b16 %v125
    %v197 = vunpack.c.l.b16 %v126
    %v198 = vunpack.c.l.b16 %v127
    %v199 = vunpack.c.l.b16 %v128
    %v200 = vunpack.c.l.b16 %v129
    %v201 = vunpack.c.l.b16 %v130
    %v202 = vunpack.c.l.b16 %v131
    %v203 = vunpack.c.l.b16 %v132
    %v204 = vunpack.c.l.b16 %v133
    %v205 = vunpack.c.l.b16 %v134
    %v206 = vunpack.c.l.b16 %v135
    %v207 = vunpack.c.l.b16 %v136
    %v208 = vunpack.c.l.b16 %v137
    %v209 = vunpack.c.l.b16 %v138
    %v210 = vunpack.c.l.b16 %v139
    %v211 = vpack.c.b16 %v180, %v179
    %v212 = vpack.c.b16 %v182, %v181
    %v213 = vpack.c.b16 %v184, %v183
    %v214 = vpack.c.b16 %v186, %v185
    %v215 = vpack.c.b16 %v188, %v187
    %v216 = vpack.c.b16 %v190, %v189
    %v217 = vpack.c.b16 %v192, %v191
    %v218 = vpack.c.b16 %v194, %v193
    %v219 = vpack.c.b16 %v196, %v195
    %v220 = vpack.c.b16 %v198, %v197
    %v221 = vpack.c.b16 %v200, %v199
    %v222 = vpack.c.b16 %v202, %v201
    %v223 = vpack.c.b16 %v204, %v203
    %v224 = vpack.c.b16 %v206, %v205
    %v225 = vpack.c.b16 %v208, %v207
    %v226 = vpack.c.b16 %v210, %v209
    %243 = vmatprep.subr.bf16.mxu0 0
    %244 = vmatpush1.bf16.msra.mxu0 %v211
    %245 = vmatprep.subr.bf16.mxu0 0
    %246 = vmatpush1.bf16.msra.mxu0 %v212
    %247 = vmatprep.subr.bf16.mxu0 0
    %248 = vmatpush1.bf16.msra.mxu0 %v213
    %249 = vmatprep.subr.bf16.mxu0 0
    %250 = vmatpush1.bf16.msra.mxu0 %v214
    %251 = vmatprep.subr.bf16.mxu0 0
    %252 = vmatpush1.bf16.msra.mxu0 %v215
    %253 = vmatprep.subr.bf16.mxu0 0
    %254 = vmatpush1.bf16.msra.mxu0 %v216
    %255 = vmatprep.subr.bf16.mxu0 0
    %256 = vmatpush1.bf16.msra.mxu0 %v217
    %257 = vmatprep.subr.bf16.mxu0 0
    %258 = vmatpush1.bf16.msra.mxu0 %v218
    %259 = vmatprep.subr.bf16.mxu0 0
    %260 = vmatpush1.bf16.msra.mxu0 %v219
    %261 = vmatprep.subr.bf16.mxu0 0
    %262 = vmatpush1.bf16.msra.mxu0 %v220
    %263 = vmatprep.subr.bf16.mxu0 0
    %264 = vmatpush1.bf16.msra.mxu0 %v221
    %265 = vmatprep.subr.bf16.mxu0 0
    %266 = vmatpush1.bf16.msra.mxu0 %v222
    %267 = vmatprep.subr.bf16.mxu0 0
    %268 = vmatpush1.bf16.msra.mxu0 %v223
    %269 = vmatprep.subr.bf16.mxu0 0
    %270 = vmatpush1.bf16.msra.mxu0 %v224
    %271 = vmatprep.subr.bf16.mxu0 0
    %272 = vmatpush1.bf16.msra.mxu0 %v225
    %273 = vmatprep.subr.bf16.mxu0 0
    %274 = vmatpush1.bf16.msra.mxu0 %v226
    %275 = vmatprep.mubr.bf16.mxu0 %v105
    %276 = vmatmul.mubr.bf16.gmra.mrb[0].mxu0 %v104
    %v277 = vpop.f32.mrb[0].mxu0
    %v278 = vadd.f32 %v145, %v277
    %v279 = vpop.f32.mrb[0].mxu0
    %v280 = vpop.f32.mrb[0].mxu0
    %v281 = vadd.f32 %v145, %v280
    %v282 = vpop.f32.mrb[0].mxu0
    %283 = vmatprep.mubr.bf16.mxu0 %v107
    %284 = vmatmul.mubr.bf16.gmra.mrb[0].mxu0 %v106
    %v285 = vpop.f32.mrb[0].mxu0
    %v286 = vadd.f32 %v145, %v285
    %v287 = vpop.f32.mrb[0].mxu0
    %v288 = vpop.f32.mrb[0].mxu0
    %v289 = vadd.f32 %v145, %v288
    %v290 = vpop.f32.mrb[0].mxu0
    %291 = vdwg.mxu0
    %v292 = vmax.f32 %v278, 0.0
    %v293 = vmax.f32 %v281, 0.0
    %v294 = vmax.f32 %v286, 0.0
    %v295 = vmax.f32 %v289, 0.0
    %v296 = vpack.c.bf16 %v293, %v292
    %v297 = vpack.c.bf16 %v295, %v294
    %v298 = vld [vmem:[%s3] sm:$0xf]
    %v299 = vld [vmem:[%s3 + $0x4] sm:$0xf]
    %v300 = vld [vmem:[%s3 + $0x8] sm:$0xf]
    %v301 = vld [vmem:[%s3 + $0xc] sm:$0xf]
    %v302 = vld [vmem:[%s3 + $0x10] sm:$0xf]
    %v303 = vld [vmem:[%s3 + $0x14] sm:$0xf]
    %v304 = vld [vmem:[%s3 + $0x18] sm:$0xf]
    %v305 = vld [vmem:[%s3 + $0x1c] sm:$0xf]
    %v306 = vld [vmem:[%s3 + $0x20] sm:$0xf]
    %v307 = vld [vmem:[%s3 + $0x24] sm:$0xf]
    %v308 = vld [vmem:[%s3 + $0x28] sm:$0xf]
    %v309 = vld [vmem:[%s3 + $0x2c] sm:$0xf]
    %v310 = vld [vmem:[%s3 + $0x30] sm:$0xf]
    %v311 = vld [vmem:[%s3 + $0x34] sm:$0xf]
    %v312 = vld [vmem:[%s3 + $0x38] sm:$0xf]
    %v313 = vld [vmem:[%s3 + $0x3c] sm:$0xf]
    %v330 = vunpack.c.l.b16 %v298
    %v331 = vunpack.c.l.b16 %v299
    %v332 = vunpack.c.l.b16 %v300
    %v333 = vunpack.c.l.b16 %v301
    %v334 = vunpack.c.l.b16 %v302
    %v335 = vunpack.c.l.b16 %v303
    %v336 = vunpack.c.l.b16 %v304
    %v337 = vunpack.c.l.b16 %v305
    %v338 = vunpack.c.l.b16 %v306
    %v339 = vunpack.c.l.b16 %v307
    %v340 = vunpack.c.l.b16 %v308
    %v341 = vunpack.c.l.b16 %v309
    %v342 = vunpack.c.l.b16 %v310
    %v343 = vunpack.c.l.b16 %v311
    %v344 = vunpack.c.l.b16 %v312
    %v345 = vunpack.c.l.b16 %v313
    %v346 = vpack.c.b16 %v331, %v330
    %v347 = vpack.c.b16 %v333, %v332
    %v348 = vpack.c.b16 %v335, %v334
    %v349 = vpack.c.b16 %v337, %v336
    %v350 = vpack.c.b16 %v339, %v338
    %v351 = vpack.c.b16 %v341, %v340
    %v352 = vpack.c.b16 %v343, %v342
    %v353 = vpack.c.b16 %v345, %v344
    %vm354 = vcmask 261120
    %v356 = vsel %vm354, %v346, 0
    %v359 = vsel %vm354, %v347, 0
    %v362 = vsel %vm354, %v348, 0
    %v365 = vsel %vm354, %v349, 0
    %v368 = vsel %vm354, %v350, 0
    %v371 = vsel %vm354, %v351, 0
    %v374 = vsel %vm354, %v352, 0
    %v377 = vsel %vm354, %v353, 0
    %379 = vmatprep.subr.bf16.mxu0 0
    %380 = vmatpush1.bf16.msra.mxu0 %v296
    %381 = vmatprep.subr.bf16.mxu0 0
    %382 = vmatpush1.bf16.msra.mxu0 %v297
    %383 = vmatprep.subr.bf16.mxu0 0
    %384 = vmatpush1.bf16.msra.mxu0 0
    %385 = vmatprep.subr.bf16.mxu0 0
    %386 = vmatpush1.bf16.msra.mxu0 0
    %387 = vmatprep.subr.bf16.mxu0 0
    %388 = vmatpush1.bf16.msra.mxu0 0
    %389 = vmatprep.subr.bf16.mxu0 0
    %390 = vmatpush1.bf16.msra.mxu0 0
    %391 = vmatprep.subr.bf16.mxu0 0
    %392 = vmatpush1.bf16.msra.mxu0 0
    %393 = vmatprep.subr.bf16.mxu0 0
    %394 = vmatpush1.bf16.msra.mxu0 0
    %395 = vmatprep.subr.bf16.mxu0 0
    %396 = vmatpush1.bf16.msra.mxu0 0
    %397 = vmatprep.subr.bf16.mxu0 0
    %398 = vmatpush1.bf16.msra.mxu0 0
    %399 = vmatprep.subr.bf16.mxu0 0
    %400 = vmatpush1.bf16.msra.mxu0 0
    %401 = vmatprep.subr.bf16.mxu0 0
    %402 = vmatpush1.bf16.msra.mxu0 0
    %403 = vmatprep.subr.bf16.mxu0 0
    %404 = vmatpush1.bf16.msra.mxu0 0
    %405 = vmatprep.subr.bf16.mxu0 0
    %406 = vmatpush1.bf16.msra.mxu0 0
    %407 = vmatprep.subr.bf16.mxu0 0
    %408 = vmatpush1.bf16.msra.mxu0 0
    %409 = vmatprep.subr.bf16.mxu0 0
    %410 = vmatpush1.bf16.msra.mxu0 0
    %411 = vmatprep.mubr.bf16.mxu0 0
    %412 = vmatmul.mubr.bf16.gmra.mrb[0].mxu0 %v356
    %v413 = vpop.f32.mrb[0].mxu0
    %v414 = vadd.f32 0.0, %v413
    %v415 = vpop.f32.mrb[0].mxu0
    %v416 = vpop.f32.mrb[0].mxu0
    %v417 = vadd.f32 0.0, %v416
    %v418 = vpop.f32.mrb[0].mxu0
    %419 = vmatprep.mubr.bf16.mxu0 0
    %420 = vmatmul.mubr.bf16.gmra.mrb[0].mxu0 %v359
    %v421 = vpop.f32.mrb[0].mxu0
    %v422 = vadd.f32 0.0, %v421
    %v423 = vpop.f32.mrb[0].mxu0
    %v424 = vpop.f32.mrb[0].mxu0
    %v425 = vadd.f32 0.0, %v424
    %v426 = vpop.f32.mrb[0].mxu0
    %427 = vmatprep.mubr.bf16.mxu0 0
    %428 = vmatmul.mubr.bf16.gmra.mrb[0].mxu0 %v362
    %v429 = vpop.f32.mrb[0].mxu0
    %v430 = vadd.f32 0.0, %v429
    %v431 = vpop.f32.mrb[0].mxu0
    %v432 = vpop.f32.mrb[0].mxu0
    %v433 = vadd.f32 0.0, %v432
    %v434 = vpop.f32.mrb[0].mxu0
    %435 = vmatprep.mubr.bf16.mxu0 0
    %436 = vmatmul.mubr.bf16.gmra.mrb[0].mxu0 %v365
    %v437 = vpop.f32.mrb[0].mxu0
    %v438 = vadd.f32 0.0, %v437
    %v439 = vpop.f32.mrb[0].mxu0
    %v440 = vpop.f32.mrb[0].mxu0
    %v441 = vadd.f32 0.0, %v440
    %v442 = vpop.f32.mrb[0].mxu0
    %443 = vmatprep.mubr.bf16.mxu0 0
    %444 = vmatmul.mubr.bf16.gmra.mrb[0].mxu0 %v368
    %v445 = vpop.f32.mrb[0].mxu0
    %v446 = vadd.f32 0.0, %v445
    %v447 = vpop.f32.mrb[0].mxu0
    %v448 = vpop.f32.mrb[0].mxu0
    %v449 = vadd.f32 0.0, %v448
    %v450 = vpop.f32.mrb[0].mxu0
    %451 = vmatprep.mubr.bf16.mxu0 0
    %452 = vmatmul.mubr.bf16.gmra.mrb[0].mxu0 %v371
    %v453 = vpop.f32.mrb[0].mxu0
    %v454 = vadd.f32 0.0, %v453
    %v455 = vpop.f32.mrb[0].mxu0
    %v456 = vpop.f32.mrb[0].mxu0
    %v457 = vadd.f32 0.0, %v456
    %v458 = vpop.f32.mrb[0].mxu0
    %459 = vmatprep.mubr.bf16.mxu0 0
    %460 = vmatmul.mubr.bf16.gmra.mrb[0].mxu0 %v374
    %v461 = vpop.f32.mrb[0].mxu0
    %v462 = vadd.f32 0.0, %v461
    %v463 = vpop.f32.mrb[0].mxu0
    %v464 = vpop.f32.mrb[0].mxu0
    %v465 = vadd.f32 0.0, %v464
    %v466 = vpop.f32.mrb[0].mxu0
    %467 = vmatprep.mubr.bf16.mxu0 0
    %468 = vmatmul.mubr.bf16.gmra.mrb[0].mxu0 %v377
    %v469 = vpop.f32.mrb[0].mxu0
    %v470 = vadd.f32 0.0, %v469
    %v471 = vpop.f32.mrb[0].mxu0
    %v472 = vpop.f32.mrb[0].mxu0
    %v473 = vadd.f32 0.0, %v472
    %v474 = vpop.f32.mrb[0].mxu0
    %475 = vdwg.mxu0
    %v476 = vpack.c.bf16 %v417, %v414
    %v477 = vpack.c.bf16 %v425, %v422
    %v478 = vpack.c.bf16 %v433, %v430
    %v479 = vpack.c.bf16 %v441, %v438
    %v480 = vpack.c.bf16 %v449, %v446
    %v481 = vpack.c.bf16 %v457, %v454
    %v482 = vpack.c.bf16 %v465, %v462
    %v483 = vpack.c.bf16 %v473, %v470
    %v484 = vld [vmem:[%s4] sm:$0xf]
    %v485 = vld [vmem:[%s4 + $0x4] sm:$0xf]
    %v486 = vld [vmem:[%s4 + $0x8] sm:$0xf]
    %v487 = vld [vmem:[%s4 + $0xc] sm:$0xf]
    %s488 = scalar_lea.vmem %s4, 16
    %v489 = vld [vmem:[%s488] sm:$0xf]
    %v490 = vld [vmem:[%s488 + $0x4] sm:$0xf]
    %v491 = vld [vmem:[%s488 + $0x8] sm:$0xf]
    %v492 = vld [vmem:[%s488 + $0xc] sm:$0xf]
    %v494 = vrot.slane %v476, 4
    %v499 = vunpack.c.l.b16 %v489
    %v500 = vunpack.c.l.b16 %v490
    %v501 = vunpack.c.l.b16 %v491
    %v502 = vunpack.c.l.b16 %v492
    %v503 = vpack.c.b16 %v500, %v499
    %v504 = vpack.c.b16 %v502, %v501
    %v508 = vsel %vm354, %v494, 0
    %510 = vmatprep.subr.bf16.mxu0 0
    %511 = vmatpush1.bf16.msra.mxu0 %v503
    %512 = vmatprep.subr.bf16.mxu0 0
    %513 = vmatpush1.bf16.msra.mxu0 %v504
    %514 = vmatprep.subr.bf16.mxu0 0
    %515 = vmatpush1.bf16.msra.mxu0 0
    %516 = vmatprep.subr.bf16.mxu0 0
    %517 = vmatpush1.bf16.msra.mxu0 0
    %518 = vmatprep.subr.bf16.mxu0 0
    %519 = vmatpush1.bf16.msra.mxu0 0
    %520 = vmatprep.subr.bf16.mxu0 0
    %521 = vmatpush1.bf16.msra.mxu0 0
    %522 = vmatprep.subr.bf16.mxu0 0
    %523 = vmatpush1.bf16.msra.mxu0 0
    %524 = vmatprep.subr.bf16.mxu0 0
    %525 = vmatpush1.bf16.msra.mxu0 0
    %526 = vmatprep.subr.bf16.mxu0 0
    %527 = vmatpush1.bf16.msra.mxu0 0
    %528 = vmatprep.subr.bf16.mxu0 0
    %529 = vmatpush1.bf16.msra.mxu0 0
    %530 = vmatprep.subr.bf16.mxu0 0
    %531 = vmatpush1.bf16.msra.mxu0 0
    %532 = vmatprep.subr.bf16.mxu0 0
    %533 = vmatpush1.bf16.msra.mxu0 0
    %534 = vmatprep.subr.bf16.mxu0 0
    %535 = vmatpush1.bf16.msra.mxu0 0
    %536 = vmatprep.subr.bf16.mxu0 0
    %537 = vmatpush1.bf16.msra.mxu0 0
    %538 = vmatprep.subr.bf16.mxu0 0
    %539 = vmatpush1.bf16.msra.mxu0 0
    %540 = vmatprep.subr.bf16.mxu0 0
    %541 = vmatpush1.bf16.msra.mxu0 0
    %542 = vmatprep.mubr.bf16.mxu0 0
    %543 = vmatmul.mubr.bf16.gmra.mrb[0].mxu0 %v508
    %v544 = vpop.f32.mrb[0].mxu0
    %v545 = vadd.f32 0.0, %v544
    %v546 = vpop.f32.mrb[0].mxu0
    %v547 = vpop.f32.mrb[0].mxu0
    %v548 = vpop.f32.mrb[0].mxu0
    %549 = vdwg.mxu0
    %v554 = vunpack.c.l.b16 %v484
    %v555 = vunpack.c.l.b16 %v485
    %v556 = vunpack.c.l.b16 %v486
    %v557 = vunpack.c.l.b16 %v487
    %v558 = vpack.c.b16 %v555, %v554
    %v559 = vpack.c.b16 %v557, %v556
    %v563 = vsel %vm354, %v476, 0
    %565 = vmatprep.subr.bf16.mxu0 0
    %566 = vmatpush1.bf16.msra.mxu0 %v558
    %567 = vmatprep.subr.bf16.mxu0 0
    %568 = vmatpush1.bf16.msra.mxu0 %v559
    %569 = vmatprep.subr.bf16.mxu0 0
    %570 = vmatpush1.bf16.msra.mxu0 0
    %571 = vmatprep.subr.bf16.mxu0 0
    %572 = vmatpush1.bf16.msra.mxu0 0
    %573 = vmatprep.subr.bf16.mxu0 0
    %574 = vmatpush1.bf16.msra.mxu0 0
    %575 = vmatprep.subr.bf16.mxu0 0
    %576 = vmatpush1.bf16.msra.mxu0 0
    %577 = vmatprep.subr.bf16.mxu0 0
    %578 = vmatpush1.bf16.msra.mxu0 0
    %579 = vmatprep.subr.bf16.mxu0 0
    %580 = vmatpush1.bf16.msra.mxu0 0
    %581 = vmatprep.subr.bf16.mxu0 0
    %582 = vmatpush1.bf16.msra.mxu0 0
    %583 = vmatprep.subr.bf16.mxu0 0
    %584 = vmatpush1.bf16.msra.mxu0 0
    %585 = vmatprep.subr.bf16.mxu0 0
    %586 = vmatpush1.bf16.msra.mxu0 0
    %587 = vmatprep.subr.bf16.mxu0 0
    %588 = vmatpush1.bf16.msra.mxu0 0
    %589 = vmatprep.subr.bf16.mxu0 0
    %590 = vmatpush1.bf16.msra.mxu0 0
    %591 = vmatprep.subr.bf16.mxu0 0
    %592 = vmatpush1.bf16.msra.mxu0 0
    %593 = vmatprep.subr.bf16.mxu0 0
    %594 = vmatpush1.bf16.msra.mxu0 0
    %595 = vmatprep.subr.bf16.mxu0 0
    %596 = vmatpush1.bf16.msra.mxu0 0
    %597 = vmatprep.mubr.bf16.mxu0 0
    %598 = vmatmul.mubr.bf16.gmra.mrb[0].mxu0 %v563
    %v599 = vpop.f32.mrb[0].mxu0
    %v600 = vadd.f32 %v545, %v599
    %v601 = vpop.f32.mrb[0].mxu0
    %v602 = vpop.f32.mrb[0].mxu0
    %v603 = vpop.f32.mrb[0].mxu0
    %604 = vdwg.mxu0
    %s605 = scalar_lea.vmem %s4, 32
    %v606 = vld [vmem:[%s605] sm:$0xf]
    %v607 = vld [vmem:[%s605 + $0x4] sm:$0xf]
    %v608 = vld [vmem:[%s605 + $0x8] sm:$0xf]
    %v609 = vld [vmem:[%s605 + $0xc] sm:$0xf]
    %v614 = vunpack.c.l.b16 %v606
    %v615 = vunpack.c.l.b16 %v607
    %v616 = vunpack.c.l.b16 %v608
    %v617 = vunpack.c.l.b16 %v609
    %v618 = vpack.c.b16 %v615, %v614
    %v619 = vpack.c.b16 %v617, %v616
    %v623 = vsel %vm354, %v477, 0
    %625 = vmatprep.subr.bf16.mxu0 0
    %626 = vmatpush1.bf16.msra.mxu0 %v618
    %627 = vmatprep.subr.bf16.mxu0 0
    %628 = vmatpush1.bf16.msra.mxu0 %v619
    %629 = vmatprep.subr.bf16.mxu0 0
    %630 = vmatpush1.bf16.msra.mxu0 0
    %631 = vmatprep.subr.bf16.mxu0 0
    %632 = vmatpush1.bf16.msra.mxu0 0
    %633 = vmatprep.subr.bf16.mxu0 0
    %634 = vmatpush1.bf16.msra.mxu0 0
    %635 = vmatprep.subr.bf16.mxu0 0
    %636 = vmatpush1.bf16.msra.mxu0 0
    %637 = vmatprep.subr.bf16.mxu0 0
    %638 = vmatpush1.bf16.msra.mxu0 0
    %639 = vmatprep.subr.bf16.mxu0 0
    %640 = vmatpush1.bf16.msra.mxu0 0
    %641 = vmatprep.subr.bf16.mxu0 0
    %642 = vmatpush1.bf16.msra.mxu0 0
    %643 = vmatprep.subr.bf16.mxu0 0
    %644 = vmatpush1.bf16.msra.mxu0 0
    %645 = vmatprep.subr.bf16.mxu0 0
    %646 = vmatpush1.bf16.msra.mxu0 0
    %647 = vmatprep.subr.bf16.mxu0 0
    %648 = vmatpush1.bf16.msra.mxu0 0
    %649 = vmatprep.subr.bf16.mxu0 0
    %650 = vmatpush1.bf16.msra.mxu0 0
    %651 = vmatprep.subr.bf16.mxu0 0
    %652 = vmatpush1.bf16.msra.mxu0 0
    %653 = vmatprep.subr.bf16.mxu0 0
    %654 = vmatpush1.bf16.msra.mxu0 0
    %655 = vmatprep.subr.bf16.mxu0 0
    %656 = vmatpush1.bf16.msra.mxu0 0
    %657 = vmatprep.mubr.bf16.mxu0 0
    %658 = vmatmul.mubr.bf16.gmra.mrb[0].mxu0 %v623
    %v659 = vpop.f32.mrb[0].mxu0
    %v660 = vadd.f32 0.0, %v659
    %v661 = vpop.f32.mrb[0].mxu0
    %v662 = vpop.f32.mrb[0].mxu0
    %v663 = vpop.f32.mrb[0].mxu0
    %664 = vdwg.mxu0
    %v665 = vadd.f32 %v600, %v660
    %s666 = scalar_lea.vmem %s4, 48
    %v667 = vld [vmem:[%s666] sm:$0xf]
    %v668 = vld [vmem:[%s666 + $0x4] sm:$0xf]
    %v669 = vld [vmem:[%s666 + $0x8] sm:$0xf]
    %v670 = vld [vmem:[%s666 + $0xc] sm:$0xf]
    %v672 = vrot.slane %v477, 4
    %v677 = vunpack.c.l.b16 %v667
    %v678 = vunpack.c.l.b16 %v668
    %v679 = vunpack.c.l.b16 %v669
    %v680 = vunpack.c.l.b16 %v670
    %v681 = vpack.c.b16 %v678, %v677
    %v682 = vpack.c.b16 %v680, %v679
    %v686 = vsel %vm354, %v672, 0
    %688 = vmatprep.subr.bf16.mxu0 0
    %689 = vmatpush1.bf16.msra.mxu0 %v681
    %690 = vmatprep.subr.bf16.mxu0 0
    %691 = vmatpush1.bf16.msra.mxu0 %v682
    %692 = vmatprep.subr.bf16.mxu0 0
    %693 = vmatpush1.bf16.msra.mxu0 0
    %694 = vmatprep.subr.bf16.mxu0 0
    %695 = vmatpush1.bf16.msra.mxu0 0
    %696 = vmatprep.subr.bf16.mxu0 0
    %697 = vmatpush1.bf16.msra.mxu0 0
    %698 = vmatprep.subr.bf16.mxu0 0
    %699 = vmatpush1.bf16.msra.mxu0 0
    %700 = vmatprep.subr.bf16.mxu0 0
    %701 = vmatpush1.bf16.msra.mxu0 0
    %702 = vmatprep.subr.bf16.mxu0 0
    %703 = vmatpush1.bf16.msra.mxu0 0
    %704 = vmatprep.subr.bf16.mxu0 0
    %705 = vmatpush1.bf16.msra.mxu0 0
    %706 = vmatprep.subr.bf16.mxu0 0
    %707 = vmatpush1.bf16.msra.mxu0 0
    %708 = vmatprep.subr.bf16.mxu0 0
    %709 = vmatpush1.bf16.msra.mxu0 0
    %710 = vmatprep.subr.bf16.mxu0 0
    %711 = vmatpush1.bf16.msra.mxu0 0
    %712 = vmatprep.subr.bf16.mxu0 0
    %713 = vmatpush1.bf16.msra.mxu0 0
    %714 = vmatprep.subr.bf16.mxu0 0
    %715 = vmatpush1.bf16.msra.mxu0 0
    %716 = vmatprep.subr.bf16.mxu0 0
    %717 = vmatpush1.bf16.msra.mxu0 0
    %718 = vmatprep.subr.bf16.mxu0 0
    %719 = vmatpush1.bf16.msra.mxu0 0
    %720 = vmatprep.mubr.bf16.mxu0 0
    %721 = vmatmul.mubr.bf16.gmra.mrb[0].mxu0 %v686
    %v722 = vpop.f32.mrb[0].mxu0
    %v723 = vadd.f32 0.0, %v722
    %v724 = vpop.f32.mrb[0].mxu0
    %v725 = vpop.f32.mrb[0].mxu0
    %v726 = vpop.f32.mrb[0].mxu0
    %727 = vdwg.mxu0
    %v728 = vadd.f32 %v665, %v723
    %s729 = scalar_lea.vmem %s4, 64
    %v730 = vld [vmem:[%s729] sm:$0xf]
    %v731 = vld [vmem:[%s729 + $0x4] sm:$0xf]
    %v732 = vld [vmem:[%s729 + $0x8] sm:$0xf]
    %v733 = vld [vmem:[%s729 + $0xc] sm:$0xf]
    %v738 = vunpack.c.l.b16 %v730
    %v739 = vunpack.c.l.b16 %v731
    %v740 = vunpack.c.l.b16 %v732
    %v741 = vunpack.c.l.b16 %v733
    %v742 = vpack.c.b16 %v739, %v738
    %v743 = vpack.c.b16 %v741, %v740
    %v747 = vsel %vm354, %v478, 0
    %749 = vmatprep.subr.bf16.mxu0 0
    %750 = vmatpush1.bf16.msra.mxu0 %v742
    %751 = vmatprep.subr.bf16.mxu0 0
    %752 = vmatpush1.bf16.msra.mxu0 %v743
    %753 = vmatprep.subr.bf16.mxu0 0
    %754 = vmatpush1.bf16.msra.mxu0 0
    %755 = vmatprep.subr.bf16.mxu0 0
    %756 = vmatpush1.bf16.msra.mxu0 0
    %757 = vmatprep.subr.bf16.mxu0 0
    %758 = vmatpush1.bf16.msra.mxu0 0
    %759 = vmatprep.subr.bf16.mxu0 0
    %760 = vmatpush1.bf16.msra.mxu0 0
    %761 = vmatprep.subr.bf16.mxu0 0
    %762 = vmatpush1.bf16.msra.mxu0 0
    %763 = vmatprep.subr.bf16.mxu0 0
    %764 = vmatpush1.bf16.msra.mxu0 0
    %765 = vmatprep.subr.bf16.mxu0 0
    %766 = vmatpush1.bf16.msra.mxu0 0
    %767 = vmatprep.subr.bf16.mxu0 0
    %768 = vmatpush1.bf16.msra.mxu0 0
    %769 = vmatprep.subr.bf16.mxu0 0
    %770 = vmatpush1.bf16.msra.mxu0 0
    %771 = vmatprep.subr.bf16.mxu0 0
    %772 = vmatpush1.bf16.msra.mxu0 0
    %773 = vmatprep.subr.bf16.mxu0 0
    %774 = vmatpush1.bf16.msra.mxu0 0
    %775 = vmatprep.subr.bf16.mxu0 0
    %776 = vmatpush1.bf16.msra.mxu0 0
    %777 = vmatprep.subr.bf16.mxu0 0
    %778 = vmatpush1.bf16.msra.mxu0 0
    %779 = vmatprep.subr.bf16.mxu0 0
    %780 = vmatpush1.bf16.msra.mxu0 0
    %781 = vmatprep.mubr.bf16.mxu0 0
    %782 = vmatmul.mubr.bf16.gmra.mrb[0].mxu0 %v747
    %v783 = vpop.f32.mrb[0].mxu0
    %v784 = vadd.f32 0.0, %v783
    %v785 = vpop.f32.mrb[0].mxu0
    %v786 = vpop.f32.mrb[0].mxu0
    %v787 = vpop.f32.mrb[0].mxu0
    %788 = vdwg.mxu0
    %v789 = vadd.f32 %v728, %v784
    %s790 = scalar_lea.vmem %s4, 80
    %v791 = vld [vmem:[%s790] sm:$0xf]
    %v792 = vld [vmem:[%s790 + $0x4] sm:$0xf]
    %v793 = vld [vmem:[%s790 + $0x8] sm:$0xf]
    %v794 = vld [vmem:[%s790 + $0xc] sm:$0xf]
    %v796 = vrot.slane %v478, 4
    %v801 = vunpack.c.l.b16 %v791
    %v802 = vunpack.c.l.b16 %v792
    %v803 = vunpack.c.l.b16 %v793
    %v804 = vunpack.c.l.b16 %v794
    %v805 = vpack.c.b16 %v802, %v801
    %v806 = vpack.c.b16 %v804, %v803
    %v810 = vsel %vm354, %v796, 0
    %812 = vmatprep.subr.bf16.mxu0 0
    %813 = vmatpush1.bf16.msra.mxu0 %v805
    %814 = vmatprep.subr.bf16.mxu0 0
    %815 = vmatpush1.bf16.msra.mxu0 %v806
    %816 = vmatprep.subr.bf16.mxu0 0
    %817 = vmatpush1.bf16.msra.mxu0 0
    %818 = vmatprep.subr.bf16.mxu0 0
    %819 = vmatpush1.bf16.msra.mxu0 0
    %820 = vmatprep.subr.bf16.mxu0 0
    %821 = vmatpush1.bf16.msra.mxu0 0
    %822 = vmatprep.subr.bf16.mxu0 0
    %823 = vmatpush1.bf16.msra.mxu0 0
    %824 = vmatprep.subr.bf16.mxu0 0
    %825 = vmatpush1.bf16.msra.mxu0 0
    %826 = vmatprep.subr.bf16.mxu0 0
    %827 = vmatpush1.bf16.msra.mxu0 0
    %828 = vmatprep.subr.bf16.mxu0 0
    %829 = vmatpush1.bf16.msra.mxu0 0
    %830 = vmatprep.subr.bf16.mxu0 0
    %831 = vmatpush1.bf16.msra.mxu0 0
    %832 = vmatprep.subr.bf16.mxu0 0
    %833 = vmatpush1.bf16.msra.mxu0 0
    %834 = vmatprep.subr.bf16.mxu0 0
    %835 = vmatpush1.bf16.msra.mxu0 0
    %836 = vmatprep.subr.bf16.mxu0 0
    %837 = vmatpush1.bf16.msra.mxu0 0
    %838 = vmatprep.subr.bf16.mxu0 0
    %839 = vmatpush1.bf16.msra.mxu0 0
    %840 = vmatprep.subr.bf16.mxu0 0
    %841 = vmatpush1.bf16.msra.mxu0 0
    %842 = vmatprep.subr.bf16.mxu0 0
    %843 = vmatpush1.bf16.msra.mxu0 0
    %844 = vmatprep.mubr.bf16.mxu0 0
    %845 = vmatmul.mubr.bf16.gmra.mrb[0].mxu0 %v810
    %v846 = vpop.f32.mrb[0].mxu0
    %v847 = vadd.f32 0.0, %v846
    %v848 = vpop.f32.mrb[0].mxu0
    %v849 = vpop.f32.mrb[0].mxu0
    %v850 = vpop.f32.mrb[0].mxu0
    %851 = vdwg.mxu0
    %v852 = vadd.f32 %v789, %v847
    %s853 = scalar_lea.vmem %s4, 96
    %v854 = vld [vmem:[%s853] sm:$0xf]
    %v855 = vld [vmem:[%s853 + $0x4] sm:$0xf]
    %v856 = vld [vmem:[%s853 + $0x8] sm:$0xf]
    %v857 = vld [vmem:[%s853 + $0xc] sm:$0xf]
    %v862 = vunpack.c.l.b16 %v854
    %v863 = vunpack.c.l.b16 %v855
    %v864 = vunpack.c.l.b16 %v856
    %v865 = vunpack.c.l.b16 %v857
    %v866 = vpack.c.b16 %v863, %v862
    %v867 = vpack.c.b16 %v865, %v864
    %v871 = vsel %vm354, %v479, 0
    %873 = vmatprep.subr.bf16.mxu0 0
    %874 = vmatpush1.bf16.msra.mxu0 %v866
    %875 = vmatprep.subr.bf16.mxu0 0
    %876 = vmatpush1.bf16.msra.mxu0 %v867
    %877 = vmatprep.subr.bf16.mxu0 0
    %878 = vmatpush1.bf16.msra.mxu0 0
    %879 = vmatprep.subr.bf16.mxu0 0
    %880 = vmatpush1.bf16.msra.mxu0 0
    %881 = vmatprep.subr.bf16.mxu0 0
    %882 = vmatpush1.bf16.msra.mxu0 0
    %883 = vmatprep.subr.bf16.mxu0 0
    %884 = vmatpush1.bf16.msra.mxu0 0
    %885 = vmatprep.subr.bf16.mxu0 0
    %886 = vmatpush1.bf16.msra.mxu0 0
    %887 = vmatprep.subr.bf16.mxu0 0
    %888 = vmatpush1.bf16.msra.mxu0 0
    %889 = vmatprep.subr.bf16.mxu0 0
    %890 = vmatpush1.bf16.msra.mxu0 0
    %891 = vmatprep.subr.bf16.mxu0 0
    %892 = vmatpush1.bf16.msra.mxu0 0
    %893 = vmatprep.subr.bf16.mxu0 0
    %894 = vmatpush1.bf16.msra.mxu0 0
    %895 = vmatprep.subr.bf16.mxu0 0
    %896 = vmatpush1.bf16.msra.mxu0 0
    %897 = vmatprep.subr.bf16.mxu0 0
    %898 = vmatpush1.bf16.msra.mxu0 0
    %899 = vmatprep.subr.bf16.mxu0 0
    %900 = vmatpush1.bf16.msra.mxu0 0
    %901 = vmatprep.subr.bf16.mxu0 0
    %902 = vmatpush1.bf16.msra.mxu0 0
    %903 = vmatprep.subr.bf16.mxu0 0
    %904 = vmatpush1.bf16.msra.mxu0 0
    %905 = vmatprep.mubr.bf16.mxu0 0
    %906 = vmatmul.mubr.bf16.gmra.mrb[0].mxu0 %v871
    %v907 = vpop.f32.mrb[0].mxu0
    %v908 = vadd.f32 0.0, %v907
    %v909 = vpop.f32.mrb[0].mxu0
    %v910 = vpop.f32.mrb[0].mxu0
    %v911 = vpop.f32.mrb[0].mxu0
    %912 = vdwg.mxu0
    %v913 = vadd.f32 %v852, %v908
    %s914 = scalar_lea.vmem %s4, 112
    %v915 = vld [vmem:[%s914] sm:$0xf]
    %v916 = vld [vmem:[%s914 + $0x4] sm:$0xf]
    %v917 = vld [vmem:[%s914 + $0x8] sm:$0xf]
    %v918 = vld [vmem:[%s914 + $0xc] sm:$0xf]
    %v920 = vrot.slane %v479, 4
    %v925 = vunpack.c.l.b16 %v915
    %v926 = vunpack.c.l.b16 %v916
    %v927 = vunpack.c.l.b16 %v917
    %v928 = vunpack.c.l.b16 %v918
    %v929 = vpack.c.b16 %v926, %v925
    %v930 = vpack.c.b16 %v928, %v927
    %v934 = vsel %vm354, %v920, 0
    %936 = vmatprep.subr.bf16.mxu0 0
    %937 = vmatpush1.bf16.msra.mxu0 %v929
    %938 = vmatprep.subr.bf16.mxu0 0
    %939 = vmatpush1.bf16.msra.mxu0 %v930
    %940 = vmatprep.subr.bf16.mxu0 0
    %941 = vmatpush1.bf16.msra.mxu0 0
    %942 = vmatprep.subr.bf16.mxu0 0
    %943 = vmatpush1.bf16.msra.mxu0 0
    %944 = vmatprep.subr.bf16.mxu0 0
    %945 = vmatpush1.bf16.msra.mxu0 0
    %946 = vmatprep.subr.bf16.mxu0 0
    %947 = vmatpush1.bf16.msra.mxu0 0
    %948 = vmatprep.subr.bf16.mxu0 0
    %949 = vmatpush1.bf16.msra.mxu0 0
    %950 = vmatprep.subr.bf16.mxu0 0
    %951 = vmatpush1.bf16.msra.mxu0 0
    %952 = vmatprep.subr.bf16.mxu0 0
    %953 = vmatpush1.bf16.msra.mxu0 0
    %954 = vmatprep.subr.bf16.mxu0 0
    %955 = vmatpush1.bf16.msra.mxu0 0
    %956 = vmatprep.subr.bf16.mxu0 0
    %957 = vmatpush1.bf16.msra.mxu0 0
    %958 = vmatprep.subr.bf16.mxu0 0
    %959 = vmatpush1.bf16.msra.mxu0 0
    %960 = vmatprep.subr.bf16.mxu0 0
    %961 = vmatpush1.bf16.msra.mxu0 0
    %962 = vmatprep.subr.bf16.mxu0 0
    %963 = vmatpush1.bf16.msra.mxu0 0
    %964 = vmatprep.subr.bf16.mxu0 0
    %965 = vmatpush1.bf16.msra.mxu0 0
    %966 = vmatprep.subr.bf16.mxu0 0
    %967 = vmatpush1.bf16.msra.mxu0 0
    %968 = vmatprep.mubr.bf16.mxu0 0
    %969 = vmatmul.mubr.bf16.gmra.mrb[0].mxu0 %v934
    %v970 = vpop.f32.mrb[0].mxu0
    %v971 = vadd.f32 0.0, %v970
    %v972 = vpop.f32.mrb[0].mxu0
    %v973 = vpop.f32.mrb[0].mxu0
    %v974 = vpop.f32.mrb[0].mxu0
    %975 = vdwg.mxu0
    %v976 = vadd.f32 %v913, %v971
    %s977 = scalar_lea.vmem %s4, 128
    %v978 = vld [vmem:[%s977] sm:$0xf]
    %v979 = vld [vmem:[%s977 + $0x4] sm:$0xf]
    %v980 = vld [vmem:[%s977 + $0x8] sm:$0xf]
    %v981 = vld [vmem:[%s977 + $0xc] sm:$0xf]
    %v986 = vunpack.c.l.b16 %v978
    %v987 = vunpack.c.l.b16 %v979
    %v988 = vunpack.c.l.b16 %v980
    %v989 = vunpack.c.l.b16 %v981
    %v990 = vpack.c.b16 %v987, %v986
    %v991 = vpack.c.b16 %v989, %v988
    %v995 = vsel %vm354, %v480, 0
    %997 = vmatprep.subr.bf16.mxu0 0
    %998 = vmatpush1.bf16.msra.mxu0 %v990
    %999 = vmatprep.subr.bf16.mxu0 0
    %1000 = vmatpush1.bf16.msra.mxu0 %v991
    %1001 = vmatprep.subr.bf16.mxu0 0
    %1002 = vmatpush1.bf16.msra.mxu0 0
    %1003 = vmatprep.subr.bf16.mxu0 0
    %1004 = vmatpush1.bf16.msra.mxu0 0
    %1005 = vmatprep.subr.bf16.mxu0 0
    %1006 = vmatpush1.bf16.msra.mxu0 0
    %1007 = vmatprep.subr.bf16.mxu0 0
    %1008 = vmatpush1.bf16.msra.mxu0 0
    %1009 = vmatprep.subr.bf16.mxu0 0
    %1010 = vmatpush1.bf16.msra.mxu0 0
    %1011 = vmatprep.subr.bf16.mxu0 0
    %1012 = vmatpush1.bf16.msra.mxu0 0
    %1013 = vmatprep.subr.bf16.mxu0 0
    %1014 = vmatpush1.bf16.msra.mxu0 0
    %1015 = vmatprep.subr.bf16.mxu0 0
    %1016 = vmatpush1.bf16.msra.mxu0 0
    %1017 = vmatprep.subr.bf16.mxu0 0
    %1018 = vmatpush1.bf16.msra.mxu0 0
    %1019 = vmatprep.subr.bf16.mxu0 0
    %1020 = vmatpush1.bf16.msra.mxu0 0
    %1021 = vmatprep.subr.bf16.mxu0 0
    %1022 = vmatpush1.bf16.msra.mxu0 0
    %1023 = vmatprep.subr.bf16.mxu0 0
    %1024 = vmatpush1.bf16.msra.mxu0 0
    %1025 = vmatprep.subr.bf16.mxu0 0
    %1026 = vmatpush1.bf16.msra.mxu0 0
    %1027 = vmatprep.subr.bf16.mxu0 0
    %1028 = vmatpush1.bf16.msra.mxu0 0
    %1029 = vmatprep.mubr.bf16.mxu0 0
    %1030 = vmatmul.mubr.bf16.gmra.mrb[0].mxu0 %v995
    %v1031 = vpop.f32.mrb[0].mxu0
    %v1032 = vadd.f32 0.0, %v1031
    %v1033 = vpop.f32.mrb[0].mxu0
    %v1034 = vpop.f32.mrb[0].mxu0
    %v1035 = vpop.f32.mrb[0].mxu0
    %1036 = vdwg.mxu0
    %v1037 = vadd.f32 %v976, %v1032
    %s1038 = scalar_lea.vmem %s4, 144
    %v1039 = vld [vmem:[%s1038] sm:$0xf]
    %v1040 = vld [vmem:[%s1038 + $0x4] sm:$0xf]
    %v1041 = vld [vmem:[%s1038 + $0x8] sm:$0xf]
    %v1042 = vld [vmem:[%s1038 + $0xc] sm:$0xf]
    %v1044 = vrot.slane %v480, 4
    %v1049 = vunpack.c.l.b16 %v1039
    %v1050 = vunpack.c.l.b16 %v1040
    %v1051 = vunpack.c.l.b16 %v1041
    %v1052 = vunpack.c.l.b16 %v1042
    %v1053 = vpack.c.b16 %v1050, %v1049
    %v1054 = vpack.c.b16 %v1052, %v1051
    %v1058 = vsel %vm354, %v1044, 0
    %1060 = vmatprep.subr.bf16.mxu0 0
    %1061 = vmatpush1.bf16.msra.mxu0 %v1053
    %1062 = vmatprep.subr.bf16.mxu0 0
    %1063 = vmatpush1.bf16.msra.mxu0 %v1054
    %1064 = vmatprep.subr.bf16.mxu0 0
    %1065 = vmatpush1.bf16.msra.mxu0 0
    %1066 = vmatprep.subr.bf16.mxu0 0
    %1067 = vmatpush1.bf16.msra.mxu0 0
    %1068 = vmatprep.subr.bf16.mxu0 0
    %1069 = vmatpush1.bf16.msra.mxu0 0
    %1070 = vmatprep.subr.bf16.mxu0 0
    %1071 = vmatpush1.bf16.msra.mxu0 0
    %1072 = vmatprep.subr.bf16.mxu0 0
    %1073 = vmatpush1.bf16.msra.mxu0 0
    %1074 = vmatprep.subr.bf16.mxu0 0
    %1075 = vmatpush1.bf16.msra.mxu0 0
    %1076 = vmatprep.subr.bf16.mxu0 0
    %1077 = vmatpush1.bf16.msra.mxu0 0
    %1078 = vmatprep.subr.bf16.mxu0 0
    %1079 = vmatpush1.bf16.msra.mxu0 0
    %1080 = vmatprep.subr.bf16.mxu0 0
    %1081 = vmatpush1.bf16.msra.mxu0 0
    %1082 = vmatprep.subr.bf16.mxu0 0
    %1083 = vmatpush1.bf16.msra.mxu0 0
    %1084 = vmatprep.subr.bf16.mxu0 0
    %1085 = vmatpush1.bf16.msra.mxu0 0
    %1086 = vmatprep.subr.bf16.mxu0 0
    %1087 = vmatpush1.bf16.msra.mxu0 0
    %1088 = vmatprep.subr.bf16.mxu0 0
    %1089 = vmatpush1.bf16.msra.mxu0 0
    %1090 = vmatprep.subr.bf16.mxu0 0
    %1091 = vmatpush1.bf16.msra.mxu0 0
    %1092 = vmatprep.mubr.bf16.mxu0 0
    %1093 = vmatmul.mubr.bf16.gmra.mrb[0].mxu0 %v1058
    %v1094 = vpop.f32.mrb[0].mxu0
    %v1095 = vadd.f32 0.0, %v1094
    %v1096 = vpop.f32.mrb[0].mxu0
    %v1097 = vpop.f32.mrb[0].mxu0
    %v1098 = vpop.f32.mrb[0].mxu0
    %1099 = vdwg.mxu0
    %v1100 = vadd.f32 %v1037, %v1095
    %s1101 = scalar_lea.vmem %s4, 160
    %v1102 = vld [vmem:[%s1101] sm:$0xf]
    %v1103 = vld [vmem:[%s1101 + $0x4] sm:$0xf]
    %v1104 = vld [vmem:[%s1101 + $0x8] sm:$0xf]
    %v1105 = vld [vmem:[%s1101 + $0xc] sm:$0xf]
    %v1110 = vunpack.c.l.b16 %v1102
    %v1111 = vunpack.c.l.b16 %v1103
    %v1112 = vunpack.c.l.b16 %v1104
    %v1113 = vunpack.c.l.b16 %v1105
    %v1114 = vpack.c.b16 %v1111, %v1110
    %v1115 = vpack.c.b16 %v1113, %v1112
    %v1119 = vsel %vm354, %v481, 0
    %1121 = vmatprep.subr.bf16.mxu0 0
    %1122 = vmatpush1.bf16.msra.mxu0 %v1114
    %1123 = vmatprep.subr.bf16.mxu0 0
    %1124 = vmatpush1.bf16.msra.mxu0 %v1115
    %1125 = vmatprep.subr.bf16.mxu0 0
    %1126 = vmatpush1.bf16.msra.mxu0 0
    %1127 = vmatprep.subr.bf16.mxu0 0
    %1128 = vmatpush1.bf16.msra.mxu0 0
    %1129 = vmatprep.subr.bf16.mxu0 0
    %1130 = vmatpush1.bf16.msra.mxu0 0
    %1131 = vmatprep.subr.bf16.mxu0 0
    %1132 = vmatpush1.bf16.msra.mxu0 0
    %1133 = vmatprep.subr.bf16.mxu0 0
    %1134 = vmatpush1.bf16.msra.mxu0 0
    %1135 = vmatprep.subr.bf16.mxu0 0
    %1136 = vmatpush1.bf16.msra.mxu0 0
    %1137 = vmatprep.subr.bf16.mxu0 0
    %1138 = vmatpush1.bf16.msra.mxu0 0
    %1139 = vmatprep.subr.bf16.mxu0 0
    %1140 = vmatpush1.bf16.msra.mxu0 0
    %1141 = vmatprep.subr.bf16.mxu0 0
    %1142 = vmatpush1.bf16.msra.mxu0 0
    %1143 = vmatprep.subr.bf16.mxu0 0
    %1144 = vmatpush1.bf16.msra.mxu0 0
    %1145 = vmatprep.subr.bf16.mxu0 0
    %1146 = vmatpush1.bf16.msra.mxu0 0
    %1147 = vmatprep.subr.bf16.mxu0 0
    %1148 = vmatpush1.bf16.msra.mxu0 0
    %1149 = vmatprep.subr.bf16.mxu0 0
    %1150 = vmatpush1.bf16.msra.mxu0 0
    %1151 = vmatprep.subr.bf16.mxu0 0
    %1152 = vmatpush1.bf16.msra.mxu0 0
    %1153 = vmatprep.mubr.bf16.mxu0 0
    %1154 = vmatmul.mubr.bf16.gmra.mrb[0].mxu0 %v1119
    %v1155 = vpop.f32.mrb[0].mxu0
    %v1156 = vadd.f32 0.0, %v1155
    %v1157 = vpop.f32.mrb[0].mxu0
    %v1158 = vpop.f32.mrb[0].mxu0
    %v1159 = vpop.f32.mrb[0].mxu0
    %1160 = vdwg.mxu0
    %v1161 = vadd.f32 %v1100, %v1156
    %s1162 = scalar_lea.vmem %s4, 176
    %v1163 = vld [vmem:[%s1162] sm:$0xf]
    %v1164 = vld [vmem:[%s1162 + $0x4] sm:$0xf]
    %v1165 = vld [vmem:[%s1162 + $0x8] sm:$0xf]
    %v1166 = vld [vmem:[%s1162 + $0xc] sm:$0xf]
    %v1168 = vrot.slane %v481, 4
    %v1173 = vunpack.c.l.b16 %v1163
    %v1174 = vunpack.c.l.b16 %v1164
    %v1175 = vunpack.c.l.b16 %v1165
    %v1176 = vunpack.c.l.b16 %v1166
    %v1177 = vpack.c.b16 %v1174, %v1173
    %v1178 = vpack.c.b16 %v1176, %v1175
    %v1182 = vsel %vm354, %v1168, 0
    %1184 = vmatprep.subr.bf16.mxu0 0
    %1185 = vmatpush1.bf16.msra.mxu0 %v1177
    %1186 = vmatprep.subr.bf16.mxu0 0
    %1187 = vmatpush1.bf16.msra.mxu0 %v1178
    %1188 = vmatprep.subr.bf16.mxu0 0
    %1189 = vmatpush1.bf16.msra.mxu0 0
    %1190 = vmatprep.subr.bf16.mxu0 0
    %1191 = vmatpush1.bf16.msra.mxu0 0
    %1192 = vmatprep.subr.bf16.mxu0 0
    %1193 = vmatpush1.bf16.msra.mxu0 0
    %1194 = vmatprep.subr.bf16.mxu0 0
    %1195 = vmatpush1.bf16.msra.mxu0 0
    %1196 = vmatprep.subr.bf16.mxu0 0
    %1197 = vmatpush1.bf16.msra.mxu0 0
    %1198 = vmatprep.subr.bf16.mxu0 0
    %1199 = vmatpush1.bf16.msra.mxu0 0
    %1200 = vmatprep.subr.bf16.mxu0 0
    %1201 = vmatpush1.bf16.msra.mxu0 0
    %1202 = vmatprep.subr.bf16.mxu0 0
    %1203 = vmatpush1.bf16.msra.mxu0 0
    %1204 = vmatprep.subr.bf16.mxu0 0
    %1205 = vmatpush1.bf16.msra.mxu0 0
    %1206 = vmatprep.subr.bf16.mxu0 0
    %1207 = vmatpush1.bf16.msra.mxu0 0
    %1208 = vmatprep.subr.bf16.mxu0 0
    %1209 = vmatpush1.bf16.msra.mxu0 0
    %1210 = vmatprep.subr.bf16.mxu0 0
    %1211 = vmatpush1.bf16.msra.mxu0 0
    %1212 = vmatprep.subr.bf16.mxu0 0
    %1213 = vmatpush1.bf16.msra.mxu0 0
    %1214 = vmatprep.subr.bf16.mxu0 0
    %1215 = vmatpush1.bf16.msra.mxu0 0
    %1216 = vmatprep.mubr.bf16.mxu0 0
    %1217 = vmatmul.mubr.bf16.gmra.mrb[0].mxu0 %v1182
    %v1218 = vpop.f32.mrb[0].mxu0
    %v1219 = vadd.f32 0.0, %v1218
    %v1220 = vpop.f32.mrb[0].mxu0
    %v1221 = vpop.f32.mrb[0].mxu0
    %v1222 = vpop.f32.mrb[0].mxu0
    %1223 = vdwg.mxu0
    %v1224 = vadd.f32 %v1161, %v1219
    %s1225 = scalar_lea.vmem %s4, 192
    %v1226 = vld [vmem:[%s1225] sm:$0xf]
    %v1227 = vld [vmem:[%s1225 + $0x4] sm:$0xf]
    %v1228 = vld [vmem:[%s1225 + $0x8] sm:$0xf]
    %v1229 = vld [vmem:[%s1225 + $0xc] sm:$0xf]
    %v1234 = vunpack.c.l.b16 %v1226
    %v1235 = vunpack.c.l.b16 %v1227
    %v1236 = vunpack.c.l.b16 %v1228
    %v1237 = vunpack.c.l.b16 %v1229
    %v1238 = vpack.c.b16 %v1235, %v1234
    %v1239 = vpack.c.b16 %v1237, %v1236
    %v1243 = vsel %vm354, %v482, 0
    %1245 = vmatprep.subr.bf16.mxu0 0
    %1246 = vmatpush1.bf16.msra.mxu0 %v1238
    %1247 = vmatprep.subr.bf16.mxu0 0
    %1248 = vmatpush1.bf16.msra.mxu0 %v1239
    %1249 = vmatprep.subr.bf16.mxu0 0
    %1250 = vmatpush1.bf16.msra.mxu0 0
    %1251 = vmatprep.subr.bf16.mxu0 0
    %1252 = vmatpush1.bf16.msra.mxu0 0
    %1253 = vmatprep.subr.bf16.mxu0 0
    %1254 = vmatpush1.bf16.msra.mxu0 0
    %1255 = vmatprep.subr.bf16.mxu0 0
    %1256 = vmatpush1.bf16.msra.mxu0 0
    %1257 = vmatprep.subr.bf16.mxu0 0
    %1258 = vmatpush1.bf16.msra.mxu0 0
    %1259 = vmatprep.subr.bf16.mxu0 0
    %1260 = vmatpush1.bf16.msra.mxu0 0
    %1261 = vmatprep.subr.bf16.mxu0 0
    %1262 = vmatpush1.bf16.msra.mxu0 0
    %1263 = vmatprep.subr.bf16.mxu0 0
    %1264 = vmatpush1.bf16.msra.mxu0 0
    %1265 = vmatprep.subr.bf16.mxu0 0
    %1266 = vmatpush1.bf16.msra.mxu0 0
    %1267 = vmatprep.subr.bf16.mxu0 0
    %1268 = vmatpush1.bf16.msra.mxu0 0
    %1269 = vmatprep.subr.bf16.mxu0 0
    %1270 = vmatpush1.bf16.msra.mxu0 0
    %1271 = vmatprep.subr.bf16.mxu0 0
    %1272 = vmatpush1.bf16.msra.mxu0 0
    %1273 = vmatprep.subr.bf16.mxu0 0
    %1274 = vmatpush1.bf16.msra.mxu0 0
    %1275 = vmatprep.subr.bf16.mxu0 0
    %1276 = vmatpush1.bf16.msra.mxu0 0
    %1277 = vmatprep.mubr.bf16.mxu0 0
    %1278 = vmatmul.mubr.bf16.gmra.mrb[0].mxu0 %v1243
    %v1279 = vpop.f32.mrb[0].mxu0
    %v1280 = vadd.f32 0.0, %v1279
    %v1281 = vpop.f32.mrb[0].mxu0
    %v1282 = vpop.f32.mrb[0].mxu0
    %v1283 = vpop.f32.mrb[0].mxu0
    %1284 = vdwg.mxu0
    %v1285 = vadd.f32 %v1224, %v1280
    %s1286 = scalar_lea.vmem %s4, 208
    %v1287 = vld [vmem:[%s1286] sm:$0xf]
    %v1288 = vld [vmem:[%s1286 + $0x4] sm:$0xf]
    %v1289 = vld [vmem:[%s1286 + $0x8] sm:$0xf]
    %v1290 = vld [vmem:[%s1286 + $0xc] sm:$0xf]
    %v1292 = vrot.slane %v482, 4
    %v1297 = vunpack.c.l.b16 %v1287
    %v1298 = vunpack.c.l.b16 %v1288
    %v1299 = vunpack.c.l.b16 %v1289
    %v1300 = vunpack.c.l.b16 %v1290
    %v1301 = vpack.c.b16 %v1298, %v1297
    %v1302 = vpack.c.b16 %v1300, %v1299
    %v1306 = vsel %vm354, %v1292, 0
    %1308 = vmatprep.subr.bf16.mxu0 0
    %1309 = vmatpush1.bf16.msra.mxu0 %v1301
    %1310 = vmatprep.subr.bf16.mxu0 0
    %1311 = vmatpush1.bf16.msra.mxu0 %v1302
    %1312 = vmatprep.subr.bf16.mxu0 0
    %1313 = vmatpush1.bf16.msra.mxu0 0
    %1314 = vmatprep.subr.bf16.mxu0 0
    %1315 = vmatpush1.bf16.msra.mxu0 0
    %1316 = vmatprep.subr.bf16.mxu0 0
    %1317 = vmatpush1.bf16.msra.mxu0 0
    %1318 = vmatprep.subr.bf16.mxu0 0
    %1319 = vmatpush1.bf16.msra.mxu0 0
    %1320 = vmatprep.subr.bf16.mxu0 0
    %1321 = vmatpush1.bf16.msra.mxu0 0
    %1322 = vmatprep.subr.bf16.mxu0 0
    %1323 = vmatpush1.bf16.msra.mxu0 0
    %1324 = vmatprep.subr.bf16.mxu0 0
    %1325 = vmatpush1.bf16.msra.mxu0 0
    %1326 = vmatprep.subr.bf16.mxu0 0
    %1327 = vmatpush1.bf16.msra.mxu0 0
    %1328 = vmatprep.subr.bf16.mxu0 0
    %1329 = vmatpush1.bf16.msra.mxu0 0
    %1330 = vmatprep.subr.bf16.mxu0 0
    %1331 = vmatpush1.bf16.msra.mxu0 0
    %1332 = vmatprep.subr.bf16.mxu0 0
    %1333 = vmatpush1.bf16.msra.mxu0 0
    %1334 = vmatprep.subr.bf16.mxu0 0
    %1335 = vmatpush1.bf16.msra.mxu0 0
    %1336 = vmatprep.subr.bf16.mxu0 0
    %1337 = vmatpush1.bf16.msra.mxu0 0
    %1338 = vmatprep.subr.bf16.mxu0 0
    %1339 = vmatpush1.bf16.msra.mxu0 0
    %1340 = vmatprep.mubr.bf16.mxu0 0
    %1341 = vmatmul.mubr.bf16.gmra.mrb[0].mxu0 %v1306
    %v1342 = vpop.f32.mrb[0].mxu0
    %v1343 = vadd.f32 0.0, %v1342
    %v1344 = vpop.f32.mrb[0].mxu0
    %v1345 = vpop.f32.mrb[0].mxu0
    %v1346 = vpop.f32.mrb[0].mxu0
    %1347 = vdwg.mxu0
    %v1348 = vadd.f32 %v1285, %v1343
    %s1349 = scalar_lea.vmem %s4, 224
    %v1350 = vld [vmem:[%s1349] sm:$0xf]
    %v1351 = vld [vmem:[%s1349 + $0x4] sm:$0xf]
    %v1352 = vld [vmem:[%s1349 + $0x8] sm:$0xf]
    %v1353 = vld [vmem:[%s1349 + $0xc] sm:$0xf]
    %v1358 = vunpack.c.l.b16 %v1350
    %v1359 = vunpack.c.l.b16 %v1351
    %v1360 = vunpack.c.l.b16 %v1352
    %v1361 = vunpack.c.l.b16 %v1353
    %v1362 = vpack.c.b16 %v1359, %v1358
    %v1363 = vpack.c.b16 %v1361, %v1360
    %v1367 = vsel %vm354, %v483, 0
    %1369 = vmatprep.subr.bf16.mxu0 0
    %1370 = vmatpush1.bf16.msra.mxu0 %v1362
    %1371 = vmatprep.subr.bf16.mxu0 0
    %1372 = vmatpush1.bf16.msra.mxu0 %v1363
    %1373 = vmatprep.subr.bf16.mxu0 0
    %1374 = vmatpush1.bf16.msra.mxu0 0
    %1375 = vmatprep.subr.bf16.mxu0 0
    %1376 = vmatpush1.bf16.msra.mxu0 0
    %1377 = vmatprep.subr.bf16.mxu0 0
    %1378 = vmatpush1.bf16.msra.mxu0 0
    %1379 = vmatprep.subr.bf16.mxu0 0
    %1380 = vmatpush1.bf16.msra.mxu0 0
    %1381 = vmatprep.subr.bf16.mxu0 0
    %1382 = vmatpush1.bf16.msra.mxu0 0
    %1383 = vmatprep.subr.bf16.mxu0 0
    %1384 = vmatpush1.bf16.msra.mxu0 0
    %1385 = vmatprep.subr.bf16.mxu0 0
    %1386 = vmatpush1.bf16.msra.mxu0 0
    %1387 = vmatprep.subr.bf16.mxu0 0
    %1388 = vmatpush1.bf16.msra.mxu0 0
    %1389 = vmatprep.subr.bf16.mxu0 0
    %1390 = vmatpush1.bf16.msra.mxu0 0
    %1391 = vmatprep.subr.bf16.mxu0 0
    %1392 = vmatpush1.bf16.msra.mxu0 0
    %1393 = vmatprep.subr.bf16.mxu0 0
    %1394 = vmatpush1.bf16.msra.mxu0 0
    %1395 = vmatprep.subr.bf16.mxu0 0
    %1396 = vmatpush1.bf16.msra.mxu0 0
    %1397 = vmatprep.subr.bf16.mxu0 0
    %1398 = vmatpush1.bf16.msra.mxu0 0
    %1399 = vmatprep.subr.bf16.mxu0 0
    %1400 = vmatpush1.bf16.msra.mxu0 0
    %1401 = vmatprep.mubr.bf16.mxu0 0
    %1402 = vmatmul.mubr.bf16.gmra.mrb[0].mxu0 %v1367
    %v1403 = vpop.f32.mrb[0].mxu0
    %v1404 = vadd.f32 0.0, %v1403
    %v1405 = vpop.f32.mrb[0].mxu0
    %v1406 = vpop.f32.mrb[0].mxu0
    %v1407 = vpop.f32.mrb[0].mxu0
    %1408 = vdwg.mxu0
    %v1409 = vadd.f32 %v1348, %v1404
    %s1410 = scalar_lea.vmem %s4, 240
    %v1411 = vld [vmem:[%s1410] sm:$0xf]
    %v1412 = vld [vmem:[%s1410 + $0x4] sm:$0xf]
    %v1413 = vld [vmem:[%s1410 + $0x8] sm:$0xf]
    %v1414 = vld [vmem:[%s1410 + $0xc] sm:$0xf]
    %v1416 = vrot.slane %v483, 4
    %v1421 = vunpack.c.l.b16 %v1411
    %v1422 = vunpack.c.l.b16 %v1412
    %v1423 = vunpack.c.l.b16 %v1413
    %v1424 = vunpack.c.l.b16 %v1414
    %v1425 = vpack.c.b16 %v1422, %v1421
    %v1426 = vpack.c.b16 %v1424, %v1423
    %v1430 = vsel %vm354, %v1416, 0
    %1432 = vmatprep.subr.bf16.mxu0 0
    %1433 = vmatpush1.bf16.msra.mxu0 %v1425
    %1434 = vmatprep.subr.bf16.mxu0 0
    %1435 = vmatpush1.bf16.msra.mxu0 %v1426
    %1436 = vmatprep.subr.bf16.mxu0 0
    %1437 = vmatpush1.bf16.msra.mxu0 0
    %1438 = vmatprep.subr.bf16.mxu0 0
    %1439 = vmatpush1.bf16.msra.mxu0 0
    %1440 = vmatprep.subr.bf16.mxu0 0
    %1441 = vmatpush1.bf16.msra.mxu0 0
    %1442 = vmatprep.subr.bf16.mxu0 0
    %1443 = vmatpush1.bf16.msra.mxu0 0
    %1444 = vmatprep.subr.bf16.mxu0 0
    %1445 = vmatpush1.bf16.msra.mxu0 0
    %1446 = vmatprep.subr.bf16.mxu0 0
    %1447 = vmatpush1.bf16.msra.mxu0 0
    %1448 = vmatprep.subr.bf16.mxu0 0
    %1449 = vmatpush1.bf16.msra.mxu0 0
    %1450 = vmatprep.subr.bf16.mxu0 0
    %1451 = vmatpush1.bf16.msra.mxu0 0
    %1452 = vmatprep.subr.bf16.mxu0 0
    %1453 = vmatpush1.bf16.msra.mxu0 0
    %1454 = vmatprep.subr.bf16.mxu0 0
    %1455 = vmatpush1.bf16.msra.mxu0 0
    %1456 = vmatprep.subr.bf16.mxu0 0
    %1457 = vmatpush1.bf16.msra.mxu0 0
    %1458 = vmatprep.subr.bf16.mxu0 0
    %1459 = vmatpush1.bf16.msra.mxu0 0
    %1460 = vmatprep.subr.bf16.mxu0 0
    %1461 = vmatpush1.bf16.msra.mxu0 0
    %1462 = vmatprep.subr.bf16.mxu0 0
    %1463 = vmatpush1.bf16.msra.mxu0 0
    %1464 = vmatprep.mubr.bf16.mxu0 0
    %1465 = vmatmul.mubr.bf16.gmra.mrb[0].mxu0 %v1430
    %v1466 = vpop.f32.mrb[0].mxu0
    %v1467 = vadd.f32 0.0, %v1466
    %v1468 = vpop.f32.mrb[0].mxu0
    %v1469 = vpop.f32.mrb[0].mxu0
    %v1470 = vpop.f32.mrb[0].mxu0
    %1471 = vdwg.mxu0
    %v1472 = vadd.f32 %v1409, %v1467
    %v1473 = vld [vmem:[%s5] sm:$0x1]
    %v1475 = vlaneseq
    %v1476 = vshrl.u32 %v1475, 7
    %v1477 = vsub.s32 0, %v1476
    %v1478 = vrot.slane %v1473, %v1477
    %v1480 = vadd.f32 %v1472, %v1478
    %v1481 = vmax.f32 %v1480, 0.0
    %v1482 = vpack.c.bf16 %v1481, %v1481
    %v1483 = vld [vmem:[%s6] sm:$0xf]
    %v1484 = vld [vmem:[%s6 + $0x4] sm:$0xf]
    %v1485 = vld [vmem:[%s6 + $0x8] sm:$0xf]
    %v1486 = vld [vmem:[%s6 + $0xc] sm:$0xf]
    %v1487 = vld [vmem:[%s6 + $0x10] sm:$0xf]
    %v1488 = vld [vmem:[%s6 + $0x14] sm:$0xf]
    %v1489 = vld [vmem:[%s6 + $0x18] sm:$0xf]
    %v1490 = vld [vmem:[%s6 + $0x1c] sm:$0xf]
    %v1491 = vld [vmem:[%s6 + $0x20] sm:$0xf]
    %v1501 = vunpack.c.l.b16 %v1483
    %v1502 = vunpack.c.l.b16 %v1484
    %v1503 = vunpack.c.l.b16 %v1485
    %v1504 = vunpack.c.l.b16 %v1486
    %v1505 = vunpack.c.l.b16 %v1487
    %v1506 = vunpack.c.l.b16 %v1488
    %v1507 = vunpack.c.l.b16 %v1489
    %v1508 = vunpack.c.l.b16 %v1490
    %v1509 = vunpack.c.l.b16 %v1491
    %v1510 = vpack.c.b16 %v1502, %v1501
    %v1511 = vpack.c.b16 %v1504, %v1503
    %v1512 = vpack.c.b16 %v1506, %v1505
    %v1513 = vpack.c.b16 %v1508, %v1507
    %v1514 = vpack.c.b16 %v1509, %v1509
    %vm1515 = vcmask 64512
    %v1517 = vsel %vm1515, %v1510, 0
    %v1520 = vsel %vm1515, %v1511, 0
    %v1523 = vsel %vm1515, %v1512, 0
    %v1526 = vsel %vm1515, %v1513, 0
    %v1529 = vsel %vm1515, %v1514, 0
    %vm1531 = vcmask 1043456
    %v1533 = vsel %vm1531, %v1482, 0
    %1535 = vmatprep.subr.bf16.mxu0 0
    %1536 = vmatpush1.bf16.msra.mxu0 %v1533
    %1537 = vmatprep.subr.bf16.mxu0 0
    %1538 = vmatpush1.bf16.msra.mxu0 0
    %1539 = vmatprep.subr.bf16.mxu0 0
    %1540 = vmatpush1.bf16.msra.mxu0 0
    %1541 = vmatprep.subr.bf16.mxu0 0
    %1542 = vmatpush1.bf16.msra.mxu0 0
    %1543 = vmatprep.subr.bf16.mxu0 0
    %1544 = vmatpush1.bf16.msra.mxu0 0
    %1545 = vmatprep.subr.bf16.mxu0 0
    %1546 = vmatpush1.bf16.msra.mxu0 0
    %1547 = vmatprep.subr.bf16.mxu0 0
    %1548 = vmatpush1.bf16.msra.mxu0 0
    %1549 = vmatprep.subr.bf16.mxu0 0
    %1550 = vmatpush1.bf16.msra.mxu0 0
    %1551 = vmatprep.subr.bf16.mxu0 0
    %1552 = vmatpush1.bf16.msra.mxu0 0
    %1553 = vmatprep.subr.bf16.mxu0 0
    %1554 = vmatpush1.bf16.msra.mxu0 0
    %1555 = vmatprep.subr.bf16.mxu0 0
    %1556 = vmatpush1.bf16.msra.mxu0 0
    %1557 = vmatprep.subr.bf16.mxu0 0
    %1558 = vmatpush1.bf16.msra.mxu0 0
    %1559 = vmatprep.subr.bf16.mxu0 0
    %1560 = vmatpush1.bf16.msra.mxu0 0
    %1561 = vmatprep.subr.bf16.mxu0 0
    %1562 = vmatpush1.bf16.msra.mxu0 0
    %1563 = vmatprep.subr.bf16.mxu0 0
    %1564 = vmatpush1.bf16.msra.mxu0 0
    %1565 = vmatprep.subr.bf16.mxu0 0
    %1566 = vmatpush1.bf16.msra.mxu0 0
    %1567 = vmatprep.mubr.bf16.mxu0 0
    %1568 = vmatmul.mubr.bf16.gmra.mrb[0].mxu0 %v1517
    %v1569 = vpop.f32.mrb[0].mxu0
    %v1570 = vadd.f32 0.0, %v1569
    %v1571 = vpop.f32.mrb[0].mxu0
    %v1572 = vpop.f32.mrb[0].mxu0
    %v1573 = vadd.f32 0.0, %v1572
    %v1574 = vpop.f32.mrb[0].mxu0
    %1575 = vmatprep.mubr.bf16.mxu0 0
    %1576 = vmatmul.mubr.bf16.gmra.mrb[0].mxu0 %v1520
    %v1577 = vpop.f32.mrb[0].mxu0
    %v1578 = vadd.f32 0.0, %v1577
    %v1579 = vpop.f32.mrb[0].mxu0
    %v1580 = vpop.f32.mrb[0].mxu0
    %v1581 = vadd.f32 0.0, %v1580
    %v1582 = vpop.f32.mrb[0].mxu0
    %1583 = vmatprep.mubr.bf16.mxu0 0
    %1584 = vmatmul.mubr.bf16.gmra.mrb[0].mxu0 %v1523
    %v1585 = vpop.f32.mrb[0].mxu0
    %v1586 = vadd.f32 0.0, %v1585
    %v1587 = vpop.f32.mrb[0].mxu0
    %v1588 = vpop.f32.mrb[0].mxu0
    %v1589 = vadd.f32 0.0, %v1588
    %v1590 = vpop.f32.mrb[0].mxu0
    %1591 = vmatprep.mubr.bf16.mxu0 0
    %1592 = vmatmul.mubr.bf16.gmra.mrb[0].mxu0 %v1526
    %v1593 = vpop.f32.mrb[0].mxu0
    %v1594 = vadd.f32 0.0, %v1593
    %v1595 = vpop.f32.mrb[0].mxu0
    %v1596 = vpop.f32.mrb[0].mxu0
    %v1597 = vadd.f32 0.0, %v1596
    %v1598 = vpop.f32.mrb[0].mxu0
    %1599 = vmatprep.mubr.bf16.mxu0 0
    %1600 = vmatmul.mubr.bf16.gmra.mrb[0].mxu0 %v1529
    %v1601 = vpop.f32.mrb[0].mxu0
    %v1602 = vadd.f32 0.0, %v1601
    %v1603 = vpop.f32.mrb[0].mxu0
    %v1604 = vpop.f32.mrb[0].mxu0
    %v1605 = vpop.f32.mrb[0].mxu0
    %1606 = vdwg.mxu0
    %v1607 = vpack.c.bf16 %v1573, %v1570
    %v1608 = vpack.c.bf16 %v1581, %v1578
    %v1609 = vpack.c.bf16 %v1589, %v1586
    %v1610 = vpack.c.bf16 %v1597, %v1594
    %v1611 = vpack.c.bf16 %v1602, %v1602
    %v1612 = vld [vmem:[%s7] sm:$0xf]
    %v1613 = vld [vmem:[%s7 + $0x4] sm:$0xf]
    %v1614 = vld [vmem:[%s7 + $0x8] sm:$0xf]
    %v1615 = vld [vmem:[%s7 + $0xc] sm:$0xf]
    %v1616 = vld [vmem:[%s7 + $0x10] sm:$0xf]
    %v1617 = vld [vmem:[%s7 + $0x14] sm:$0xf]
    %v1618 = vld [vmem:[%s7 + $0x18] sm:$0xf]
    %v1619 = vld [vmem:[%s7 + $0x1c] sm:$0xf]
    %s1620 = scalar_lea.vmem %s7, 32
    %v1621 = vld [vmem:[%s1620] sm:$0xf]
    %v1622 = vld [vmem:[%s1620 + $0x4] sm:$0xf]
    %v1623 = vld [vmem:[%s1620 + $0x8] sm:$0xf]
    %v1624 = vld [vmem:[%s1620 + $0xc] sm:$0xf]
    %v1625 = vld [vmem:[%s1620 + $0x10] sm:$0xf]
    %v1626 = vld [vmem:[%s1620 + $0x14] sm:$0xf]
    %v1627 = vld [vmem:[%s1620 + $0x18] sm:$0xf]
    %v1628 = vld [vmem:[%s1620 + $0x1c] sm:$0xf]
    %v1630 = vrot.slane %v1607, 4
    %v1639 = vunpack.c.l.b16 %v1621
    %v1640 = vunpack.c.l.b16 %v1622
    %v1641 = vunpack.c.l.b16 %v1623
    %v1642 = vunpack.c.l.b16 %v1624
    %v1643 = vunpack.c.l.b16 %v1625
    %v1644 = vunpack.c.l.b16 %v1626
    %v1645 = vunpack.c.l.b16 %v1627
    %v1646 = vunpack.c.l.b16 %v1628
    %v1647 = vpack.c.b16 %v1640, %v1639
    %v1648 = vpack.c.b16 %v1642, %v1641
    %v1649 = vpack.c.b16 %v1644, %v1643
    %v1650 = vpack.c.b16 %v1646, %v1645
    %vm1655 = vcmask 523264
    %v1657 = vsel %vm1655, %v1630, 0
    %1659 = vmatprep.subr.bf16.mxu0 0
    %1660 = vmatpush1.bf16.msra.mxu0 %v1647
    %1661 = vmatprep.subr.bf16.mxu0 0
    %1662 = vmatpush1.bf16.msra.mxu0 %v1648
    %1663 = vmatprep.subr.bf16.mxu0 0
    %1664 = vmatpush1.bf16.msra.mxu0 %v1649
    %1665 = vmatprep.subr.bf16.mxu0 0
    %1666 = vmatpush1.bf16.msra.mxu0 %v1650
    %1667 = vmatprep.subr.bf16.mxu0 0
    %1668 = vmatpush1.bf16.msra.mxu0 0
    %1669 = vmatprep.subr.bf16.mxu0 0
    %1670 = vmatpush1.bf16.msra.mxu0 0
    %1671 = vmatprep.subr.bf16.mxu0 0
    %1672 = vmatpush1.bf16.msra.mxu0 0
    %1673 = vmatprep.subr.bf16.mxu0 0
    %1674 = vmatpush1.bf16.msra.mxu0 0
    %1675 = vmatprep.subr.bf16.mxu0 0
    %1676 = vmatpush1.bf16.msra.mxu0 0
    %1677 = vmatprep.subr.bf16.mxu0 0
    %1678 = vmatpush1.bf16.msra.mxu0 0
    %1679 = vmatprep.subr.bf16.mxu0 0
    %1680 = vmatpush1.bf16.msra.mxu0 0
    %1681 = vmatprep.subr.bf16.mxu0 0
    %1682 = vmatpush1.bf16.msra.mxu0 0
    %1683 = vmatprep.subr.bf16.mxu0 0
    %1684 = vmatpush1.bf16.msra.mxu0 0
    %1685 = vmatprep.subr.bf16.mxu0 0
    %1686 = vmatpush1.bf16.msra.mxu0 0
    %1687 = vmatprep.subr.bf16.mxu0 0
    %1688 = vmatpush1.bf16.msra.mxu0 0
    %1689 = vmatprep.subr.bf16.mxu0 0
    %1690 = vmatpush1.bf16.msra.mxu0 0
    %1691 = vmatprep.mubr.bf16.mxu0 0
    %1692 = vmatmul.mubr.bf16.gmra.mrb[0].mxu0 %v1657
    %v1693 = vpop.f32.mrb[0].mxu0
    %v1694 = vadd.f32 0.0, %v1693
    %v1695 = vpop.f32.mrb[0].mxu0
    %v1696 = vpop.f32.mrb[0].mxu0
    %v1697 = vpop.f32.mrb[0].mxu0
    %1698 = vdwg.mxu0
    %v1707 = vunpack.c.l.b16 %v1612
    %v1708 = vunpack.c.l.b16 %v1613
    %v1709 = vunpack.c.l.b16 %v1614
    %v1710 = vunpack.c.l.b16 %v1615
    %v1711 = vunpack.c.l.b16 %v1616
    %v1712 = vunpack.c.l.b16 %v1617
    %v1713 = vunpack.c.l.b16 %v1618
    %v1714 = vunpack.c.l.b16 %v1619
    %v1715 = vpack.c.b16 %v1708, %v1707
    %v1716 = vpack.c.b16 %v1710, %v1709
    %v1717 = vpack.c.b16 %v1712, %v1711
    %v1718 = vpack.c.b16 %v1714, %v1713
    %v1724 = vsel %vm1655, %v1607, 0
    %1726 = vmatprep.subr.bf16.mxu0 0
    %1727 = vmatpush1.bf16.msra.mxu0 %v1715
    %1728 = vmatprep.subr.bf16.mxu0 0
    %1729 = vmatpush1.bf16.msra.mxu0 %v1716
    %1730 = vmatprep.subr.bf16.mxu0 0
    %1731 = vmatpush1.bf16.msra.mxu0 %v1717
    %1732 = vmatprep.subr.bf16.mxu0 0
    %1733 = vmatpush1.bf16.msra.mxu0 %v1718
    %1734 = vmatprep.subr.bf16.mxu0 0
    %1735 = vmatpush1.bf16.msra.mxu0 0
    %1736 = vmatprep.subr.bf16.mxu0 0
    %1737 = vmatpush1.bf16.msra.mxu0 0
    %1738 = vmatprep.subr.bf16.mxu0 0
    %1739 = vmatpush1.bf16.msra.mxu0 0
    %1740 = vmatprep.subr.bf16.mxu0 0
    %1741 = vmatpush1.bf16.msra.mxu0 0
    %1742 = vmatprep.subr.bf16.mxu0 0
    %1743 = vmatpush1.bf16.msra.mxu0 0
    %1744 = vmatprep.subr.bf16.mxu0 0
    %1745 = vmatpush1.bf16.msra.mxu0 0
    %1746 = vmatprep.subr.bf16.mxu0 0
    %1747 = vmatpush1.bf16.msra.mxu0 0
    %1748 = vmatprep.subr.bf16.mxu0 0
    %1749 = vmatpush1.bf16.msra.mxu0 0
    %1750 = vmatprep.subr.bf16.mxu0 0
    %1751 = vmatpush1.bf16.msra.mxu0 0
    %1752 = vmatprep.subr.bf16.mxu0 0
    %1753 = vmatpush1.bf16.msra.mxu0 0
    %1754 = vmatprep.subr.bf16.mxu0 0
    %1755 = vmatpush1.bf16.msra.mxu0 0
    %1756 = vmatprep.subr.bf16.mxu0 0
    %1757 = vmatpush1.bf16.msra.mxu0 0
    %1758 = vmatprep.mubr.bf16.mxu0 0
    %1759 = vmatmul.mubr.bf16.gmra.mrb[0].mxu0 %v1724
    %v1760 = vpop.f32.mrb[0].mxu0
    %v1761 = vadd.f32 %v1694, %v1760
    %v1762 = vpop.f32.mrb[0].mxu0
    %v1763 = vpop.f32.mrb[0].mxu0
    %v1764 = vpop.f32.mrb[0].mxu0
    %1765 = vdwg.mxu0
    %s1766 = scalar_lea.vmem %s7, 64
    %v1767 = vld [vmem:[%s1766] sm:$0xf]
    %v1768 = vld [vmem:[%s1766 + $0x4] sm:$0xf]
    %v1769 = vld [vmem:[%s1766 + $0x8] sm:$0xf]
    %v1770 = vld [vmem:[%s1766 + $0xc] sm:$0xf]
    %v1771 = vld [vmem:[%s1766 + $0x10] sm:$0xf]
    %v1772 = vld [vmem:[%s1766 + $0x14] sm:$0xf]
    %v1773 = vld [vmem:[%s1766 + $0x18] sm:$0xf]
    %v1774 = vld [vmem:[%s1766 + $0x1c] sm:$0xf]
    %v1783 = vunpack.c.l.b16 %v1767
    %v1784 = vunpack.c.l.b16 %v1768
    %v1785 = vunpack.c.l.b16 %v1769
    %v1786 = vunpack.c.l.b16 %v1770
    %v1787 = vunpack.c.l.b16 %v1771
    %v1788 = vunpack.c.l.b16 %v1772
    %v1789 = vunpack.c.l.b16 %v1773
    %v1790 = vunpack.c.l.b16 %v1774
    %v1791 = vpack.c.b16 %v1784, %v1783
    %v1792 = vpack.c.b16 %v1786, %v1785
    %v1793 = vpack.c.b16 %v1788, %v1787
    %v1794 = vpack.c.b16 %v1790, %v1789
    %v1800 = vsel %vm1655, %v1608, 0
    %1802 = vmatprep.subr.bf16.mxu0 0
    %1803 = vmatpush1.bf16.msra.mxu0 %v1791
    %1804 = vmatprep.subr.bf16.mxu0 0
    %1805 = vmatpush1.bf16.msra.mxu0 %v1792
    %1806 = vmatprep.subr.bf16.mxu0 0
    %1807 = vmatpush1.bf16.msra.mxu0 %v1793
    %1808 = vmatprep.subr.bf16.mxu0 0
    %1809 = vmatpush1.bf16.msra.mxu0 %v1794
    %1810 = vmatprep.subr.bf16.mxu0 0
    %1811 = vmatpush1.bf16.msra.mxu0 0
    %1812 = vmatprep.subr.bf16.mxu0 0
    %1813 = vmatpush1.bf16.msra.mxu0 0
    %1814 = vmatprep.subr.bf16.mxu0 0
    %1815 = vmatpush1.bf16.msra.mxu0 0
    %1816 = vmatprep.subr.bf16.mxu0 0
    %1817 = vmatpush1.bf16.msra.mxu0 0
    %1818 = vmatprep.subr.bf16.mxu0 0
    %1819 = vmatpush1.bf16.msra.mxu0 0
    %1820 = vmatprep.subr.bf16.mxu0 0
    %1821 = vmatpush1.bf16.msra.mxu0 0
    %1822 = vmatprep.subr.bf16.mxu0 0
    %1823 = vmatpush1.bf16.msra.mxu0 0
    %1824 = vmatprep.subr.bf16.mxu0 0
    %1825 = vmatpush1.bf16.msra.mxu0 0
    %1826 = vmatprep.subr.bf16.mxu0 0
    %1827 = vmatpush1.bf16.msra.mxu0 0
    %1828 = vmatprep.subr.bf16.mxu0 0
    %1829 = vmatpush1.bf16.msra.mxu0 0
    %1830 = vmatprep.subr.bf16.mxu0 0
    %1831 = vmatpush1.bf16.msra.mxu0 0
    %1832 = vmatprep.subr.bf16.mxu0 0
    %1833 = vmatpush1.bf16.msra.mxu0 0
    %1834 = vmatprep.mubr.bf16.mxu0 0
    %1835 = vmatmul.mubr.bf16.gmra.mrb[0].mxu0 %v1800
    %v1836 = vpop.f32.mrb[0].mxu0
    %v1837 = vadd.f32 0.0, %v1836
    %v1838 = vpop.f32.mrb[0].mxu0
    %v1839 = vpop.f32.mrb[0].mxu0
    %v1840 = vpop.f32.mrb[0].mxu0
    %1841 = vdwg.mxu0
    %v1842 = vadd.f32 %v1761, %v1837
    %s1843 = scalar_lea.vmem %s7, 96
    %v1844 = vld [vmem:[%s1843] sm:$0xf]
    %v1845 = vld [vmem:[%s1843 + $0x4] sm:$0xf]
    %v1846 = vld [vmem:[%s1843 + $0x8] sm:$0xf]
    %v1847 = vld [vmem:[%s1843 + $0xc] sm:$0xf]
    %v1848 = vld [vmem:[%s1843 + $0x10] sm:$0xf]
    %v1849 = vld [vmem:[%s1843 + $0x14] sm:$0xf]
    %v1850 = vld [vmem:[%s1843 + $0x18] sm:$0xf]
    %v1851 = vld [vmem:[%s1843 + $0x1c] sm:$0xf]
    %v1853 = vrot.slane %v1608, 4
    %v1862 = vunpack.c.l.b16 %v1844
    %v1863 = vunpack.c.l.b16 %v1845
    %v1864 = vunpack.c.l.b16 %v1846
    %v1865 = vunpack.c.l.b16 %v1847
    %v1866 = vunpack.c.l.b16 %v1848
    %v1867 = vunpack.c.l.b16 %v1849
    %v1868 = vunpack.c.l.b16 %v1850
    %v1869 = vunpack.c.l.b16 %v1851
    %v1870 = vpack.c.b16 %v1863, %v1862
    %v1871 = vpack.c.b16 %v1865, %v1864
    %v1872 = vpack.c.b16 %v1867, %v1866
    %v1873 = vpack.c.b16 %v1869, %v1868
    %v1879 = vsel %vm1655, %v1853, 0
    %1881 = vmatprep.subr.bf16.mxu0 0
    %1882 = vmatpush1.bf16.msra.mxu0 %v1870
    %1883 = vmatprep.subr.bf16.mxu0 0
    %1884 = vmatpush1.bf16.msra.mxu0 %v1871
    %1885 = vmatprep.subr.bf16.mxu0 0
    %1886 = vmatpush1.bf16.msra.mxu0 %v1872
    %1887 = vmatprep.subr.bf16.mxu0 0
    %1888 = vmatpush1.bf16.msra.mxu0 %v1873
    %1889 = vmatprep.subr.bf16.mxu0 0
    %1890 = vmatpush1.bf16.msra.mxu0 0
    %1891 = vmatprep.subr.bf16.mxu0 0
    %1892 = vmatpush1.bf16.msra.mxu0 0
    %1893 = vmatprep.subr.bf16.mxu0 0
    %1894 = vmatpush1.bf16.msra.mxu0 0
    %1895 = vmatprep.subr.bf16.mxu0 0
    %1896 = vmatpush1.bf16.msra.mxu0 0
    %1897 = vmatprep.subr.bf16.mxu0 0
    %1898 = vmatpush1.bf16.msra.mxu0 0
    %1899 = vmatprep.subr.bf16.mxu0 0
    %1900 = vmatpush1.bf16.msra.mxu0 0
    %1901 = vmatprep.subr.bf16.mxu0 0
    %1902 = vmatpush1.bf16.msra.mxu0 0
    %1903 = vmatprep.subr.bf16.mxu0 0
    %1904 = vmatpush1.bf16.msra.mxu0 0
    %1905 = vmatprep.subr.bf16.mxu0 0
    %1906 = vmatpush1.bf16.msra.mxu0 0
    %1907 = vmatprep.subr.bf16.mxu0 0
    %1908 = vmatpush1.bf16.msra.mxu0 0
    %1909 = vmatprep.subr.bf16.mxu0 0
    %1910 = vmatpush1.bf16.msra.mxu0 0
    %1911 = vmatprep.subr.bf16.mxu0 0
    %1912 = vmatpush1.bf16.msra.mxu0 0
    %1913 = vmatprep.mubr.bf16.mxu0 0
    %1914 = vmatmul.mubr.bf16.gmra.mrb[0].mxu0 %v1879
    %v1915 = vpop.f32.mrb[0].mxu0
    %v1916 = vadd.f32 0.0, %v1915
    %v1917 = vpop.f32.mrb[0].mxu0
    %v1918 = vpop.f32.mrb[0].mxu0
    %v1919 = vpop.f32.mrb[0].mxu0
    %1920 = vdwg.mxu0
    %v1921 = vadd.f32 %v1842, %v1916
    %s1922 = scalar_lea.vmem %s7, 128
    %v1923 = vld [vmem:[%s1922] sm:$0xf]
    %v1924 = vld [vmem:[%s1922 + $0x4] sm:$0xf]
    %v1925 = vld [vmem:[%s1922 + $0x8] sm:$0xf]
    %v1926 = vld [vmem:[%s1922 + $0xc] sm:$0xf]
    %v1927 = vld [vmem:[%s1922 + $0x10] sm:$0xf]
    %v1928 = vld [vmem:[%s1922 + $0x14] sm:$0xf]
    %v1929 = vld [vmem:[%s1922 + $0x18] sm:$0xf]
    %v1930 = vld [vmem:[%s1922 + $0x1c] sm:$0xf]
    %v1939 = vunpack.c.l.b16 %v1923
    %v1940 = vunpack.c.l.b16 %v1924
    %v1941 = vunpack.c.l.b16 %v1925
    %v1942 = vunpack.c.l.b16 %v1926
    %v1943 = vunpack.c.l.b16 %v1927
    %v1944 = vunpack.c.l.b16 %v1928
    %v1945 = vunpack.c.l.b16 %v1929
    %v1946 = vunpack.c.l.b16 %v1930
    %v1947 = vpack.c.b16 %v1940, %v1939
    %v1948 = vpack.c.b16 %v1942, %v1941
    %v1949 = vpack.c.b16 %v1944, %v1943
    %v1950 = vpack.c.b16 %v1946, %v1945
    %v1956 = vsel %vm1655, %v1609, 0
    %1958 = vmatprep.subr.bf16.mxu0 0
    %1959 = vmatpush1.bf16.msra.mxu0 %v1947
    %1960 = vmatprep.subr.bf16.mxu0 0
    %1961 = vmatpush1.bf16.msra.mxu0 %v1948
    %1962 = vmatprep.subr.bf16.mxu0 0
    %1963 = vmatpush1.bf16.msra.mxu0 %v1949
    %1964 = vmatprep.subr.bf16.mxu0 0
    %1965 = vmatpush1.bf16.msra.mxu0 %v1950
    %1966 = vmatprep.subr.bf16.mxu0 0
    %1967 = vmatpush1.bf16.msra.mxu0 0
    %1968 = vmatprep.subr.bf16.mxu0 0
    %1969 = vmatpush1.bf16.msra.mxu0 0
    %1970 = vmatprep.subr.bf16.mxu0 0
    %1971 = vmatpush1.bf16.msra.mxu0 0
    %1972 = vmatprep.subr.bf16.mxu0 0
    %1973 = vmatpush1.bf16.msra.mxu0 0
    %1974 = vmatprep.subr.bf16.mxu0 0
    %1975 = vmatpush1.bf16.msra.mxu0 0
    %1976 = vmatprep.subr.bf16.mxu0 0
    %1977 = vmatpush1.bf16.msra.mxu0 0
    %1978 = vmatprep.subr.bf16.mxu0 0
    %1979 = vmatpush1.bf16.msra.mxu0 0
    %1980 = vmatprep.subr.bf16.mxu0 0
    %1981 = vmatpush1.bf16.msra.mxu0 0
    %1982 = vmatprep.subr.bf16.mxu0 0
    %1983 = vmatpush1.bf16.msra.mxu0 0
    %1984 = vmatprep.subr.bf16.mxu0 0
    %1985 = vmatpush1.bf16.msra.mxu0 0
    %1986 = vmatprep.subr.bf16.mxu0 0
    %1987 = vmatpush1.bf16.msra.mxu0 0
    %1988 = vmatprep.subr.bf16.mxu0 0
    %1989 = vmatpush1.bf16.msra.mxu0 0
    %1990 = vmatprep.mubr.bf16.mxu0 0
    %1991 = vmatmul.mubr.bf16.gmra.mrb[0].mxu0 %v1956
    %v1992 = vpop.f32.mrb[0].mxu0
    %v1993 = vadd.f32 0.0, %v1992
    %v1994 = vpop.f32.mrb[0].mxu0
    %v1995 = vpop.f32.mrb[0].mxu0
    %v1996 = vpop.f32.mrb[0].mxu0
    %1997 = vdwg.mxu0
    %v1998 = vadd.f32 %v1921, %v1993
    %s1999 = scalar_lea.vmem %s7, 160
    %v2000 = vld [vmem:[%s1999] sm:$0xf]
    %v2001 = vld [vmem:[%s1999 + $0x4] sm:$0xf]
    %v2002 = vld [vmem:[%s1999 + $0x8] sm:$0xf]
    %v2003 = vld [vmem:[%s1999 + $0xc] sm:$0xf]
    %v2004 = vld [vmem:[%s1999 + $0x10] sm:$0xf]
    %v2005 = vld [vmem:[%s1999 + $0x14] sm:$0xf]
    %v2006 = vld [vmem:[%s1999 + $0x18] sm:$0xf]
    %v2007 = vld [vmem:[%s1999 + $0x1c] sm:$0xf]
    %v2009 = vrot.slane %v1609, 4
    %v2018 = vunpack.c.l.b16 %v2000
    %v2019 = vunpack.c.l.b16 %v2001
    %v2020 = vunpack.c.l.b16 %v2002
    %v2021 = vunpack.c.l.b16 %v2003
    %v2022 = vunpack.c.l.b16 %v2004
    %v2023 = vunpack.c.l.b16 %v2005
    %v2024 = vunpack.c.l.b16 %v2006
    %v2025 = vunpack.c.l.b16 %v2007
    %v2026 = vpack.c.b16 %v2019, %v2018
    %v2027 = vpack.c.b16 %v2021, %v2020
    %v2028 = vpack.c.b16 %v2023, %v2022
    %v2029 = vpack.c.b16 %v2025, %v2024
    %v2035 = vsel %vm1655, %v2009, 0
    %2037 = vmatprep.subr.bf16.mxu0 0
    %2038 = vmatpush1.bf16.msra.mxu0 %v2026
    %2039 = vmatprep.subr.bf16.mxu0 0
    %2040 = vmatpush1.bf16.msra.mxu0 %v2027
    %2041 = vmatprep.subr.bf16.mxu0 0
    %2042 = vmatpush1.bf16.msra.mxu0 %v2028
    %2043 = vmatprep.subr.bf16.mxu0 0
    %2044 = vmatpush1.bf16.msra.mxu0 %v2029
    %2045 = vmatprep.subr.bf16.mxu0 0
    %2046 = vmatpush1.bf16.msra.mxu0 0
    %2047 = vmatprep.subr.bf16.mxu0 0
    %2048 = vmatpush1.bf16.msra.mxu0 0
    %2049 = vmatprep.subr.bf16.mxu0 0
    %2050 = vmatpush1.bf16.msra.mxu0 0
    %2051 = vmatprep.subr.bf16.mxu0 0
    %2052 = vmatpush1.bf16.msra.mxu0 0
    %2053 = vmatprep.subr.bf16.mxu0 0
    %2054 = vmatpush1.bf16.msra.mxu0 0
    %2055 = vmatprep.subr.bf16.mxu0 0
    %2056 = vmatpush1.bf16.msra.mxu0 0
    %2057 = vmatprep.subr.bf16.mxu0 0
    %2058 = vmatpush1.bf16.msra.mxu0 0
    %2059 = vmatprep.subr.bf16.mxu0 0
    %2060 = vmatpush1.bf16.msra.mxu0 0
    %2061 = vmatprep.subr.bf16.mxu0 0
    %2062 = vmatpush1.bf16.msra.mxu0 0
    %2063 = vmatprep.subr.bf16.mxu0 0
    %2064 = vmatpush1.bf16.msra.mxu0 0
    %2065 = vmatprep.subr.bf16.mxu0 0
    %2066 = vmatpush1.bf16.msra.mxu0 0
    %2067 = vmatprep.subr.bf16.mxu0 0
    %2068 = vmatpush1.bf16.msra.mxu0 0
    %2069 = vmatprep.mubr.bf16.mxu0 0
    %2070 = vmatmul.mubr.bf16.gmra.mrb[0].mxu0 %v2035
    %v2071 = vpop.f32.mrb[0].mxu0
    %v2072 = vadd.f32 0.0, %v2071
    %v2073 = vpop.f32.mrb[0].mxu0
    %v2074 = vpop.f32.mrb[0].mxu0
    %v2075 = vpop.f32.mrb[0].mxu0
    %2076 = vdwg.mxu0
    %v2077 = vadd.f32 %v1998, %v2072
    %s2078 = scalar_lea.vmem %s7, 192
    %v2079 = vld [vmem:[%s2078] sm:$0xf]
    %v2080 = vld [vmem:[%s2078 + $0x4] sm:$0xf]
    %v2081 = vld [vmem:[%s2078 + $0x8] sm:$0xf]
    %v2082 = vld [vmem:[%s2078 + $0xc] sm:$0xf]
    %v2083 = vld [vmem:[%s2078 + $0x10] sm:$0xf]
    %v2084 = vld [vmem:[%s2078 + $0x14] sm:$0xf]
    %v2085 = vld [vmem:[%s2078 + $0x18] sm:$0xf]
    %v2086 = vld [vmem:[%s2078 + $0x1c] sm:$0xf]
    %v2095 = vunpack.c.l.b16 %v2079
    %v2096 = vunpack.c.l.b16 %v2080
    %v2097 = vunpack.c.l.b16 %v2081
    %v2098 = vunpack.c.l.b16 %v2082
    %v2099 = vunpack.c.l.b16 %v2083
    %v2100 = vunpack.c.l.b16 %v2084
    %v2101 = vunpack.c.l.b16 %v2085
    %v2102 = vunpack.c.l.b16 %v2086
    %v2103 = vpack.c.b16 %v2096, %v2095
    %v2104 = vpack.c.b16 %v2098, %v2097
    %v2105 = vpack.c.b16 %v2100, %v2099
    %v2106 = vpack.c.b16 %v2102, %v2101
    %v2112 = vsel %vm1655, %v1610, 0
    %2114 = vmatprep.subr.bf16.mxu0 0
    %2115 = vmatpush1.bf16.msra.mxu0 %v2103
    %2116 = vmatprep.subr.bf16.mxu0 0
    %2117 = vmatpush1.bf16.msra.mxu0 %v2104
    %2118 = vmatprep.subr.bf16.mxu0 0
    %2119 = vmatpush1.bf16.msra.mxu0 %v2105
    %2120 = vmatprep.subr.bf16.mxu0 0
    %2121 = vmatpush1.bf16.msra.mxu0 %v2106
    %2122 = vmatprep.subr.bf16.mxu0 0
    %2123 = vmatpush1.bf16.msra.mxu0 0
    %2124 = vmatprep.subr.bf16.mxu0 0
    %2125 = vmatpush1.bf16.msra.mxu0 0
    %2126 = vmatprep.subr.bf16.mxu0 0
    %2127 = vmatpush1.bf16.msra.mxu0 0
    %2128 = vmatprep.subr.bf16.mxu0 0
    %2129 = vmatpush1.bf16.msra.mxu0 0
    %2130 = vmatprep.subr.bf16.mxu0 0
    %2131 = vmatpush1.bf16.msra.mxu0 0
    %2132 = vmatprep.subr.bf16.mxu0 0
    %2133 = vmatpush1.bf16.msra.mxu0 0
    %2134 = vmatprep.subr.bf16.mxu0 0
    %2135 = vmatpush1.bf16.msra.mxu0 0
    %2136 = vmatprep.subr.bf16.mxu0 0
    %2137 = vmatpush1.bf16.msra.mxu0 0
    %2138 = vmatprep.subr.bf16.mxu0 0
    %2139 = vmatpush1.bf16.msra.mxu0 0
    %2140 = vmatprep.subr.bf16.mxu0 0
    %2141 = vmatpush1.bf16.msra.mxu0 0
    %2142 = vmatprep.subr.bf16.mxu0 0
    %2143 = vmatpush1.bf16.msra.mxu0 0
    %2144 = vmatprep.subr.bf16.mxu0 0
    %2145 = vmatpush1.bf16.msra.mxu0 0
    %2146 = vmatprep.mubr.bf16.mxu0 0
    %2147 = vmatmul.mubr.bf16.gmra.mrb[0].mxu0 %v2112
    %v2148 = vpop.f32.mrb[0].mxu0
    %v2149 = vadd.f32 0.0, %v2148
    %v2150 = vpop.f32.mrb[0].mxu0
    %v2151 = vpop.f32.mrb[0].mxu0
    %v2152 = vpop.f32.mrb[0].mxu0
    %2153 = vdwg.mxu0
    %v2154 = vadd.f32 %v2077, %v2149
    %s2155 = scalar_lea.vmem %s7, 224
    %v2156 = vld [vmem:[%s2155] sm:$0xf]
    %v2157 = vld [vmem:[%s2155 + $0x4] sm:$0xf]
    %v2158 = vld [vmem:[%s2155 + $0x8] sm:$0xf]
    %v2159 = vld [vmem:[%s2155 + $0xc] sm:$0xf]
    %v2160 = vld [vmem:[%s2155 + $0x10] sm:$0xf]
    %v2161 = vld [vmem:[%s2155 + $0x14] sm:$0xf]
    %v2162 = vld [vmem:[%s2155 + $0x18] sm:$0xf]
    %v2163 = vld [vmem:[%s2155 + $0x1c] sm:$0xf]
    %v2165 = vrot.slane %v1610, 4
    %v2174 = vunpack.c.l.b16 %v2156
    %v2175 = vunpack.c.l.b16 %v2157
    %v2176 = vunpack.c.l.b16 %v2158
    %v2177 = vunpack.c.l.b16 %v2159
    %v2178 = vunpack.c.l.b16 %v2160
    %v2179 = vunpack.c.l.b16 %v2161
    %v2180 = vunpack.c.l.b16 %v2162
    %v2181 = vunpack.c.l.b16 %v2163
    %v2182 = vpack.c.b16 %v2175, %v2174
    %v2183 = vpack.c.b16 %v2177, %v2176
    %v2184 = vpack.c.b16 %v2179, %v2178
    %v2185 = vpack.c.b16 %v2181, %v2180
    %v2191 = vsel %vm1655, %v2165, 0
    %2193 = vmatprep.subr.bf16.mxu0 0
    %2194 = vmatpush1.bf16.msra.mxu0 %v2182
    %2195 = vmatprep.subr.bf16.mxu0 0
    %2196 = vmatpush1.bf16.msra.mxu0 %v2183
    %2197 = vmatprep.subr.bf16.mxu0 0
    %2198 = vmatpush1.bf16.msra.mxu0 %v2184
    %2199 = vmatprep.subr.bf16.mxu0 0
    %2200 = vmatpush1.bf16.msra.mxu0 %v2185
    %2201 = vmatprep.subr.bf16.mxu0 0
    %2202 = vmatpush1.bf16.msra.mxu0 0
    %2203 = vmatprep.subr.bf16.mxu0 0
    %2204 = vmatpush1.bf16.msra.mxu0 0
    %2205 = vmatprep.subr.bf16.mxu0 0
    %2206 = vmatpush1.bf16.msra.mxu0 0
    %2207 = vmatprep.subr.bf16.mxu0 0
    %2208 = vmatpush1.bf16.msra.mxu0 0
    %2209 = vmatprep.subr.bf16.mxu0 0
    %2210 = vmatpush1.bf16.msra.mxu0 0
    %2211 = vmatprep.subr.bf16.mxu0 0
    %2212 = vmatpush1.bf16.msra.mxu0 0
    %2213 = vmatprep.subr.bf16.mxu0 0
    %2214 = vmatpush1.bf16.msra.mxu0 0
    %2215 = vmatprep.subr.bf16.mxu0 0
    %2216 = vmatpush1.bf16.msra.mxu0 0
    %2217 = vmatprep.subr.bf16.mxu0 0
    %2218 = vmatpush1.bf16.msra.mxu0 0
    %2219 = vmatprep.subr.bf16.mxu0 0
    %2220 = vmatpush1.bf16.msra.mxu0 0
    %2221 = vmatprep.subr.bf16.mxu0 0
    %2222 = vmatpush1.bf16.msra.mxu0 0
    %2223 = vmatprep.subr.bf16.mxu0 0
    %2224 = vmatpush1.bf16.msra.mxu0 0
    %2225 = vmatprep.mubr.bf16.mxu0 0
    %2226 = vmatmul.mubr.bf16.gmra.mrb[0].mxu0 %v2191
    %v2227 = vpop.f32.mrb[0].mxu0
    %v2228 = vadd.f32 0.0, %v2227
    %v2229 = vpop.f32.mrb[0].mxu0
    %v2230 = vpop.f32.mrb[0].mxu0
    %v2231 = vpop.f32.mrb[0].mxu0
    %2232 = vdwg.mxu0
    %v2233 = vadd.f32 %v2154, %v2228
    %s2234 = scalar_lea.vmem %s7, 256
    %v2235 = vld [vmem:[%s2234] sm:$0xf]
    %v2236 = vld [vmem:[%s2234 + $0x4] sm:$0xf]
    %v2237 = vld [vmem:[%s2234 + $0x8] sm:$0xf]
    %v2238 = vld [vmem:[%s2234 + $0xc] sm:$0xf]
    %v2239 = vld [vmem:[%s2234 + $0x10] sm:$0xf]
    %v2240 = vld [vmem:[%s2234 + $0x14] sm:$0xf]
    %v2241 = vld [vmem:[%s2234 + $0x18] sm:$0xf]
    %v2242 = vld [vmem:[%s2234 + $0x1c] sm:$0xf]
    %v2251 = vunpack.c.l.b16 %v2235
    %v2252 = vunpack.c.l.b16 %v2236
    %v2253 = vunpack.c.l.b16 %v2237
    %v2254 = vunpack.c.l.b16 %v2238
    %v2255 = vunpack.c.l.b16 %v2239
    %v2256 = vunpack.c.l.b16 %v2240
    %v2257 = vunpack.c.l.b16 %v2241
    %v2258 = vunpack.c.l.b16 %v2242
    %v2259 = vpack.c.b16 %v2252, %v2251
    %v2260 = vpack.c.b16 %v2254, %v2253
    %v2261 = vpack.c.b16 %v2256, %v2255
    %v2262 = vpack.c.b16 %v2258, %v2257
    %v2268 = vsel %vm1655, %v1611, 0
    %2270 = vmatprep.subr.bf16.mxu0 0
    %2271 = vmatpush1.bf16.msra.mxu0 %v2259
    %2272 = vmatprep.subr.bf16.mxu0 0
    %2273 = vmatpush1.bf16.msra.mxu0 %v2260
    %2274 = vmatprep.subr.bf16.mxu0 0
    %2275 = vmatpush1.bf16.msra.mxu0 %v2261
    %2276 = vmatprep.subr.bf16.mxu0 0
    %2277 = vmatpush1.bf16.msra.mxu0 %v2262
    %2278 = vmatprep.subr.bf16.mxu0 0
    %2279 = vmatpush1.bf16.msra.mxu0 0
    %2280 = vmatprep.subr.bf16.mxu0 0
    %2281 = vmatpush1.bf16.msra.mxu0 0
    %2282 = vmatprep.subr.bf16.mxu0 0
    %2283 = vmatpush1.bf16.msra.mxu0 0
    %2284 = vmatprep.subr.bf16.mxu0 0
    %2285 = vmatpush1.bf16.msra.mxu0 0
    %2286 = vmatprep.subr.bf16.mxu0 0
    %2287 = vmatpush1.bf16.msra.mxu0 0
    %2288 = vmatprep.subr.bf16.mxu0 0
    %2289 = vmatpush1.bf16.msra.mxu0 0
    %2290 = vmatprep.subr.bf16.mxu0 0
    %2291 = vmatpush1.bf16.msra.mxu0 0
    %2292 = vmatprep.subr.bf16.mxu0 0
    %2293 = vmatpush1.bf16.msra.mxu0 0
    %2294 = vmatprep.subr.bf16.mxu0 0
    %2295 = vmatpush1.bf16.msra.mxu0 0
    %2296 = vmatprep.subr.bf16.mxu0 0
    %2297 = vmatpush1.bf16.msra.mxu0 0
    %2298 = vmatprep.subr.bf16.mxu0 0
    %2299 = vmatpush1.bf16.msra.mxu0 0
    %2300 = vmatprep.subr.bf16.mxu0 0
    %2301 = vmatpush1.bf16.msra.mxu0 0
    %2302 = vmatprep.mubr.bf16.mxu0 0
    %2303 = vmatmul.mubr.bf16.gmra.mrb[0].mxu0 %v2268
    %v2304 = vpop.f32.mrb[0].mxu0
    %v2305 = vadd.f32 0.0, %v2304
    %v2306 = vpop.f32.mrb[0].mxu0
    %v2307 = vpop.f32.mrb[0].mxu0
    %v2308 = vpop.f32.mrb[0].mxu0
    %2309 = vdwg.mxu0
    %v2310 = vadd.f32 %v2233, %v2305
    %v2311 = vld [vmem:[%s8] sm:$0x1]
    %v2313 = vlaneseq
    %v2314 = vshrl.u32 %v2313, 7
    %v2315 = vsub.s32 0, %v2314
    %v2316 = vrot.slane %v2311, %v2315
    %v2318 = vadd.f32 %v2310, %v2316
    %v2319 = vmax.f32 %v2318, 0.0
    %v2320 = vpack.c.bf16 %v2319, %v2319
    %v2321 = vld [vmem:[%s9] sm:$0xff]
    %v2322 = vld [vmem:[%s9 + $0x8] sm:$0xff]
    %v2323 = vld [vmem:[%s9 + $0x10] sm:$0xff]
    %v2324 = vld [vmem:[%s9 + $0x18] sm:$0xff]
    %v2325 = vld [vmem:[%s9 + $0x20] sm:$0xff]
    %v2326 = vld [vmem:[%s9 + $0x28] sm:$0xff]
    %v2327 = vld [vmem:[%s9 + $0x30] sm:$0xff]
    %v2328 = vld [vmem:[%s9 + $0x38] sm:$0xff]
    %v2329 = vld [vmem:[%s9 + $0x40] sm:$0xff]
    %v2330 = vld [vmem:[%s9 + $0x48] sm:$0xff]
    %v2331 = vld [vmem:[%s9 + $0x50] sm:$0xff]
    %v2332 = vld [vmem:[%s9 + $0x58] sm:$0xff]
    %v2333 = vld [vmem:[%s9 + $0x60] sm:$0xff]
    %v2334 = vld [vmem:[%s9 + $0x68] sm:$0xff]
    %v2335 = vld [vmem:[%s9 + $0x70] sm:$0xff]
    %v2336 = vld [vmem:[%s9 + $0x78] sm:$0xff]
    %s2337 = scalar_lea.vmem %s9, 128
    %v2338 = vld [vmem:[%s2337] sm:$0xff]
    %v2339 = vld [vmem:[%s2337 + $0x8] sm:$0xff]
    %v2340 = vld [vmem:[%s2337 + $0x10] sm:$0xff]
    %v2341 = vld [vmem:[%s2337 + $0x18] sm:$0xff]
    %v2342 = vld [vmem:[%s2337 + $0x20] sm:$0xff]
    %v2343 = vld [vmem:[%s2337 + $0x28] sm:$0xff]
    %v2344 = vld [vmem:[%s2337 + $0x30] sm:$0xff]
    %v2345 = vld [vmem:[%s2337 + $0x38] sm:$0xff]
    %v2346 = vld [vmem:[%s2337 + $0x40] sm:$0xff]
    %v2347 = vld [vmem:[%s2337 + $0x48] sm:$0xff]
    %v2348 = vld [vmem:[%s2337 + $0x50] sm:$0xff]
    %v2349 = vld [vmem:[%s2337 + $0x58] sm:$0xff]
    %v2350 = vld [vmem:[%s2337 + $0x60] sm:$0xff]
    %v2351 = vld [vmem:[%s2337 + $0x68] sm:$0xff]
    %v2352 = vld [vmem:[%s2337 + $0x70] sm:$0xff]
    %v2353 = vld [vmem:[%s2337 + $0x78] sm:$0xff]
    %v2355 = vrot.slane %v2320, 1
    %v2372 = vunpack.c.l.b16 %v2338
    %v2373 = vunpack.c.h.b16 %v2338
    %v2374 = vunpack.c.l.b16 %v2339
    %v2375 = vunpack.c.h.b16 %v2339
    %v2376 = vunpack.c.l.b16 %v2340
    %v2377 = vunpack.c.h.b16 %v2340
    %v2378 = vunpack.c.l.b16 %v2341
    %v2379 = vunpack.c.h.b16 %v2341
    %v2380 = vunpack.c.l.b16 %v2342
    %v2381 = vunpack.c.h.b16 %v2342
    %v2382 = vunpack.c.l.b16 %v2343
    %v2383 = vunpack.c.h.b16 %v2343
    %v2384 = vunpack.c.l.b16 %v2344
    %v2385 = vunpack.c.h.b16 %v2344
    %v2386 = vunpack.c.l.b16 %v2345
    %v2387 = vunpack.c.h.b16 %v2345
    %v2388 = vunpack.c.l.b16 %v2346
    %v2389 = vunpack.c.h.b16 %v2346
    %v2390 = vunpack.c.l.b16 %v2347
    %v2391 = vunpack.c.h.b16 %v2347
    %v2392 = vunpack.c.l.b16 %v2348
    %v2393 = vunpack.c.h.b16 %v2348
    %v2394 = vunpack.c.l.b16 %v2349
    %v2395 = vunpack.c.h.b16 %v2349
    %v2396 = vunpack.c.l.b16 %v2350
    %v2397 = vunpack.c.h.b16 %v2350
    %v2398 = vunpack.c.l.b16 %v2351
    %v2399 = vunpack.c.h.b16 %v2351
    %v2400 = vunpack.c.l.b16 %v2352
    %v2401 = vunpack.c.h.b16 %v2352
    %v2402 = vunpack.c.l.b16 %v2353
    %v2403 = vunpack.c.h.b16 %v2353
    %v2404 = vpack.c.b16 %v2376, %v2372
    %v2405 = vpack.c.b16 %v2377, %v2373
    %v2406 = vpack.c.b16 %v2378, %v2374
    %v2407 = vpack.c.b16 %v2379, %v2375
    %v2408 = vpack.c.b16 %v2384, %v2380
    %v2409 = vpack.c.b16 %v2385, %v2381
    %v2410 = vpack.c.b16 %v2386, %v2382
    %v2411 = vpack.c.b16 %v2387, %v2383
    %v2412 = vpack.c.b16 %v2392, %v2388
    %v2413 = vpack.c.b16 %v2393, %v2389
    %v2414 = vpack.c.b16 %v2394, %v2390
    %v2415 = vpack.c.b16 %v2395, %v2391
    %v2416 = vpack.c.b16 %v2400, %v2396
    %v2417 = vpack.c.b16 %v2401, %v2397
    %v2418 = vpack.c.b16 %v2402, %v2398
    %v2419 = vpack.c.b16 %v2403, %v2399
    %v2437 = vsel %vm1655, %v2355, 0
    %2439 = vmatprep.subr.bf16.mxu0 %v2405
    %2440 = vmatpush1.bf16.msra.mxu0 %v2404
    %2441 = vmatprep.subr.bf16.mxu0 %v2409
    %2442 = vmatpush1.bf16.msra.mxu0 %v2408
    %2443 = vmatprep.subr.bf16.mxu0 %v2413
    %2444 = vmatpush1.bf16.msra.mxu0 %v2412
    %2445 = vmatprep.subr.bf16.mxu0 %v2417
    %2446 = vmatpush1.bf16.msra.mxu0 %v2416
    %2447 = vmatprep.subr.bf16.mxu0 0
    %2448 = vmatpush1.bf16.msra.mxu0 0
    %2449 = vmatprep.subr.bf16.mxu0 0
    %2450 = vmatpush1.bf16.msra.mxu0 0
    %2451 = vmatprep.subr.bf16.mxu0 0
    %2452 = vmatpush1.bf16.msra.mxu0 0
    %2453 = vmatprep.subr.bf16.mxu0 0
    %2454 = vmatpush1.bf16.msra.mxu0 0
    %2455 = vmatprep.subr.bf16.mxu0 0
    %2456 = vmatpush1.bf16.msra.mxu0 0
    %2457 = vmatprep.subr.bf16.mxu0 0
    %2458 = vmatpush1.bf16.msra.mxu0 0
    %2459 = vmatprep.subr.bf16.mxu0 0
    %2460 = vmatpush1.bf16.msra.mxu0 0
    %2461 = vmatprep.subr.bf16.mxu0 0
    %2462 = vmatpush1.bf16.msra.mxu0 0
    %2463 = vmatprep.subr.bf16.mxu0 0
    %2464 = vmatpush1.bf16.msra.mxu0 0
    %2465 = vmatprep.subr.bf16.mxu0 0
    %2466 = vmatpush1.bf16.msra.mxu0 0
    %2467 = vmatprep.subr.bf16.mxu0 0
    %2468 = vmatpush1.bf16.msra.mxu0 0
    %2469 = vmatprep.subr.bf16.mxu0 0
    %2470 = vmatpush1.bf16.msra.mxu0 0
    %2471 = vmatprep.mubr.bf16.mxu0 0
    %2472 = vmatmul.mubr.bf16.gmra.mrb[0].mxu0 %v2437
    %v2473 = vpop.f32.mrb[0].mxu0
    %v2474 = vadd.f32 0.0, %v2473
    %v2475 = vpop.f32.mrb[0].mxu0
    %v2476 = vadd.f32 0.0, %v2475
    %v2477 = vpop.f32.mrb[0].mxu0
    %v2478 = vpop.f32.mrb[0].mxu0
    %2479 = vdwg.mxu0
    %2480 = vmatprep.subr.bf16.mxu0 %v2407
    %2481 = vmatpush1.bf16.msra.mxu0 %v2406
    %2482 = vmatprep.subr.bf16.mxu0 %v2411
    %2483 = vmatpush1.bf16.msra.mxu0 %v2410
    %2484 = vmatprep.subr.bf16.mxu0 %v2415
    %2485 = vmatpush1.bf16.msra.mxu0 %v2414
    %2486 = vmatprep.subr.bf16.mxu0 %v2419
    %2487 = vmatpush1.bf16.msra.mxu0 %v2418
    %2488 = vmatprep.subr.bf16.mxu0 0
    %2489 = vmatpush1.bf16.msra.mxu0 0
    %2490 = vmatprep.subr.bf16.mxu0 0
    %2491 = vmatpush1.bf16.msra.mxu0 0
    %2492 = vmatprep.subr.bf16.mxu0 0
    %2493 = vmatpush1.bf16.msra.mxu0 0
    %2494 = vmatprep.subr.bf16.mxu0 0
    %2495 = vmatpush1.bf16.msra.mxu0 0
    %2496 = vmatprep.subr.bf16.mxu0 0
    %2497 = vmatpush1.bf16.msra.mxu0 0
    %2498 = vmatprep.subr.bf16.mxu0 0
    %2499 = vmatpush1.bf16.msra.mxu0 0
    %2500 = vmatprep.subr.bf16.mxu0 0
    %2501 = vmatpush1.bf16.msra.mxu0 0
    %2502 = vmatprep.subr.bf16.mxu0 0
    %2503 = vmatpush1.bf16.msra.mxu0 0
    %2504 = vmatprep.subr.bf16.mxu0 0
    %2505 = vmatpush1.bf16.msra.mxu0 0
    %2506 = vmatprep.subr.bf16.mxu0 0
    %2507 = vmatpush1.bf16.msra.mxu0 0
    %2508 = vmatprep.subr.bf16.mxu0 0
    %2509 = vmatpush1.bf16.msra.mxu0 0
    %2510 = vmatprep.subr.bf16.mxu0 0
    %2511 = vmatpush1.bf16.msra.mxu0 0
    %2512 = vmatprep.mubr.bf16.mxu0 0
    %2513 = vmatmul.mubr.bf16.gmra.mrb[0].mxu0 %v2437
    %v2514 = vpop.f32.mrb[0].mxu0
    %v2515 = vadd.f32 0.0, %v2514
    %v2516 = vpop.f32.mrb[0].mxu0
    %v2517 = vadd.f32 0.0, %v2516
    %v2518 = vpop.f32.mrb[0].mxu0
    %v2519 = vpop.f32.mrb[0].mxu0
    %2520 = vdwg.mxu0
    %v2537 = vunpack.c.l.b16 %v2321
    %v2538 = vunpack.c.h.b16 %v2321
    %v2539 = vunpack.c.l.b16 %v2322
    %v2540 = vunpack.c.h.b16 %v2322
    %v2541 = vunpack.c.l.b16 %v2323
    %v2542 = vunpack.c.h.b16 %v2323
    %v2543 = vunpack.c.l.b16 %v2324
    %v2544 = vunpack.c.h.b16 %v2324
    %v2545 = vunpack.c.l.b16 %v2325
    %v2546 = vunpack.c.h.b16 %v2325
    %v2547 = vunpack.c.l.b16 %v2326
    %v2548 = vunpack.c.h.b16 %v2326
    %v2549 = vunpack.c.l.b16 %v2327
    %v2550 = vunpack.c.h.b16 %v2327
    %v2551 = vunpack.c.l.b16 %v2328
    %v2552 = vunpack.c.h.b16 %v2328
    %v2553 = vunpack.c.l.b16 %v2329
    %v2554 = vunpack.c.h.b16 %v2329
    %v2555 = vunpack.c.l.b16 %v2330
    %v2556 = vunpack.c.h.b16 %v2330
    %v2557 = vunpack.c.l.b16 %v2331
    %v2558 = vunpack.c.h.b16 %v2331
    %v2559 = vunpack.c.l.b16 %v2332
    %v2560 = vunpack.c.h.b16 %v2332
    %v2561 = vunpack.c.l.b16 %v2333
    %v2562 = vunpack.c.h.b16 %v2333
    %v2563 = vunpack.c.l.b16 %v2334
    %v2564 = vunpack.c.h.b16 %v2334
    %v2565 = vunpack.c.l.b16 %v2335
    %v2566 = vunpack.c.h.b16 %v2335
    %v2567 = vunpack.c.l.b16 %v2336
    %v2568 = vunpack.c.h.b16 %v2336
    %v2569 = vpack.c.b16 %v2541, %v2537
    %v2570 = vpack.c.b16 %v2542, %v2538
    %v2571 = vpack.c.b16 %v2543, %v2539
    %v2572 = vpack.c.b16 %v2544, %v2540
    %v2573 = vpack.c.b16 %v2549, %v2545
    %v2574 = vpack.c.b16 %v2550, %v2546
    %v2575 = vpack.c.b16 %v2551, %v2547
    %v2576 = vpack.c.b16 %v2552, %v2548
    %v2577 = vpack.c.b16 %v2557, %v2553
    %v2578 = vpack.c.b16 %v2558, %v2554
    %v2579 = vpack.c.b16 %v2559, %v2555
    %v2580 = vpack.c.b16 %v2560, %v2556
    %v2581 = vpack.c.b16 %v2565, %v2561
    %v2582 = vpack.c.b16 %v2566, %v2562
    %v2583 = vpack.c.b16 %v2567, %v2563
    %v2584 = vpack.c.b16 %v2568, %v2564
    %v2602 = vsel %vm1655, %v2320, 0
    %2604 = vmatprep.subr.bf16.mxu0 %v2570
    %2605 = vmatpush1.bf16.msra.mxu0 %v2569
    %2606 = vmatprep.subr.bf16.mxu0 %v2574
    %2607 = vmatpush1.bf16.msra.mxu0 %v2573
    %2608 = vmatprep.subr.bf16.mxu0 %v2578
    %2609 = vmatpush1.bf16.msra.mxu0 %v2577
    %2610 = vmatprep.subr.bf16.mxu0 %v2582
    %2611 = vmatpush1.bf16.msra.mxu0 %v2581
    %2612 = vmatprep.subr.bf16.mxu0 0
    %2613 = vmatpush1.bf16.msra.mxu0 0
    %2614 = vmatprep.subr.bf16.mxu0 0
    %2615 = vmatpush1.bf16.msra.mxu0 0
    %2616 = vmatprep.subr.bf16.mxu0 0
    %2617 = vmatpush1.bf16.msra.mxu0 0
    %2618 = vmatprep.subr.bf16.mxu0 0
    %2619 = vmatpush1.bf16.msra.mxu0 0
    %2620 = vmatprep.subr.bf16.mxu0 0
    %2621 = vmatpush1.bf16.msra.mxu0 0
    %2622 = vmatprep.subr.bf16.mxu0 0
    %2623 = vmatpush1.bf16.msra.mxu0 0
    %2624 = vmatprep.subr.bf16.mxu0 0
    %2625 = vmatpush1.bf16.msra.mxu0 0
    %2626 = vmatprep.subr.bf16.mxu0 0
    %2627 = vmatpush1.bf16.msra.mxu0 0
    %2628 = vmatprep.subr.bf16.mxu0 0
    %2629 = vmatpush1.bf16.msra.mxu0 0
    %2630 = vmatprep.subr.bf16.mxu0 0
    %2631 = vmatpush1.bf16.msra.mxu0 0
    %2632 = vmatprep.subr.bf16.mxu0 0
    %2633 = vmatpush1.bf16.msra.mxu0 0
    %2634 = vmatprep.subr.bf16.mxu0 0
    %2635 = vmatpush1.bf16.msra.mxu0 0
    %2636 = vmatprep.mubr.bf16.mxu0 0
    %2637 = vmatmul.mubr.bf16.gmra.mrb[0].mxu0 %v2602
    %v2638 = vpop.f32.mrb[0].mxu0
    %v2639 = vadd.f32 %v2474, %v2638
    %v2640 = vpop.f32.mrb[0].mxu0
    %v2641 = vadd.f32 %v2476, %v2640
    %v2642 = vpop.f32.mrb[0].mxu0
    %v2643 = vpop.f32.mrb[0].mxu0
    %2644 = vdwg.mxu0
    %2645 = vmatprep.subr.bf16.mxu0 %v2572
    %2646 = vmatpush1.bf16.msra.mxu0 %v2571
    %2647 = vmatprep.subr.bf16.mxu0 %v2576
    %2648 = vmatpush1.bf16.msra.mxu0 %v2575
    %2649 = vmatprep.subr.bf16.mxu0 %v2580
    %2650 = vmatpush1.bf16.msra.mxu0 %v2579
    %2651 = vmatprep.subr.bf16.mxu0 %v2584
    %2652 = vmatpush1.bf16.msra.mxu0 %v2583
    %2653 = vmatprep.subr.bf16.mxu0 0
    %2654 = vmatpush1.bf16.msra.mxu0 0
    %2655 = vmatprep.subr.bf16.mxu0 0
    %2656 = vmatpush1.bf16.msra.mxu0 0
    %2657 = vmatprep.subr.bf16.mxu0 0
    %2658 = vmatpush1.bf16.msra.mxu0 0
    %2659 = vmatprep.subr.bf16.mxu0 0
    %2660 = vmatpush1.bf16.msra.mxu0 0
    %2661 = vmatprep.subr.bf16.mxu0 0
    %2662 = vmatpush1.bf16.msra.mxu0 0
    %2663 = vmatprep.subr.bf16.mxu0 0
    %2664 = vmatpush1.bf16.msra.mxu0 0
    %2665 = vmatprep.subr.bf16.mxu0 0
    %2666 = vmatpush1.bf16.msra.mxu0 0
    %2667 = vmatprep.subr.bf16.mxu0 0
    %2668 = vmatpush1.bf16.msra.mxu0 0
    %2669 = vmatprep.subr.bf16.mxu0 0
    %2670 = vmatpush1.bf16.msra.mxu0 0
    %2671 = vmatprep.subr.bf16.mxu0 0
    %2672 = vmatpush1.bf16.msra.mxu0 0
    %2673 = vmatprep.subr.bf16.mxu0 0
    %2674 = vmatpush1.bf16.msra.mxu0 0
    %2675 = vmatprep.subr.bf16.mxu0 0
    %2676 = vmatpush1.bf16.msra.mxu0 0
    %2677 = vmatprep.mubr.bf16.mxu0 0
    %2678 = vmatmul.mubr.bf16.gmra.mrb[0].mxu0 %v2602
    %v2679 = vpop.f32.mrb[0].mxu0
    %v2680 = vadd.f32 %v2515, %v2679
    %v2681 = vpop.f32.mrb[0].mxu0
    %v2682 = vadd.f32 %v2517, %v2681
    %v2683 = vpop.f32.mrb[0].mxu0
    %v2684 = vpop.f32.mrb[0].mxu0
    %2685 = vdwg.mxu0
    %s2686 = scalar_lea.vmem %s9, 256
    %v2687 = vld [vmem:[%s2686] sm:$0xff]
    %v2688 = vld [vmem:[%s2686 + $0x8] sm:$0xff]
    %v2689 = vld [vmem:[%s2686 + $0x10] sm:$0xff]
    %v2690 = vld [vmem:[%s2686 + $0x18] sm:$0xff]
    %v2691 = vld [vmem:[%s2686 + $0x20] sm:$0xff]
    %v2692 = vld [vmem:[%s2686 + $0x28] sm:$0xff]
    %v2693 = vld [vmem:[%s2686 + $0x30] sm:$0xff]
    %v2694 = vld [vmem:[%s2686 + $0x38] sm:$0xff]
    %v2695 = vld [vmem:[%s2686 + $0x40] sm:$0xff]
    %v2696 = vld [vmem:[%s2686 + $0x48] sm:$0xff]
    %v2697 = vld [vmem:[%s2686 + $0x50] sm:$0xff]
    %v2698 = vld [vmem:[%s2686 + $0x58] sm:$0xff]
    %v2699 = vld [vmem:[%s2686 + $0x60] sm:$0xff]
    %v2700 = vld [vmem:[%s2686 + $0x68] sm:$0xff]
    %v2701 = vld [vmem:[%s2686 + $0x70] sm:$0xff]
    %v2702 = vld [vmem:[%s2686 + $0x78] sm:$0xff]
    %v2703 = vrot.slane %v2320, 2
    %v2720 = vunpack.c.l.b16 %v2687
    %v2721 = vunpack.c.h.b16 %v2687
    %v2722 = vunpack.c.l.b16 %v2688
    %v2723 = vunpack.c.h.b16 %v2688
    %v2724 = vunpack.c.l.b16 %v2689
    %v2725 = vunpack.c.h.b16 %v2689
    %v2726 = vunpack.c.l.b16 %v2690
    %v2727 = vunpack.c.h.b16 %v2690
    %v2728 = vunpack.c.l.b16 %v2691
    %v2729 = vunpack.c.h.b16 %v2691
    %v2730 = vunpack.c.l.b16 %v2692
    %v2731 = vunpack.c.h.b16 %v2692
    %v2732 = vunpack.c.l.b16 %v2693
    %v2733 = vunpack.c.h.b16 %v2693
    %v2734 = vunpack.c.l.b16 %v2694
    %v2735 = vunpack.c.h.b16 %v2694
    %v2736 = vunpack.c.l.b16 %v2695
    %v2737 = vunpack.c.h.b16 %v2695
    %v2738 = vunpack.c.l.b16 %v2696
    %v2739 = vunpack.c.h.b16 %v2696
    %v2740 = vunpack.c.l.b16 %v2697
    %v2741 = vunpack.c.h.b16 %v2697
    %v2742 = vunpack.c.l.b16 %v2698
    %v2743 = vunpack.c.h.b16 %v2698
    %v2744 = vunpack.c.l.b16 %v2699
    %v2745 = vunpack.c.h.b16 %v2699
    %v2746 = vunpack.c.l.b16 %v2700
    %v2747 = vunpack.c.h.b16 %v2700
    %v2748 = vunpack.c.l.b16 %v2701
    %v2749 = vunpack.c.h.b16 %v2701
    %v2750 = vunpack.c.l.b16 %v2702
    %v2751 = vunpack.c.h.b16 %v2702
    %v2752 = vpack.c.b16 %v2724, %v2720
    %v2753 = vpack.c.b16 %v2725, %v2721
    %v2754 = vpack.c.b16 %v2726, %v2722
    %v2755 = vpack.c.b16 %v2727, %v2723
    %v2756 = vpack.c.b16 %v2732, %v2728
    %v2757 = vpack.c.b16 %v2733, %v2729
    %v2758 = vpack.c.b16 %v2734, %v2730
    %v2759 = vpack.c.b16 %v2735, %v2731
    %v2760 = vpack.c.b16 %v2740, %v2736
    %v2761 = vpack.c.b16 %v2741, %v2737
    %v2762 = vpack.c.b16 %v2742, %v2738
    %v2763 = vpack.c.b16 %v2743, %v2739
    %v2764 = vpack.c.b16 %v2748, %v2744
    %v2765 = vpack.c.b16 %v2749, %v2745
    %v2766 = vpack.c.b16 %v2750, %v2746
    %v2767 = vpack.c.b16 %v2751, %v2747
    %v2785 = vsel %vm1655, %v2703, 0
    %2787 = vmatprep.subr.bf16.mxu0 %v2753
    %2788 = vmatpush1.bf16.msra.mxu0 %v2752
    %2789 = vmatprep.subr.bf16.mxu0 %v2757
    %2790 = vmatpush1.bf16.msra.mxu0 %v2756
    %2791 = vmatprep.subr.bf16.mxu0 %v2761
    %2792 = vmatpush1.bf16.msra.mxu0 %v2760
    %2793 = vmatprep.subr.bf16.mxu0 %v2765
    %2794 = vmatpush1.bf16.msra.mxu0 %v2764
    %2795 = vmatprep.subr.bf16.mxu0 0
    %2796 = vmatpush1.bf16.msra.mxu0 0
    %2797 = vmatprep.subr.bf16.mxu0 0
    %2798 = vmatpush1.bf16.msra.mxu0 0
    %2799 = vmatprep.subr.bf16.mxu0 0
    %2800 = vmatpush1.bf16.msra.mxu0 0
    %2801 = vmatprep.subr.bf16.mxu0 0
    %2802 = vmatpush1.bf16.msra.mxu0 0
    %2803 = vmatprep.subr.bf16.mxu0 0
    %2804 = vmatpush1.bf16.msra.mxu0 0
    %2805 = vmatprep.subr.bf16.mxu0 0
    %2806 = vmatpush1.bf16.msra.mxu0 0
    %2807 = vmatprep.subr.bf16.mxu0 0
    %2808 = vmatpush1.bf16.msra.mxu0 0
    %2809 = vmatprep.subr.bf16.mxu0 0
    %2810 = vmatpush1.bf16.msra.mxu0 0
    %2811 = vmatprep.subr.bf16.mxu0 0
    %2812 = vmatpush1.bf16.msra.mxu0 0
    %2813 = vmatprep.subr.bf16.mxu0 0
    %2814 = vmatpush1.bf16.msra.mxu0 0
    %2815 = vmatprep.subr.bf16.mxu0 0
    %2816 = vmatpush1.bf16.msra.mxu0 0
    %2817 = vmatprep.subr.bf16.mxu0 0
    %2818 = vmatpush1.bf16.msra.mxu0 0
    %2819 = vmatprep.mubr.bf16.mxu0 0
    %2820 = vmatmul.mubr.bf16.gmra.mrb[0].mxu0 %v2785
    %v2821 = vpop.f32.mrb[0].mxu0
    %v2822 = vadd.f32 0.0, %v2821
    %v2823 = vpop.f32.mrb[0].mxu0
    %v2824 = vadd.f32 0.0, %v2823
    %v2825 = vpop.f32.mrb[0].mxu0
    %v2826 = vpop.f32.mrb[0].mxu0
    %2827 = vdwg.mxu0
    %2828 = vmatprep.subr.bf16.mxu0 %v2755
    %2829 = vmatpush1.bf16.msra.mxu0 %v2754
    %2830 = vmatprep.subr.bf16.mxu0 %v2759
    %2831 = vmatpush1.bf16.msra.mxu0 %v2758
    %2832 = vmatprep.subr.bf16.mxu0 %v2763
    %2833 = vmatpush1.bf16.msra.mxu0 %v2762
    %2834 = vmatprep.subr.bf16.mxu0 %v2767
    %2835 = vmatpush1.bf16.msra.mxu0 %v2766
    %2836 = vmatprep.subr.bf16.mxu0 0
    %2837 = vmatpush1.bf16.msra.mxu0 0
    %2838 = vmatprep.subr.bf16.mxu0 0
    %2839 = vmatpush1.bf16.msra.mxu0 0
    %2840 = vmatprep.subr.bf16.mxu0 0
    %2841 = vmatpush1.bf16.msra.mxu0 0
    %2842 = vmatprep.subr.bf16.mxu0 0
    %2843 = vmatpush1.bf16.msra.mxu0 0
    %2844 = vmatprep.subr.bf16.mxu0 0
    %2845 = vmatpush1.bf16.msra.mxu0 0
    %2846 = vmatprep.subr.bf16.mxu0 0
    %2847 = vmatpush1.bf16.msra.mxu0 0
    %2848 = vmatprep.subr.bf16.mxu0 0
    %2849 = vmatpush1.bf16.msra.mxu0 0
    %2850 = vmatprep.subr.bf16.mxu0 0
    %2851 = vmatpush1.bf16.msra.mxu0 0
    %2852 = vmatprep.subr.bf16.mxu0 0
    %2853 = vmatpush1.bf16.msra.mxu0 0
    %2854 = vmatprep.subr.bf16.mxu0 0
    %2855 = vmatpush1.bf16.msra.mxu0 0
    %2856 = vmatprep.subr.bf16.mxu0 0
    %2857 = vmatpush1.bf16.msra.mxu0 0
    %2858 = vmatprep.subr.bf16.mxu0 0
    %2859 = vmatpush1.bf16.msra.mxu0 0
    %2860 = vmatprep.mubr.bf16.mxu0 0
    %2861 = vmatmul.mubr.bf16.gmra.mrb[0].mxu0 %v2785
    %v2862 = vpop.f32.mrb[0].mxu0
    %v2863 = vadd.f32 0.0, %v2862
    %v2864 = vpop.f32.mrb[0].mxu0
    %v2865 = vadd.f32 0.0, %v2864
    %v2866 = vpop.f32.mrb[0].mxu0
    %v2867 = vpop.f32.mrb[0].mxu0
    %2868 = vdwg.mxu0
    %v2869 = vadd.f32 %v2639, %v2822
    %v2870 = vadd.f32 %v2641, %v2824
    %v2871 = vadd.f32 %v2680, %v2863
    %v2872 = vadd.f32 %v2682, %v2865
    %s2873 = scalar_lea.vmem %s9, 384
    %v2874 = vld [vmem:[%s2873] sm:$0xff]
    %v2875 = vld [vmem:[%s2873 + $0x8] sm:$0xff]
    %v2876 = vld [vmem:[%s2873 + $0x10] sm:$0xff]
    %v2877 = vld [vmem:[%s2873 + $0x18] sm:$0xff]
    %v2878 = vld [vmem:[%s2873 + $0x20] sm:$0xff]
    %v2879 = vld [vmem:[%s2873 + $0x28] sm:$0xff]
    %v2880 = vld [vmem:[%s2873 + $0x30] sm:$0xff]
    %v2881 = vld [vmem:[%s2873 + $0x38] sm:$0xff]
    %v2882 = vld [vmem:[%s2873 + $0x40] sm:$0xff]
    %v2883 = vld [vmem:[%s2873 + $0x48] sm:$0xff]
    %v2884 = vld [vmem:[%s2873 + $0x50] sm:$0xff]
    %v2885 = vld [vmem:[%s2873 + $0x58] sm:$0xff]
    %v2886 = vld [vmem:[%s2873 + $0x60] sm:$0xff]
    %v2887 = vld [vmem:[%s2873 + $0x68] sm:$0xff]
    %v2888 = vld [vmem:[%s2873 + $0x70] sm:$0xff]
    %v2889 = vld [vmem:[%s2873 + $0x78] sm:$0xff]
    %v2890 = vrot.slane %v2320, 3
    %v2907 = vunpack.c.l.b16 %v2874
    %v2908 = vunpack.c.h.b16 %v2874
    %v2909 = vunpack.c.l.b16 %v2875
    %v2910 = vunpack.c.h.b16 %v2875
    %v2911 = vunpack.c.l.b16 %v2876
    %v2912 = vunpack.c.h.b16 %v2876
    %v2913 = vunpack.c.l.b16 %v2877
    %v2914 = vunpack.c.h.b16 %v2877
    %v2915 = vunpack.c.l.b16 %v2878
    %v2916 = vunpack.c.h.b16 %v2878
    %v2917 = vunpack.c.l.b16 %v2879
    %v2918 = vunpack.c.h.b16 %v2879
    %v2919 = vunpack.c.l.b16 %v2880
    %v2920 = vunpack.c.h.b16 %v2880
    %v2921 = vunpack.c.l.b16 %v2881
    %v2922 = vunpack.c.h.b16 %v2881
    %v2923 = vunpack.c.l.b16 %v2882
    %v2924 = vunpack.c.h.b16 %v2882
    %v2925 = vunpack.c.l.b16 %v2883
    %v2926 = vunpack.c.h.b16 %v2883
    %v2927 = vunpack.c.l.b16 %v2884
    %v2928 = vunpack.c.h.b16 %v2884
    %v2929 = vunpack.c.l.b16 %v2885
    %v2930 = vunpack.c.h.b16 %v2885
    %v2931 = vunpack.c.l.b16 %v2886
    %v2932 = vunpack.c.h.b16 %v2886
    %v2933 = vunpack.c.l.b16 %v2887
    %v2934 = vunpack.c.h.b16 %v2887
    %v2935 = vunpack.c.l.b16 %v2888
    %v2936 = vunpack.c.h.b16 %v2888
    %v2937 = vunpack.c.l.b16 %v2889
    %v2938 = vunpack.c.h.b16 %v2889
    %v2939 = vpack.c.b16 %v2911, %v2907
    %v2940 = vpack.c.b16 %v2912, %v2908
    %v2941 = vpack.c.b16 %v2913, %v2909
    %v2942 = vpack.c.b16 %v2914, %v2910
    %v2943 = vpack.c.b16 %v2919, %v2915
    %v2944 = vpack.c.b16 %v2920, %v2916
    %v2945 = vpack.c.b16 %v2921, %v2917
    %v2946 = vpack.c.b16 %v2922, %v2918
    %v2947 = vpack.c.b16 %v2927, %v2923
    %v2948 = vpack.c.b16 %v2928, %v2924
    %v2949 = vpack.c.b16 %v2929, %v2925
    %v2950 = vpack.c.b16 %v2930, %v2926
    %v2951 = vpack.c.b16 %v2935, %v2931
    %v2952 = vpack.c.b16 %v2936, %v2932
    %v2953 = vpack.c.b16 %v2937, %v2933
    %v2954 = vpack.c.b16 %v2938, %v2934
    %v2972 = vsel %vm1655, %v2890, 0
    %2974 = vmatprep.subr.bf16.mxu0 %v2940
    %2975 = vmatpush1.bf16.msra.mxu0 %v2939
    %2976 = vmatprep.subr.bf16.mxu0 %v2944
    %2977 = vmatpush1.bf16.msra.mxu0 %v2943
    %2978 = vmatprep.subr.bf16.mxu0 %v2948
    %2979 = vmatpush1.bf16.msra.mxu0 %v2947
    %2980 = vmatprep.subr.bf16.mxu0 %v2952
    %2981 = vmatpush1.bf16.msra.mxu0 %v2951
    %2982 = vmatprep.subr.bf16.mxu0 0
    %2983 = vmatpush1.bf16.msra.mxu0 0
    %2984 = vmatprep.subr.bf16.mxu0 0
    %2985 = vmatpush1.bf16.msra.mxu0 0
    %2986 = vmatprep.subr.bf16.mxu0 0
    %2987 = vmatpush1.bf16.msra.mxu0 0
    %2988 = vmatprep.subr.bf16.mxu0 0
    %2989 = vmatpush1.bf16.msra.mxu0 0
    %2990 = vmatprep.subr.bf16.mxu0 0
    %2991 = vmatpush1.bf16.msra.mxu0 0
    %2992 = vmatprep.subr.bf16.mxu0 0
    %2993 = vmatpush1.bf16.msra.mxu0 0
    %2994 = vmatprep.subr.bf16.mxu0 0
    %2995 = vmatpush1.bf16.msra.mxu0 0
    %2996 = vmatprep.subr.bf16.mxu0 0
    %2997 = vmatpush1.bf16.msra.mxu0 0
    %2998 = vmatprep.subr.bf16.mxu0 0
    %2999 = vmatpush1.bf16.msra.mxu0 0
    %3000 = vmatprep.subr.bf16.mxu0 0
    %3001 = vmatpush1.bf16.msra.mxu0 0
    %3002 = vmatprep.subr.bf16.mxu0 0
    %3003 = vmatpush1.bf16.msra.mxu0 0
    %3004 = vmatprep.subr.bf16.mxu0 0
    %3005 = vmatpush1.bf16.msra.mxu0 0
    %3006 = vmatprep.mubr.bf16.mxu0 0
    %3007 = vmatmul.mubr.bf16.gmra.mrb[0].mxu0 %v2972
    %v3008 = vpop.f32.mrb[0].mxu0
    %v3009 = vadd.f32 0.0, %v3008
    %v3010 = vpop.f32.mrb[0].mxu0
    %v3011 = vadd.f32 0.0, %v3010
    %v3012 = vpop.f32.mrb[0].mxu0
    %v3013 = vpop.f32.mrb[0].mxu0
    %3014 = vdwg.mxu0
    %3015 = vmatprep.subr.bf16.mxu0 %v2942
    %3016 = vmatpush1.bf16.msra.mxu0 %v2941
    %3017 = vmatprep.subr.bf16.mxu0 %v2946
    %3018 = vmatpush1.bf16.msra.mxu0 %v2945
    %3019 = vmatprep.subr.bf16.mxu0 %v2950
    %3020 = vmatpush1.bf16.msra.mxu0 %v2949
    %3021 = vmatprep.subr.bf16.mxu0 %v2954
    %3022 = vmatpush1.bf16.msra.mxu0 %v2953
    %3023 = vmatprep.subr.bf16.mxu0 0
    %3024 = vmatpush1.bf16.msra.mxu0 0
    %3025 = vmatprep.subr.bf16.mxu0 0
    %3026 = vmatpush1.bf16.msra.mxu0 0
    %3027 = vmatprep.subr.bf16.mxu0 0
    %3028 = vmatpush1.bf16.msra.mxu0 0
    %3029 = vmatprep.subr.bf16.mxu0 0
    %3030 = vmatpush1.bf16.msra.mxu0 0
    %3031 = vmatprep.subr.bf16.mxu0 0
    %3032 = vmatpush1.bf16.msra.mxu0 0
    %3033 = vmatprep.subr.bf16.mxu0 0
    %3034 = vmatpush1.bf16.msra.mxu0 0
    %3035 = vmatprep.subr.bf16.mxu0 0
    %3036 = vmatpush1.bf16.msra.mxu0 0
    %3037 = vmatprep.subr.bf16.mxu0 0
    %3038 = vmatpush1.bf16.msra.mxu0 0
    %3039 = vmatprep.subr.bf16.mxu0 0
    %3040 = vmatpush1.bf16.msra.mxu0 0
    %3041 = vmatprep.subr.bf16.mxu0 0
    %3042 = vmatpush1.bf16.msra.mxu0 0
    %3043 = vmatprep.subr.bf16.mxu0 0
    %3044 = vmatpush1.bf16.msra.mxu0 0
    %3045 = vmatprep.subr.bf16.mxu0 0
    %3046 = vmatpush1.bf16.msra.mxu0 0
    %3047 = vmatprep.mubr.bf16.mxu0 0
    %3048 = vmatmul.mubr.bf16.gmra.mrb[0].mxu0 %v2972
    %v3049 = vpop.f32.mrb[0].mxu0
    %v3050 = vadd.f32 0.0, %v3049
    %v3051 = vpop.f32.mrb[0].mxu0
    %v3052 = vadd.f32 0.0, %v3051
    %v3053 = vpop.f32.mrb[0].mxu0
    %v3054 = vpop.f32.mrb[0].mxu0
    %3055 = vdwg.mxu0
    %v3056 = vadd.f32 %v2869, %v3009
    %v3057 = vadd.f32 %v2870, %v3011
    %v3058 = vadd.f32 %v2871, %v3050
    %v3059 = vadd.f32 %v2872, %v3052
    %v3060 = vld [vmem:[%s10] sm:$0xf]
    %v3062 = vlaneseq
    %v3063 = vshrl.u32 %v3062, 7
    %v3064 = vsub.s32 0, %v3063
    %v3065 = vrot.slane %v3060, %v3064
    %v3066 = vlaneseq
    %v3067 = vshrl.u32 %v3066, 7
    %v3068 = vsub.s32 1, %v3067
    %v3069 = vrot.slane %v3060, %v3068
    %v3070 = vlaneseq
    %v3071 = vshrl.u32 %v3070, 7
    %v3072 = vsub.s32 2, %v3071
    %v3073 = vrot.slane %v3060, %v3072
    %v3074 = vlaneseq
    %v3075 = vshrl.u32 %v3074, 7
    %v3076 = vsub.s32 3, %v3075
    %v3077 = vrot.slane %v3060, %v3076
    %v3082 = vadd.f32 %v3056, %v3065
    %v3083 = vadd.f32 %v3057, %v3069
    %v3084 = vadd.f32 %v3058, %v3073
    %v3085 = vadd.f32 %v3059, %v3077
    %v3086 = vmax.f32 %v3082, 0.0
    %v3087 = vmax.f32 %v3083, 0.0
    %v3088 = vmax.f32 %v3084, 0.0
    %v3089 = vmax.f32 %v3085, 0.0
    %v3090 = vpack.c.bf16 %v3086, %v3086
    %v3091 = vpack.c.bf16 %v3087, %v3087
    %v3092 = vpack.c.bf16 %v3088, %v3088
    %v3093 = vpack.c.bf16 %v3089, %v3089
    %v3094 = vld [vmem:[%s11] sm:$0xf]
    %v3095 = vld [vmem:[%s11 + $0x4] sm:$0xf]
    %v3096 = vld [vmem:[%s11 + $0x8] sm:$0xf]
    %v3097 = vld [vmem:[%s11 + $0xc] sm:$0xf]
    %v3098 = vld [vmem:[%s11 + $0x10] sm:$0xf]
    %v3099 = vld [vmem:[%s11 + $0x14] sm:$0xf]
    %v3100 = vld [vmem:[%s11 + $0x18] sm:$0xf]
    %v3101 = vld [vmem:[%s11 + $0x1c] sm:$0xf]
    %v3102 = vld [vmem:[%s11 + $0x20] sm:$0xf]
    %v3103 = vld [vmem:[%s11 + $0x24] sm:$0xf]
    %v3104 = vld [vmem:[%s11 + $0x28] sm:$0xf]
    %v3105 = vld [vmem:[%s11 + $0x2c] sm:$0xf]
    %v3106 = vld [vmem:[%s11 + $0x30] sm:$0xf]
    %v3107 = vld [vmem:[%s11 + $0x34] sm:$0xf]
    %v3108 = vld [vmem:[%s11 + $0x38] sm:$0xf]
    %v3109 = vld [vmem:[%s11 + $0x3c] sm:$0xf]
    %v3110 = vld [vmem:[%s11 + $0x40] sm:$0xf]
    %v3111 = vld [vmem:[%s11 + $0x44] sm:$0xf]
    %v3112 = vld [vmem:[%s11 + $0x48] sm:$0xf]
    %v3113 = vld [vmem:[%s11 + $0x4c] sm:$0xf]
    %v3114 = vld [vmem:[%s11 + $0x50] sm:$0xf]
    %v3115 = vld [vmem:[%s11 + $0x54] sm:$0xf]
    %v3116 = vld [vmem:[%s11 + $0x58] sm:$0xf]
    %v3117 = vld [vmem:[%s11 + $0x5c] sm:$0xf]
    %v3118 = vld [vmem:[%s11 + $0x60] sm:$0xf]
    %v3119 = vld [vmem:[%s11 + $0x64] sm:$0xf]
    %v3120 = vld [vmem:[%s11 + $0x68] sm:$0xf]
    %v3121 = vld [vmem:[%s11 + $0x6c] sm:$0xf]
    %v3122 = vld [vmem:[%s11 + $0x70] sm:$0xf]
    %v3123 = vld [vmem:[%s11 + $0x74] sm:$0xf]
    %v3124 = vld [vmem:[%s11 + $0x78] sm:$0xf]
    %v3125 = vld [vmem:[%s11 + $0x7c] sm:$0xf]
    %v3126 = vld [vmem:[%s11 + $0x80] sm:$0xf]
    %v3127 = vld [vmem:[%s11 + $0x84] sm:$0xf]
    %v3128 = vld [vmem:[%s11 + $0x88] sm:$0xf]
    %v3129 = vld [vmem:[%s11 + $0x8c] sm:$0xf]
    %v3130 = vld [vmem:[%s11 + $0x90] sm:$0xf]
    %v3131 = vld [vmem:[%s11 + $0x94] sm:$0xf]
    %v3132 = vld [vmem:[%s11 + $0x98] sm:$0xf]
    %v3133 = vld [vmem:[%s11 + $0x9c] sm:$0xf]
    %v3134 = vld [vmem:[%s11 + $0xa0] sm:$0xf]
    %v3135 = vld [vmem:[%s11 + $0xa4] sm:$0xf]
    %v3136 = vld [vmem:[%s11 + $0xa8] sm:$0xf]
    %v3137 = vld [vmem:[%s11 + $0xac] sm:$0xf]
    %v3138 = vld [vmem:[%s11 + $0xb0] sm:$0xf]
    %v3139 = vld [vmem:[%s11 + $0xb4] sm:$0xf]
    %v3140 = vld [vmem:[%s11 + $0xb8] sm:$0xf]
    %v3141 = vld [vmem:[%s11 + $0xbc] sm:$0xf]
    %v3142 = vld [vmem:[%s11 + $0xc0] sm:$0xf]
    %v3143 = vld [vmem:[%s11 + $0xc4] sm:$0xf]
    %v3144 = vld [vmem:[%s11 + $0xc8] sm:$0xf]
    %v3145 = vld [vmem:[%s11 + $0xcc] sm:$0xf]
    %v3146 = vld [vmem:[%s11 + $0xd0] sm:$0xf]
    %v3147 = vld [vmem:[%s11 + $0xd4] sm:$0xf]
    %v3148 = vld [vmem:[%s11 + $0xd8] sm:$0xf]
    %v3149 = vld [vmem:[%s11 + $0xdc] sm:$0xf]
    %v3150 = vld [vmem:[%s11 + $0xe0] sm:$0xf]
    %v3151 = vld [vmem:[%s11 + $0xe4] sm:$0xf]
    %v3152 = vld [vmem:[%s11 + $0xe8] sm:$0xf]
    %v3153 = vld [vmem:[%s11 + $0xec] sm:$0xf]
    %v3154 = vld [vmem:[%s11 + $0xf0] sm:$0xf]
    %v3155 = vld [vmem:[%s11 + $0xf4] sm:$0xf]
    %v3156 = vld [vmem:[%s11 + $0xf8] sm:$0xf]
    %v3157 = vld [vmem:[%s11 + $0xfc] sm:$0xf]
    %v3158 = vld [vmem:[%s12] sm:$0x1]
    %v3160 = vlaneseq
    %v3161 = vshrl.u32 %v3160, 7
    %v3162 = vsub.s32 0, %v3161
    %v3163 = vrot.slane %v3158, %v3162
    %v3229 = vunpack.c.l.b16 %v3094
    %v3230 = vunpack.c.l.b16 %v3095
    %v3231 = vunpack.c.l.b16 %v3096
    %v3232 = vunpack.c.l.b16 %v3097
    %v3233 = vunpack.c.l.b16 %v3098
    %v3234 = vunpack.c.l.b16 %v3099
    %v3235 = vunpack.c.l.b16 %v3100
    %v3236 = vunpack.c.l.b16 %v3101
    %v3237 = vunpack.c.l.b16 %v3102
    %v3238 = vunpack.c.l.b16 %v3103
    %v3239 = vunpack.c.l.b16 %v3104
    %v3240 = vunpack.c.l.b16 %v3105
    %v3241 = vunpack.c.l.b16 %v3106
    %v3242 = vunpack.c.l.b16 %v3107
    %v3243 = vunpack.c.l.b16 %v3108
    %v3244 = vunpack.c.l.b16 %v3109
    %v3245 = vunpack.c.l.b16 %v3110
    %v3246 = vunpack.c.l.b16 %v3111
    %v3247 = vunpack.c.l.b16 %v3112
    %v3248 = vunpack.c.l.b16 %v3113
    %v3249 = vunpack.c.l.b16 %v3114
    %v3250 = vunpack.c.l.b16 %v3115
    %v3251 = vunpack.c.l.b16 %v3116
    %v3252 = vunpack.c.l.b16 %v3117
    %v3253 = vunpack.c.l.b16 %v3118
    %v3254 = vunpack.c.l.b16 %v3119
    %v3255 = vunpack.c.l.b16 %v3120
    %v3256 = vunpack.c.l.b16 %v3121
    %v3257 = vunpack.c.l.b16 %v3122
    %v3258 = vunpack.c.l.b16 %v3123
    %v3259 = vunpack.c.l.b16 %v3124
    %v3260 = vunpack.c.l.b16 %v3125
    %v3261 = vunpack.c.l.b16 %v3126
    %v3262 = vunpack.c.l.b16 %v3127
    %v3263 = vunpack.c.l.b16 %v3128
    %v3264 = vunpack.c.l.b16 %v3129
    %v3265 = vunpack.c.l.b16 %v3130
    %v3266 = vunpack.c.l.b16 %v3131
    %v3267 = vunpack.c.l.b16 %v3132
    %v3268 = vunpack.c.l.b16 %v3133
    %v3269 = vunpack.c.l.b16 %v3134
    %v3270 = vunpack.c.l.b16 %v3135
    %v3271 = vunpack.c.l.b16 %v3136
    %v3272 = vunpack.c.l.b16 %v3137
    %v3273 = vunpack.c.l.b16 %v3138
    %v3274 = vunpack.c.l.b16 %v3139
    %v3275 = vunpack.c.l.b16 %v3140
    %v3276 = vunpack.c.l.b16 %v3141
    %v3277 = vunpack.c.l.b16 %v3142
    %v3278 = vunpack.c.l.b16 %v3143
    %v3279 = vunpack.c.l.b16 %v3144
    %v3280 = vunpack.c.l.b16 %v3145
    %v3281 = vunpack.c.l.b16 %v3146
    %v3282 = vunpack.c.l.b16 %v3147
    %v3283 = vunpack.c.l.b16 %v3148
    %v3284 = vunpack.c.l.b16 %v3149
    %v3285 = vunpack.c.l.b16 %v3150
    %v3286 = vunpack.c.l.b16 %v3151
    %v3287 = vunpack.c.l.b16 %v3152
    %v3288 = vunpack.c.l.b16 %v3153
    %v3289 = vunpack.c.l.b16 %v3154
    %v3290 = vunpack.c.l.b16 %v3155
    %v3291 = vunpack.c.l.b16 %v3156
    %v3292 = vunpack.c.l.b16 %v3157
    %v3293 = vpack.c.b16 %v3230, %v3229
    %v3294 = vpack.c.b16 %v3232, %v3231
    %v3295 = vpack.c.b16 %v3234, %v3233
    %v3296 = vpack.c.b16 %v3236, %v3235
    %v3297 = vpack.c.b16 %v3238, %v3237
    %v3298 = vpack.c.b16 %v3240, %v3239
    %v3299 = vpack.c.b16 %v3242, %v3241
    %v3300 = vpack.c.b16 %v3244, %v3243
    %v3301 = vpack.c.b16 %v3246, %v3245
    %v3302 = vpack.c.b16 %v3248, %v3247
    %v3303 = vpack.c.b16 %v3250, %v3249
    %v3304 = vpack.c.b16 %v3252, %v3251
    %v3305 = vpack.c.b16 %v3254, %v3253
    %v3306 = vpack.c.b16 %v3256, %v3255
    %v3307 = vpack.c.b16 %v3258, %v3257
    %v3308 = vpack.c.b16 %v3260, %v3259
    %v3309 = vpack.c.b16 %v3262, %v3261
    %v3310 = vpack.c.b16 %v3264, %v3263
    %v3311 = vpack.c.b16 %v3266, %v3265
    %v3312 = vpack.c.b16 %v3268, %v3267
    %v3313 = vpack.c.b16 %v3270, %v3269
    %v3314 = vpack.c.b16 %v3272, %v3271
    %v3315 = vpack.c.b16 %v3274, %v3273
    %v3316 = vpack.c.b16 %v3276, %v3275
    %v3317 = vpack.c.b16 %v3278, %v3277
    %v3318 = vpack.c.b16 %v3280, %v3279
    %v3319 = vpack.c.b16 %v3282, %v3281
    %v3320 = vpack.c.b16 %v3284, %v3283
    %v3321 = vpack.c.b16 %v3286, %v3285
    %v3322 = vpack.c.b16 %v3288, %v3287
    %v3323 = vpack.c.b16 %v3290, %v3289
    %v3324 = vpack.c.b16 %v3292, %v3291
    %3357 = vmatprep.subr.bf16.mxu0 0
    %3358 = vmatpush1.bf16.msra.mxu0 %v3293
    %3359 = vmatprep.subr.bf16.mxu0 0
    %3360 = vmatpush1.bf16.msra.mxu0 %v3294
    %3361 = vmatprep.subr.bf16.mxu0 0
    %3362 = vmatpush1.bf16.msra.mxu0 %v3295
    %3363 = vmatprep.subr.bf16.mxu0 0
    %3364 = vmatpush1.bf16.msra.mxu0 %v3296
    %3365 = vmatprep.subr.bf16.mxu0 0
    %3366 = vmatpush1.bf16.msra.mxu0 %v3297
    %3367 = vmatprep.subr.bf16.mxu0 0
    %3368 = vmatpush1.bf16.msra.mxu0 %v3298
    %3369 = vmatprep.subr.bf16.mxu0 0
    %3370 = vmatpush1.bf16.msra.mxu0 %v3299
    %3371 = vmatprep.subr.bf16.mxu0 0
    %3372 = vmatpush1.bf16.msra.mxu0 %v3300
    %3373 = vmatprep.subr.bf16.mxu0 0
    %3374 = vmatpush1.bf16.msra.mxu0 %v3301
    %3375 = vmatprep.subr.bf16.mxu0 0
    %3376 = vmatpush1.bf16.msra.mxu0 %v3302
    %3377 = vmatprep.subr.bf16.mxu0 0
    %3378 = vmatpush1.bf16.msra.mxu0 %v3303
    %3379 = vmatprep.subr.bf16.mxu0 0
    %3380 = vmatpush1.bf16.msra.mxu0 %v3304
    %3381 = vmatprep.subr.bf16.mxu0 0
    %3382 = vmatpush1.bf16.msra.mxu0 %v3305
    %3383 = vmatprep.subr.bf16.mxu0 0
    %3384 = vmatpush1.bf16.msra.mxu0 %v3306
    %3385 = vmatprep.subr.bf16.mxu0 0
    %3386 = vmatpush1.bf16.msra.mxu0 %v3307
    %3387 = vmatprep.subr.bf16.mxu0 0
    %3388 = vmatpush1.bf16.msra.mxu0 %v3308
    %3389 = vmatprep.mubr.bf16.mxu0 %v3091
    %3390 = vmatmul.mubr.bf16.gmra.mrb[0].mxu0 %v3090
    %v3391 = vpop.f32.mrb[0].mxu0
    %v3392 = vadd.f32 %v3163, %v3391
    %v3393 = vpop.f32.mrb[0].mxu0
    %v3394 = vpop.f32.mrb[0].mxu0
    %v3395 = vpop.f32.mrb[0].mxu0
    %3396 = vdwg.mxu0
    %3397 = vmatprep.subr.bf16.mxu0 0
    %3398 = vmatpush1.bf16.msra.mxu0 %v3309
    %3399 = vmatprep.subr.bf16.mxu0 0
    %3400 = vmatpush1.bf16.msra.mxu0 %v3310
    %3401 = vmatprep.subr.bf16.mxu0 0
    %3402 = vmatpush1.bf16.msra.mxu0 %v3311
    %3403 = vmatprep.subr.bf16.mxu0 0
    %3404 = vmatpush1.bf16.msra.mxu0 %v3312
    %3405 = vmatprep.subr.bf16.mxu0 0
    %3406 = vmatpush1.bf16.msra.mxu0 %v3313
    %3407 = vmatprep.subr.bf16.mxu0 0
    %3408 = vmatpush1.bf16.msra.mxu0 %v3314
    %3409 = vmatprep.subr.bf16.mxu0 0
    %3410 = vmatpush1.bf16.msra.mxu0 %v3315
    %3411 = vmatprep.subr.bf16.mxu0 0
    %3412 = vmatpush1.bf16.msra.mxu0 %v3316
    %3413 = vmatprep.subr.bf16.mxu0 0
    %3414 = vmatpush1.bf16.msra.mxu0 %v3317
    %3415 = vmatprep.subr.bf16.mxu0 0
    %3416 = vmatpush1.bf16.msra.mxu0 %v3318
    %3417 = vmatprep.subr.bf16.mxu0 0
    %3418 = vmatpush1.bf16.msra.mxu0 %v3319
    %3419 = vmatprep.subr.bf16.mxu0 0
    %3420 = vmatpush1.bf16.msra.mxu0 %v3320
    %3421 = vmatprep.subr.bf16.mxu0 0
    %3422 = vmatpush1.bf16.msra.mxu0 %v3321
    %3423 = vmatprep.subr.bf16.mxu0 0
    %3424 = vmatpush1.bf16.msra.mxu0 %v3322
    %3425 = vmatprep.subr.bf16.mxu0 0
    %3426 = vmatpush1.bf16.msra.mxu0 %v3323
    %3427 = vmatprep.subr.bf16.mxu0 0
    %3428 = vmatpush1.bf16.msra.mxu0 %v3324
    %3429 = vmatprep.mubr.bf16.mxu0 %v3093
    %3430 = vmatmul.mubr.bf16.gmra.mrb[0].mxu0 %v3092
    %v3431 = vpop.f32.mrb[0].mxu0
    %v3432 = vadd.f32 %v3392, %v3431
    %v3433 = vpop.f32.mrb[0].mxu0
    %v3434 = vpop.f32.mrb[0].mxu0
    %v3435 = vpop.f32.mrb[0].mxu0
    %3436 = vdwg.mxu0
    %3437 = vst [vmem:[#allocation2] sm:$0x3] %v3432
    // Predicated region
    $region54: #{_lambda_.1} parent=1 // pred_check
      _
    $region55: #{_lambda_.1} parent=1 // pred_check_branch
      %3439 = sbr.rel (0) target = $region57
    $region56: #{_lambda_.1} parent=1 // pred_region
      %s3441 = ssub.s32 32, 32
      %3442 = vsyncadd [#allocation3], %s3441
      %s3444 = sshll.u32 [#allocation2], 4
      %s3445 = int_to_ptr.vmem [resolvable:$true] %s3444
      %3447 = dma.vmem_to_hbm [thread:$0]  %s3445, 32, %s13, [#allocation3]
    $region57: #{_lambda_.1} parent=1 // pred_fallthru
      _
    // Predicated region
    $region58: #{_lambda_.1} parent=1 // pred_check
      _
    $region59: #{_lambda_.1} parent=1 // pred_check_branch
      %3449 = sbr.rel (0) target = $region61
    $region60: #{_lambda_.1} parent=1 // pred_region
      %3450 = dma.done [#allocation3], 32
    $region61: #{_lambda_.1} parent=1 // pred_fallthru
      _
    %3451 = vsyncpa [#allocation3], 1

</llo_original>
